<compile_context>
chip_gen: v6e
topology: v6e:2x2x1
jax: 0.10.0
libtpu: 0.0.40
codegen_flags: <defaults>
</compile_context>

<pallas_src>
import functools
import math

import jax
import jax.numpy as jnp
from jax import lax
from jax.experimental import pallas as pl
from jax.experimental.pallas import tpu as pltpu


# ----------------------------------------------------------------------------
# Small helpers
# ----------------------------------------------------------------------------

def _layernorm(x, g, b, eps=1e-5):
    """f32 LayerNorm over the last dim. x:(M,D), g/b:(1,D)."""
    mu = jnp.mean(x, axis=-1, keepdims=True)
    var = jnp.mean(jnp.square(x - mu), axis=-1, keepdims=True)
    return (x - mu) * lax.rsqrt(var + eps) * g + b


def _gelu_exact(x):
    return 0.5 * x * (1.0 + lax.erf(x * (1.0 / math.sqrt(2.0))))


# ----------------------------------------------------------------------------
# The single fused ViT kernel (grid over layers)
# ----------------------------------------------------------------------------

def _vit_kernel(patches_ref, pw_ref, pb_ref, clspos_ref,
                ln1g_ref, ln1b_ref, ln2g_ref, ln2b_ref,
                wqkv_ref, bqkv_ref, wo_ref, bo_ref,
                w1_ref, b1_ref, w2_ref, b2_ref,
                hw1_ref, hb1_ref, hw2_ref, hb2_ref,
                tok_ref, logits_ref,
                x_sc,
                *, batch, num_heads, head_dim, n_real, npad, scale):
    """One grid step == one transformer layer.

    patches : (B*P, patch_dim) f32     pw : (patch_dim, D) bf16
    clspos  : (N, D) f32  (row 0 already contains cls_token + pos[0])
    wqkv    : (1, D, 3D) bf16 (layer slice)   wo : (1, D, D) bf16
    w1/w2   : (1, D, M)/(1, M, D) bf16        biases f32
    x_sc    : (B*Npad, D) f32 VMEM scratch, carried across layer grid steps.
    """
    l = pl.program_id(0)
    n_layers = pl.num_programs(0)
    bn, d = x_sc.shape
    p_tok = n_real - 1                                  # patch tokens / image

    # --------- prologue (first layer only): patch embed + cls/pos + pad -----
    @pl.when(l == 0)
    def _():
        emb = jnp.dot(patches_ref[...].astype(jnp.bfloat16), pw_ref[...],
                      preferred_element_type=jnp.float32) + pb_ref[...]
        rows = []
        for b in range(batch):
            rows.append(clspos_ref[0:1, :])                         # cls + pos0
            rows.append(emb[b * p_tok:(b + 1) * p_tok, :]
                        + clspos_ref[1:n_real, :])                  # patches
            if npad > n_real:
                rows.append(jnp.zeros((npad - n_real, d), jnp.float32))
        x_sc[...] = jnp.concatenate(rows, axis=0)

    # --------- one transformer layer (every grid step) -----------------------
    x = x_sc[...]                                       # (B*Npad, D) f32
    h = _layernorm(x, ln1g_ref[0], ln1b_ref[0])
    hb = h.astype(jnp.bfloat16)

    # Fused QKV projection: one (BN, D) @ (D, 3D) matmul per layer.
    qkv = jnp.dot(hb, wqkv_ref[0],
                  preferred_element_type=jnp.float32) + bqkv_ref[0]

    if n_real < npad:
        col = lax.broadcasted_iota(jnp.int32, (npad, npad), 1)
        neg_mask = jnp.where(col < n_real, 0.0, -1e30).astype(jnp.float32)

    hd = head_dim
    ctx_rows = []
    for b in range(batch):
        r0 = b * npad
        qb = qkv[r0:r0 + npad, 0:d] * scale
        kb = qkv[r0:r0 + npad, d:2 * d]
        vb = qkv[r0:r0 + npad, 2 * d:3 * d]
        head_cols = []
        for hh in range(num_heads):
            c0 = hh * hd
            qh = qb[:, c0:c0 + hd].astype(jnp.bfloat16)
            kh = kb[:, c0:c0 + hd].astype(jnp.bfloat16)
            vh = vb[:, c0:c0 + hd].astype(jnp.bfloat16)
            s = lax.dot_general(qh, kh, (((1,), (1,)), ((), ())),
                                preferred_element_type=jnp.float32)
            if n_real < npad:
                s = s + neg_mask                        # mask padded keys
            m = jnp.max(s, axis=-1, keepdims=True)
            p = jnp.exp(s - m)
            denom = jnp.sum(p, axis=-1, keepdims=True)
            p = p * pl.reciprocal(denom, approx=True)
            head_cols.append(jnp.dot(p.astype(jnp.bfloat16), vh,
                                     preferred_element_type=jnp.float32))
        ctx_rows.append(jnp.concatenate(head_cols, axis=1))   # (Npad, D)
    ctx = jnp.concatenate(ctx_rows, axis=0)                   # (BN, D)

    # Head-concat along lanes -> single output-projection matmul.
    attn = jnp.dot(ctx.astype(jnp.bfloat16), wo_ref[0],
                   preferred_element_type=jnp.float32) + bo_ref[0]
    x = x + attn                                        # residual

    h2 = _layernorm(x, ln2g_ref[0], ln2b_ref[0])
    m1 = jnp.dot(h2.astype(jnp.bfloat16), w1_ref[0],
                 preferred_element_type=jnp.float32) + b1_ref[0]
    m1 = jnp.maximum(m1, 0.0)                           # ReLU (matches spec)
    m2 = jnp.dot(m1.astype(jnp.bfloat16), w2_ref[0],
                 preferred_element_type=jnp.float32) + b2_ref[0]
    x = x + m2                                          # residual
    x_sc[...] = x

    # --------- epilogue (last layer only): tokens out + classification head -
    @pl.when(l == n_layers - 1)
    def _():
        tok_ref[...] = x.reshape(batch, npad, d)
        cls_rows = jnp.concatenate(
            [x[b * npad:b * npad + 1, :] for b in range(batch)], axis=0)
        h1 = jnp.dot(cls_rows.astype(jnp.bfloat16), hw1_ref[...],
                     preferred_element_type=jnp.float32) + hb1_ref[...]
        h1 = _gelu_exact(h1)
        logits_ref[...] = jnp.dot(h1.astype(jnp.bfloat16), hw2_ref[...],
                                  preferred_element_type=jnp.float32) + hb2_ref[...]


def pallas_vit(patches, clspos, params, *, batch, n_real, npad, num_heads):
    L, D, _ = params["wqkv"].shape
    num_classes = params["head_w2"].shape[-1]
    hd = D // num_heads
    scale = 1.0 / math.sqrt(hd)

    def const_spec(a):
        nd = a.ndim
        return pl.BlockSpec(a.shape, lambda l, nd=nd: (0,) * nd)

    def layer_spec(a):
        zeros = (0,) * (a.ndim - 1)
        return pl.BlockSpec((1,) + a.shape[1:],
                            lambda l, zeros=zeros: (l,) + zeros)

    layer_names = ["ln1_g", "ln1_b", "ln2_g", "ln2_b",
                   "wqkv", "bqkv", "wo", "bo", "w1", "b1", "w2", "b2"]
    layer_args = [params[n] for n in layer_names]
    head_names = ["head_w1", "head_b1", "head_w2", "head_b2"]
    head_args = [params[n] for n in head_names]

    kernel = functools.partial(
        _vit_kernel, batch=batch, num_heads=num_heads, head_dim=hd,
        n_real=n_real, npad=npad, scale=scale)

    tok_pad, logits = pl.pallas_call(
        kernel,
        out_shape=(jax.ShapeDtypeStruct((batch, npad, D), jnp.float32),
                   jax.ShapeDtypeStruct((batch, num_classes), jnp.float32)),
        grid=(L,),
        in_specs=([const_spec(patches), const_spec(params["patch_w"]),
                   const_spec(params["patch_b"]), const_spec(clspos)]
                  + [layer_spec(a) for a in layer_args]
                  + [const_spec(a) for a in head_args]),
        out_specs=(pl.BlockSpec((batch, npad, D), lambda l: (0, 0, 0)),
                   pl.BlockSpec((batch, num_classes), lambda l: (0, 0))),
        scratch_shapes=[pltpu.VMEM((batch * npad, D), jnp.float32)],
        compiler_params=pltpu.CompilerParams(
            dimension_semantics=("arbitrary",),
            vmem_limit_bytes=32 * 1024 * 1024),
    )(patches, params["patch_w"], params["patch_b"], clspos,
      *layer_args, *head_args)
    return tok_pad, logits


# ----------------------------------------------------------------------------
# Parameter initialization (deterministic, synthetic, stacked per layer)
# ----------------------------------------------------------------------------

def init_params(key, *, img_size, patch_size, embed_dim, mlp_dim, num_layers,
                num_classes, num_heads, in_channels):
    num_patches = (img_size // patch_size) ** 2
    patch_dim = in_channels * patch_size * patch_size
    L, D = num_layers, embed_dim

    keys = iter(jax.random.split(key, 16))

    def rnd(shape, scale=0.02):
        return jax.random.normal(next(keys), shape, jnp.float32) * scale

    wq, wk, wv = rnd((L, D, D)), rnd((L, D, D)), rnd((L, D, D))
    wqkv = jnp.concatenate([wq, wk, wv], axis=-1)          # (L, D, 3D)

    params = {
        "patch_w": rnd((patch_dim, D)).astype(jnp.bfloat16),
        "patch_b": jnp.zeros((1, D), jnp.float32),
        "cls_token": rnd((1, 1, D), 1.0),
        "pos_embedding": rnd((1, num_patches + 1, D), 1.0),
        "ln1_g": jnp.ones((L, 1, D), jnp.float32),
        "ln1_b": jnp.zeros((L, 1, D), jnp.float32),
        "ln2_g": jnp.ones((L, 1, D), jnp.float32),
        "ln2_b": jnp.zeros((L, 1, D), jnp.float32),
        "wqkv": wqkv.astype(jnp.bfloat16),
        "bqkv": jnp.zeros((L, 1, 3 * D), jnp.float32),
        "wo": rnd((L, D, D)).astype(jnp.bfloat16),
        "bo": jnp.zeros((L, 1, D), jnp.float32),
        "w1": rnd((L, D, mlp_dim)).astype(jnp.bfloat16),
        "b1": jnp.zeros((L, 1, mlp_dim), jnp.float32),
        "w2": rnd((L, mlp_dim, D)).astype(jnp.bfloat16),
        "b2": jnp.zeros((L, 1, D), jnp.float32),
        "head_w1": rnd((D, D // 2)).astype(jnp.bfloat16),
        "head_b1": jnp.zeros((1, D // 2), jnp.float32),
        "head_w2": rnd((D // 2, num_classes)).astype(jnp.bfloat16),
        "head_b2": jnp.zeros((1, num_classes), jnp.float32),
    }
    return params


# ----------------------------------------------------------------------------
# Forward pass (thin JAX glue around ONE Pallas kernel)
# ----------------------------------------------------------------------------

def vit_forward(params, x, *, patch_size, num_heads):
    # x is NCHW (B, C, H, W), identical to the PyTorch module.
    B, C, H, W = x.shape
    ps = patch_size
    nh, nw = H // ps, W // ps
    P = nh * nw
    patch_dim = C * ps * ps
    D = params["pos_embedding"].shape[-1]
    N = P + 1
    Npad = ((N + 7) // 8) * 8                 # sublane-aligned token count

    # Patchify (matches torch unfold + permute: feature order = (C, ph, pw)).
    patches = x.reshape(B, C, nh, ps, nw, ps).transpose(0, 2, 4, 1, 3, 5)
    patches = patches.reshape(B * P, patch_dim)

    # Combine cls token and positional embedding: row 0 = cls + pos[0].
    clspos = params["pos_embedding"][0].at[0].add(params["cls_token"][0, 0])
    # dropout -> identity (eval mode)

    tok_pad, logits = pallas_vit(patches, clspos, params, batch=B, n_real=N,
                                 npad=Npad, num_heads=num_heads)
    return logits, tok_pad[:, :N, :]


# ----------------------------------------------------------------------------
# Pure-JAX f32 reference (loose numerical sanity check)
# ----------------------------------------------------------------------------

def reference_forward(params, x, *, patch_size, num_heads):
    B, C, H, W = x.shape
    ps = patch_size
    nh, nw = H // ps, W // ps
    P = nh * nw
    D = params["pos_embedding"].shape[-1]
    hd = D // num_heads

    patches = x.reshape(B, C, nh, ps, nw, ps).transpose(0, 2, 4, 1, 3, 5)
    patches = patches.reshape(B, P, -1)
    emb = patches @ params["patch_w"].astype(jnp.float32) + params["patch_b"]
    cls = jnp.broadcast_to(params["cls_token"], (B, 1, D))
    tok = jnp.concatenate([cls, emb], axis=1) + params["pos_embedding"]

    def ln(z, g, b):
        mu = jnp.mean(z, -1, keepdims=True)
        var = jnp.mean(jnp.square(z - mu), -1, keepdims=True)
        return (z - mu) * lax.rsqrt(var + 1e-5) * g + b

    L = params["wqkv"].shape[0]
    N = tok.shape[1]
    for l in range(L):
        h = ln(tok, params["ln1_g"][l], params["ln1_b"][l])
        wqkv = params["wqkv"][l].astype(jnp.float32)
        qkv = h @ wqkv + params["bqkv"][l]
        q, k, v = qkv[..., :D], qkv[..., D:2 * D], qkv[..., 2 * D:]
        q = q.reshape(B, N, num_heads, hd).transpose(0, 2, 1, 3)
        k = k.reshape(B, N, num_heads, hd).transpose(0, 2, 1, 3)
        v = v.reshape(B, N, num_heads, hd).transpose(0, 2, 1, 3)
        s = (q @ jnp.swapaxes(k, -1, -2)) / math.sqrt(hd)
        p = jax.nn.softmax(s, axis=-1)
        ctx = (p @ v).transpose(0, 2, 1, 3).reshape(B, N, D)
        tok = tok + ctx @ params["wo"][l].astype(jnp.float32) + params["bo"][l]
        h2 = ln(tok, params["ln2_g"][l], params["ln2_b"][l])
        m = jnp.maximum(h2 @ params["w1"][l].astype(jnp.float32)
                        + params["b1"][l], 0.0)
        tok = tok + m @ params["w2"][l].astype(jnp.float32) + params["b2"][l]

    cls_e = tok[:, 0]
    h1 = cls_e @ params["head_w1"].astype(jnp.float32) + params["head_b1"]
    h1 = _gelu_exact(h1)
    logits = h1 @ params["head_w2"].astype(jnp.float32) + params["head_b2"]
    return logits, tok


# ----------------------------------------------------------------------------
# Main
# ----------------------------------------------------------------------------

if __name__ == "__main__":
    img_size = 16
    patch_size = 4
    in_channels = 4
    embed_dim = 32
    mlp_dim = 64
    num_layers = 2
    num_classes = 10
    num_heads = 4
    batch = 2

    key = jax.random.PRNGKey(0)
    k_params, k_x = jax.random.split(key)

    params = init_params(
        k_params,
        img_size=img_size, patch_size=patch_size, embed_dim=embed_dim,
        mlp_dim=mlp_dim, num_layers=num_layers, num_classes=num_classes,
        num_heads=num_heads, in_channels=in_channels)

    x = jax.random.normal(k_x, (batch, in_channels, img_size, img_size),
                          dtype=jnp.float32)

    fwd = jax.jit(functools.partial(vit_forward,
                                    patch_size=patch_size,
                                    num_heads=num_heads))
    logits, embeddings = fwd(params, x)
    jax.block_until_ready((logits, embeddings))

    num_patches = (img_size // patch_size) ** 2
    assert logits.shape == (batch, num_classes)
    assert embeddings.shape == (batch, num_patches + 1, embed_dim)
    assert bool(jnp.all(jnp.isfinite(logits)))
    assert bool(jnp.all(jnp.isfinite(embeddings)))

    # Loose sanity check vs pure-JAX f32 reference (kernel uses bf16 matmuls).
    ref_logits, ref_emb = jax.jit(functools.partial(
        reference_forward, patch_size=patch_size, num_heads=num_heads))(params, x)
    assert bool(jnp.allclose(logits, ref_logits, atol=5e-2, rtol=5e-2))
    assert bool(jnp.allclose(embeddings, ref_emb, atol=5e-2, rtol=5e-2))

    print("KERNEL_OK")
</pallas_src>

<mosaic_0001>
module attributes {stable_mosaic.version = 11 : i64} {
  func.func @_vit_kernel(%arg0: i32, %arg1: memref<32x64xf32, #tpu.memory_space<vmem>>, %arg2: memref<64x32xbf16, #tpu.memory_space<vmem>>, %arg3: memref<1x32xf32, #tpu.memory_space<vmem>>, %arg4: memref<17x32xf32, #tpu.memory_space<vmem>>, %arg5: memref<1x1x32xf32, #tpu.memory_space<vmem>>, %arg6: memref<1x1x32xf32, #tpu.memory_space<vmem>>, %arg7: memref<1x1x32xf32, #tpu.memory_space<vmem>>, %arg8: memref<1x1x32xf32, #tpu.memory_space<vmem>>, %arg9: memref<1x32x96xbf16, #tpu.memory_space<vmem>>, %arg10: memref<1x1x96xf32, #tpu.memory_space<vmem>>, %arg11: memref<1x32x32xbf16, #tpu.memory_space<vmem>>, %arg12: memref<1x1x32xf32, #tpu.memory_space<vmem>>, %arg13: memref<1x32x64xbf16, #tpu.memory_space<vmem>>, %arg14: memref<1x1x64xf32, #tpu.memory_space<vmem>>, %arg15: memref<1x64x32xbf16, #tpu.memory_space<vmem>>, %arg16: memref<1x1x32xf32, #tpu.memory_space<vmem>>, %arg17: memref<32x16xbf16, #tpu.memory_space<vmem>>, %arg18: memref<1x16xf32, #tpu.memory_space<vmem>>, %arg19: memref<16x10xbf16, #tpu.memory_space<vmem>>, %arg20: memref<1x10xf32, #tpu.memory_space<vmem>>, %arg21: memref<2x24x32xf32, #tpu.memory_space<vmem>>, %arg22: memref<2x10xf32, #tpu.memory_space<vmem>>, %arg23: memref<48x32xf32, #tpu.memory_space<vmem>>) attributes {dimension_semantics = [#tpu.dimension_semantics<arbitrary>], iteration_bounds = array<i64: 2>, scalar_prefetch = 0 : i64, scratch_operands = 1 : i64, tpu.core_type = #tpu.core_type<tc>, window_params = [{pipeline_mode = #tpu.pipeline_mode<synchronous>, transform_indices = @transform_0, window_bounds = array<i64: 32, 64>}, {pipeline_mode = #tpu.pipeline_mode<synchronous>, transform_indices = @transform_1, window_bounds = array<i64: 64, 32>}, {pipeline_mode = #tpu.pipeline_mode<synchronous>, transform_indices = @transform_2, window_bounds = array<i64: 1, 32>}, {pipeline_mode = #tpu.pipeline_mode<synchronous>, transform_indices = @transform_3, window_bounds = array<i64: 17, 32>}, {transform_indices = @transform_4, window_bounds = array<i64: 1, 1, 32>}, {transform_indices = @transform_5, window_bounds = array<i64: 1, 1, 32>}, {transform_indices = @transform_6, window_bounds = array<i64: 1, 1, 32>}, {transform_indices = @transform_7, window_bounds = array<i64: 1, 1, 32>}, {transform_indices = @transform_8, window_bounds = array<i64: 1, 32, 96>}, {transform_indices = @transform_9, window_bounds = array<i64: 1, 1, 96>}, {transform_indices = @transform_10, window_bounds = array<i64: 1, 32, 32>}, {transform_indices = @transform_11, window_bounds = array<i64: 1, 1, 32>}, {transform_indices = @transform_12, window_bounds = array<i64: 1, 32, 64>}, {transform_indices = @transform_13, window_bounds = array<i64: 1, 1, 64>}, {transform_indices = @transform_14, window_bounds = array<i64: 1, 64, 32>}, {transform_indices = @transform_15, window_bounds = array<i64: 1, 1, 32>}, {pipeline_mode = #tpu.pipeline_mode<synchronous>, transform_indices = @transform_16, window_bounds = array<i64: 32, 16>}, {pipeline_mode = #tpu.pipeline_mode<synchronous>, transform_indices = @transform_17, window_bounds = array<i64: 1, 16>}, {pipeline_mode = #tpu.pipeline_mode<synchronous>, transform_indices = @transform_18, window_bounds = array<i64: 16, 10>}, {pipeline_mode = #tpu.pipeline_mode<synchronous>, transform_indices = @transform_19, window_bounds = array<i64: 1, 10>}, {pipeline_mode = #tpu.pipeline_mode<synchronous>, transform_indices = @transform_20, window_bounds = array<i64: 2, 24, 32>}, {pipeline_mode = #tpu.pipeline_mode<synchronous>, transform_indices = @transform_21, window_bounds = array<i64: 2, 10>}]} {
    %c0_i32 = arith.constant 0 : i32
    %0 = arith.cmpi eq, %arg0, %c0_i32 : i32
    %1 = arith.extui %0 : i1 to i32
    %c0_i32_0 = arith.constant 0 : i32
    %2 = arith.cmpi ne, %1, %c0_i32_0 : i32
    scf.if %2 {
      %c0_91 = arith.constant 0 : index
      %c0_92 = arith.constant 0 : index
      %275 = vector.load %arg1[%c0_91, %c0_92] : memref<32x64xf32, #tpu.memory_space<vmem>>, vector<32x64xf32>
      %276 = arith.truncf %275 : vector<32x64xf32> to vector<32x64xbf16>
      %c0_93 = arith.constant 0 : index
      %c0_94 = arith.constant 0 : index
      %277 = vector.load %arg2[%c0_93, %c0_94] : memref<64x32xbf16, #tpu.memory_space<vmem>>, vector<64x32xbf16>
      %cst_95 = arith.constant dense<0.000000e+00> : vector<32x32xf32>
      %278 = tpu.matmul %276, %277, %cst_95 {dimension_numbers = #tpu.dot_dimension_numbers<[1], [0], [0], [1], [0, 0, 1, 1], [], []>} : vector<32x64xbf16>, vector<64x32xbf16>, vector<32x32xf32> -> vector<32x32xf32>
      %c0_96 = arith.constant 0 : index
      %c0_97 = arith.constant 0 : index
      %279 = vector.load %arg3[%c0_96, %c0_97] : memref<1x32xf32, #tpu.memory_space<vmem>>, vector<1x32xf32>
      %280 = vector.broadcast %279 : vector<1x32xf32> to vector<32x32xf32>
      %281 = arith.addf %278, %280 : vector<32x32xf32>
      %c0_98 = arith.constant 0 : index
      %c0_99 = arith.constant 0 : index
      %282 = vector.load %arg4[%c0_98, %c0_99] : memref<17x32xf32, #tpu.memory_space<vmem>>, vector<1x32xf32>
      %283 = vector.extract_strided_slice %281 {offsets = [0, 0], sizes = [16, 32], strides = [1, 1]} : vector<32x32xf32> to vector<16x32xf32>
      %c1 = arith.constant 1 : index
      %c0_100 = arith.constant 0 : index
      %284 = vector.load %arg4[%c1, %c0_100] : memref<17x32xf32, #tpu.memory_space<vmem>>, vector<16x32xf32>
      %285 = arith.addf %283, %284 : vector<16x32xf32>
      %cst_101 = arith.constant 0.000000e+00 : f32
      %286 = vector.broadcast %cst_101 : f32 to vector<7x32xf32>
      %c0_102 = arith.constant 0 : index
      %c0_103 = arith.constant 0 : index
      %287 = vector.load %arg4[%c0_102, %c0_103] : memref<17x32xf32, #tpu.memory_space<vmem>>, vector<1x32xf32>
      %288 = vector.extract_strided_slice %281 {offsets = [16, 0], sizes = [16, 32], strides = [1, 1]} : vector<32x32xf32> to vector<16x32xf32>
      %c1_104 = arith.constant 1 : index
      %c0_105 = arith.constant 0 : index
      %289 = vector.load %arg4[%c1_104, %c0_105] : memref<17x32xf32, #tpu.memory_space<vmem>>, vector<16x32xf32>
      %290 = arith.addf %288, %289 : vector<16x32xf32>
      %cst_106 = arith.constant 0.000000e+00 : f32
      %291 = vector.broadcast %cst_106 : f32 to vector<7x32xf32>
      %292 = tpu.concatenate %282, %285, %286, %287, %290, %291 in 0 : vector<1x32xf32>, vector<16x32xf32>, vector<7x32xf32>, vector<1x32xf32>, vector<16x32xf32>, vector<7x32xf32> -> vector<48x32xf32>
      %c0_107 = arith.constant 0 : index
      %c0_108 = arith.constant 0 : index
      %293 = vector.load %arg23[%c0_107, %c0_108] : memref<48x32xf32, #tpu.memory_space<vmem>>, vector<48x32xf32>
      tpu.vector_store %arg23[%c0_107, %c0_108], %292 {strides = array<i32>} : memref<48x32xf32, #tpu.memory_space<vmem>>, vector<48x32xf32>,
    } else {
    }
    %c0 = arith.constant 0 : index
    %c0_1 = arith.constant 0 : index
    %3 = vector.load %arg23[%c0, %c0_1] : memref<48x32xf32, #tpu.memory_space<vmem>>, vector<48x32xf32>
    %c0_2 = arith.constant 0 : index
    %c0_3 = arith.constant 0 : index
    %c0_4 = arith.constant 0 : index
    %4 = vector.load %arg5[%c0_2, %c0_3, %c0_4] : memref<1x1x32xf32, #tpu.memory_space<vmem>>, vector<1x1x32xf32>
    %5 = vector.shape_cast %4 : vector<1x1x32xf32> to vector<1x32xf32>
    %c0_5 = arith.constant 0 : index
    %c0_6 = arith.constant 0 : index
    %c0_7 = arith.constant 0 : index
    %6 = vector.load %arg6[%c0_5, %c0_6, %c0_7] : memref<1x1x32xf32, #tpu.memory_space<vmem>>, vector<1x1x32xf32>
    %7 = vector.shape_cast %6 : vector<1x1x32xf32> to vector<1x32xf32>
    %cst = arith.constant dense<0.000000e+00> : vector<48xf32>
    %8 = vector.multi_reduction <add>, %3, %cst [1] : vector<48x32xf32> to vector<48xf32>
    %9 = vector.shape_cast %8 : vector<48xf32> to vector<48x1xf32>
    %cst_8 = arith.constant 3.200000e+01 : f32
    %10 = vector.broadcast %cst_8 : f32 to vector<48x1xf32>
    %11 = arith.divf %9, %10 : vector<48x1xf32>
    %12 = vector.broadcast %11 : vector<48x1xf32> to vector<48x32xf32>
    %13 = arith.subf %3, %12 : vector<48x32xf32>
    %14 = arith.mulf %13, %13 : vector<48x32xf32>
    %cst_9 = arith.constant dense<0.000000e+00> : vector<48xf32>
    %15 = vector.multi_reduction <add>, %14, %cst_9 [1] : vector<48x32xf32> to vector<48xf32>
    %16 = vector.shape_cast %15 : vector<48xf32> to vector<48x1xf32>
    %cst_10 = arith.constant 3.200000e+01 : f32
    %17 = vector.broadcast %cst_10 : f32 to vector<48x1xf32>
    %18 = arith.divf %16, %17 : vector<48x1xf32>
    %19 = vector.broadcast %11 : vector<48x1xf32> to vector<48x32xf32>
    %20 = arith.subf %3, %19 : vector<48x32xf32>
    %cst_11 = arith.constant 9.99999974E-6 : f32
    %21 = vector.broadcast %cst_11 : f32 to vector<48x1xf32>
    %22 = arith.addf %18, %21 : vector<48x1xf32>
    %23 = math.rsqrt %22 : vector<48x1xf32>
    %24 = vector.broadcast %23 : vector<48x1xf32> to vector<48x32xf32>
    %25 = arith.mulf %20, %24 : vector<48x32xf32>
    %26 = vector.broadcast %5 : vector<1x32xf32> to vector<48x32xf32>
    %27 = arith.mulf %25, %26 : vector<48x32xf32>
    %28 = vector.broadcast %7 : vector<1x32xf32> to vector<48x32xf32>
    %29 = arith.addf %27, %28 : vector<48x32xf32>
    %30 = arith.truncf %29 : vector<48x32xf32> to vector<48x32xbf16>
    %c0_12 = arith.constant 0 : index
    %c0_13 = arith.constant 0 : index
    %c0_14 = arith.constant 0 : index
    %31 = vector.load %arg9[%c0_12, %c0_13, %c0_14] : memref<1x32x96xbf16, #tpu.memory_space<vmem>>, vector<1x32x96xbf16>
    %32 = vector.shape_cast %31 : vector<1x32x96xbf16> to vector<32x96xbf16>
    %cst_15 = arith.constant dense<0.000000e+00> : vector<48x96xf32>
    %33 = tpu.matmul %30, %32, %cst_15 {dimension_numbers = #tpu.dot_dimension_numbers<[1], [0], [0], [1], [0, 0, 1, 1], [], []>} : vector<48x32xbf16>, vector<32x96xbf16>, vector<48x96xf32> -> vector<48x96xf32>
    %c0_16 = arith.constant 0 : index
    %c0_17 = arith.constant 0 : index
    %c0_18 = arith.constant 0 : index
    %34 = vector.load %arg10[%c0_16, %c0_17, %c0_18] : memref<1x1x96xf32, #tpu.memory_space<vmem>>, vector<1x1x96xf32>
    %35 = vector.shape_cast %34 : vector<1x1x96xf32> to vector<1x96xf32>
    %36 = vector.broadcast %35 : vector<1x96xf32> to vector<48x96xf32>
    %37 = arith.addf %33, %36 : vector<48x96xf32>
    %38 = tpu.iota {dimensions = array<i32: 1>} : vector<24x24xi32>
    %c17_i32 = arith.constant 17 : i32
    %39 = vector.broadcast %c17_i32 : i32 to vector<24x24xi32>
    %40 = arith.cmpi slt, %38, %39 : vector<24x24xi32>
    %cst_19 = arith.constant 0.000000e+00 : f32
    %cst_20 = arith.constant -1.000000e+30 : f32
    %41 = vector.broadcast %cst_19 : f32 to vector<24x24xf32>
    %42 = vector.broadcast %cst_20 : f32 to vector<24x24xf32>
    %43 = arith.select %40, %41, %42 : vector<24x24xi1>, vector<24x24xf32>
    %44 = vector.extract_strided_slice %37 {offsets = [0, 0], sizes = [24, 32], strides = [1, 1]} : vector<48x96xf32> to vector<24x32xf32>
    %cst_21 = arith.constant 0.353553385 : f32
    %45 = vector.broadcast %cst_21 : f32 to vector<24x32xf32>
    %46 = arith.mulf %44, %45 : vector<24x32xf32>
    %47 = vector.extract_strided_slice %37 {offsets = [0, 32], sizes = [24, 32], strides = [1, 1]} : vector<48x96xf32> to vector<24x32xf32>
    %48 = vector.extract_strided_slice %37 {offsets = [0, 64], sizes = [24, 32], strides = [1, 1]} : vector<48x96xf32> to vector<24x32xf32>
    %49 = vector.extract_strided_slice %46 {offsets = [0, 0], sizes = [24, 8], strides = [1, 1]} : vector<24x32xf32> to vector<24x8xf32>
    %50 = arith.truncf %49 : vector<24x8xf32> to vector<24x8xbf16>
    %51 = vector.extract_strided_slice %47 {offsets = [0, 0], sizes = [24, 8], strides = [1, 1]} : vector<24x32xf32> to vector<24x8xf32>
    %52 = arith.truncf %51 : vector<24x8xf32> to vector<24x8xbf16>
    %53 = vector.extract_strided_slice %48 {offsets = [0, 0], sizes = [24, 8], strides = [1, 1]} : vector<24x32xf32> to vector<24x8xf32>
    %54 = arith.truncf %53 : vector<24x8xf32> to vector<24x8xbf16>
    %cst_22 = arith.constant dense<0.000000e+00> : vector<24x24xf32>
    %55 = tpu.matmul %50, %52, %cst_22 {dimension_numbers = #tpu.dot_dimension_numbers<[1], [1], [0], [0], [0, 0, 1, 0], [], []>} : vector<24x8xbf16>, vector<24x8xbf16>, vector<24x24xf32> -> vector<24x24xf32>
    %56 = arith.addf %55, %43 : vector<24x24xf32>
    %cst_23 = arith.constant dense<0xFF800000> : vector<24xf32>
    %57 = vector.multi_reduction <maximumf>, %56, %cst_23 [1] : vector<24x24xf32> to vector<24xf32>
    %58 = vector.shape_cast %57 : vector<24xf32> to vector<24x1xf32>
    %59 = vector.broadcast %58 : vector<24x1xf32> to vector<24x24xf32>
    %60 = arith.subf %56, %59 : vector<24x24xf32>
    %61 = math.exp %60 : vector<24x24xf32>
    %cst_24 = arith.constant dense<0.000000e+00> : vector<24xf32>
    %62 = vector.multi_reduction <add>, %61, %cst_24 [1] : vector<24x24xf32> to vector<24xf32>
    %63 = vector.shape_cast %62 : vector<24xf32> to vector<24x1xf32>
    %64 = tpu.reciprocal %63 {approx = true} : vector<24x1xf32> -> vector<24x1xf32>
    %65 = vector.broadcast %64 : vector<24x1xf32> to vector<24x24xf32>
    %66 = arith.mulf %61, %65 : vector<24x24xf32>
    %67 = arith.truncf %66 : vector<24x24xf32> to vector<24x24xbf16>
    %cst_25 = arith.constant dense<0.000000e+00> : vector<24x8xf32>
    %68 = tpu.matmul %67, %54, %cst_25 {dimension_numbers = #tpu.dot_dimension_numbers<[1], [0], [0], [1], [0, 0, 1, 1], [], []>} : vector<24x24xbf16>, vector<24x8xbf16>, vector<24x8xf32> -> vector<24x8xf32>
    %69 = vector.extract_strided_slice %46 {offsets = [0, 8], sizes = [24, 8], strides = [1, 1]} : vector<24x32xf32> to vector<24x8xf32>
    %70 = arith.truncf %69 : vector<24x8xf32> to vector<24x8xbf16>
    %71 = vector.extract_strided_slice %47 {offsets = [0, 8], sizes = [24, 8], strides = [1, 1]} : vector<24x32xf32> to vector<24x8xf32>
    %72 = arith.truncf %71 : vector<24x8xf32> to vector<24x8xbf16>
    %73 = vector.extract_strided_slice %48 {offsets = [0, 8], sizes = [24, 8], strides = [1, 1]} : vector<24x32xf32> to vector<24x8xf32>
    %74 = arith.truncf %73 : vector<24x8xf32> to vector<24x8xbf16>
    %cst_26 = arith.constant dense<0.000000e+00> : vector<24x24xf32>
    %75 = tpu.matmul %70, %72, %cst_26 {dimension_numbers = #tpu.dot_dimension_numbers<[1], [1], [0], [0], [0, 0, 1, 0], [], []>} : vector<24x8xbf16>, vector<24x8xbf16>, vector<24x24xf32> -> vector<24x24xf32>
    %76 = arith.addf %75, %43 : vector<24x24xf32>
    %cst_27 = arith.constant dense<0xFF800000> : vector<24xf32>
    %77 = vector.multi_reduction <maximumf>, %76, %cst_27 [1] : vector<24x24xf32> to vector<24xf32>
    %78 = vector.shape_cast %77 : vector<24xf32> to vector<24x1xf32>
    %79 = vector.broadcast %78 : vector<24x1xf32> to vector<24x24xf32>
    %80 = arith.subf %76, %79 : vector<24x24xf32>
    %81 = math.exp %80 : vector<24x24xf32>
    %cst_28 = arith.constant dense<0.000000e+00> : vector<24xf32>
    %82 = vector.multi_reduction <add>, %81, %cst_28 [1] : vector<24x24xf32> to vector<24xf32>
    %83 = vector.shape_cast %82 : vector<24xf32> to vector<24x1xf32>
    %84 = tpu.reciprocal %83 {approx = true} : vector<24x1xf32> -> vector<24x1xf32>
    %85 = vector.broadcast %84 : vector<24x1xf32> to vector<24x24xf32>
    %86 = arith.mulf %81, %85 : vector<24x24xf32>
    %87 = arith.truncf %86 : vector<24x24xf32> to vector<24x24xbf16>
    %cst_29 = arith.constant dense<0.000000e+00> : vector<24x8xf32>
    %88 = tpu.matmul %87, %74, %cst_29 {dimension_numbers = #tpu.dot_dimension_numbers<[1], [0], [0], [1], [0, 0, 1, 1], [], []>} : vector<24x24xbf16>, vector<24x8xbf16>, vector<24x8xf32> -> vector<24x8xf32>
    %89 = vector.extract_strided_slice %46 {offsets = [0, 16], sizes = [24, 8], strides = [1, 1]} : vector<24x32xf32> to vector<24x8xf32>
    %90 = arith.truncf %89 : vector<24x8xf32> to vector<24x8xbf16>
    %91 = vector.extract_strided_slice %47 {offsets = [0, 16], sizes = [24, 8], strides = [1, 1]} : vector<24x32xf32> to vector<24x8xf32>
    %92 = arith.truncf %91 : vector<24x8xf32> to vector<24x8xbf16>
    %93 = vector.extract_strided_slice %48 {offsets = [0, 16], sizes = [24, 8], strides = [1, 1]} : vector<24x32xf32> to vector<24x8xf32>
    %94 = arith.truncf %93 : vector<24x8xf32> to vector<24x8xbf16>
    %cst_30 = arith.constant dense<0.000000e+00> : vector<24x24xf32>
    %95 = tpu.matmul %90, %92, %cst_30 {dimension_numbers = #tpu.dot_dimension_numbers<[1], [1], [0], [0], [0, 0, 1, 0], [], []>} : vector<24x8xbf16>, vector<24x8xbf16>, vector<24x24xf32> -> vector<24x24xf32>
    %96 = arith.addf %95, %43 : vector<24x24xf32>
    %cst_31 = arith.constant dense<0xFF800000> : vector<24xf32>
    %97 = vector.multi_reduction <maximumf>, %96, %cst_31 [1] : vector<24x24xf32> to vector<24xf32>
    %98 = vector.shape_cast %97 : vector<24xf32> to vector<24x1xf32>
    %99 = vector.broadcast %98 : vector<24x1xf32> to vector<24x24xf32>
    %100 = arith.subf %96, %99 : vector<24x24xf32>
    %101 = math.exp %100 : vector<24x24xf32>
    %cst_32 = arith.constant dense<0.000000e+00> : vector<24xf32>
    %102 = vector.multi_reduction <add>, %101, %cst_32 [1] : vector<24x24xf32> to vector<24xf32>
    %103 = vector.shape_cast %102 : vector<24xf32> to vector<24x1xf32>
    %104 = tpu.reciprocal %103 {approx = true} : vector<24x1xf32> -> vector<24x1xf32>
    %105 = vector.broadcast %104 : vector<24x1xf32> to vector<24x24xf32>
    %106 = arith.mulf %101, %105 : vector<24x24xf32>
    %107 = arith.truncf %106 : vector<24x24xf32> to vector<24x24xbf16>
    %cst_33 = arith.constant dense<0.000000e+00> : vector<24x8xf32>
    %108 = tpu.matmul %107, %94, %cst_33 {dimension_numbers = #tpu.dot_dimension_numbers<[1], [0], [0], [1], [0, 0, 1, 1], [], []>} : vector<24x24xbf16>, vector<24x8xbf16>, vector<24x8xf32> -> vector<24x8xf32>
    %109 = vector.extract_strided_slice %46 {offsets = [0, 24], sizes = [24, 8], strides = [1, 1]} : vector<24x32xf32> to vector<24x8xf32>
    %110 = arith.truncf %109 : vector<24x8xf32> to vector<24x8xbf16>
    %111 = vector.extract_strided_slice %47 {offsets = [0, 24], sizes = [24, 8], strides = [1, 1]} : vector<24x32xf32> to vector<24x8xf32>
    %112 = arith.truncf %111 : vector<24x8xf32> to vector<24x8xbf16>
    %113 = vector.extract_strided_slice %48 {offsets = [0, 24], sizes = [24, 8], strides = [1, 1]} : vector<24x32xf32> to vector<24x8xf32>
    %114 = arith.truncf %113 : vector<24x8xf32> to vector<24x8xbf16>
    %cst_34 = arith.constant dense<0.000000e+00> : vector<24x24xf32>
    %115 = tpu.matmul %110, %112, %cst_34 {dimension_numbers = #tpu.dot_dimension_numbers<[1], [1], [0], [0], [0, 0, 1, 0], [], []>} : vector<24x8xbf16>, vector<24x8xbf16>, vector<24x24xf32> -> vector<24x24xf32>
    %116 = arith.addf %115, %43 : vector<24x24xf32>
    %cst_35 = arith.constant dense<0xFF800000> : vector<24xf32>
    %117 = vector.multi_reduction <maximumf>, %116, %cst_35 [1] : vector<24x24xf32> to vector<24xf32>
    %118 = vector.shape_cast %117 : vector<24xf32> to vector<24x1xf32>
    %119 = vector.broadcast %118 : vector<24x1xf32> to vector<24x24xf32>
    %120 = arith.subf %116, %119 : vector<24x24xf32>
    %121 = math.exp %120 : vector<24x24xf32>
    %cst_36 = arith.constant dense<0.000000e+00> : vector<24xf32>
    %122 = vector.multi_reduction <add>, %121, %cst_36 [1] : vector<24x24xf32> to vector<24xf32>
    %123 = vector.shape_cast %122 : vector<24xf32> to vector<24x1xf32>
    %124 = tpu.reciprocal %123 {approx = true} : vector<24x1xf32> -> vector<24x1xf32>
    %125 = vector.broadcast %124 : vector<24x1xf32> to vector<24x24xf32>
    %126 = arith.mulf %121, %125 : vector<24x24xf32>
    %127 = arith.truncf %126 : vector<24x24xf32> to vector<24x24xbf16>
    %cst_37 = arith.constant dense<0.000000e+00> : vector<24x8xf32>
    %128 = tpu.matmul %127, %114, %cst_37 {dimension_numbers = #tpu.dot_dimension_numbers<[1], [0], [0], [1], [0, 0, 1, 1], [], []>} : vector<24x24xbf16>, vector<24x8xbf16>, vector<24x8xf32> -> vector<24x8xf32>
    %129 = tpu.concatenate %68, %88, %108, %128 in 1 : vector<24x8xf32>, vector<24x8xf32>, vector<24x8xf32>, vector<24x8xf32> -> vector<24x32xf32>
    %130 = vector.extract_strided_slice %37 {offsets = [24, 0], sizes = [24, 32], strides = [1, 1]} : vector<48x96xf32> to vector<24x32xf32>
    %cst_38 = arith.constant 0.353553385 : f32
    %131 = vector.broadcast %cst_38 : f32 to vector<24x32xf32>
    %132 = arith.mulf %130, %131 : vector<24x32xf32>
    %133 = vector.extract_strided_slice %37 {offsets = [24, 32], sizes = [24, 32], strides = [1, 1]} : vector<48x96xf32> to vector<24x32xf32>
    %134 = vector.extract_strided_slice %37 {offsets = [24, 64], sizes = [24, 32], strides = [1, 1]} : vector<48x96xf32> to vector<24x32xf32>
    %135 = vector.extract_strided_slice %132 {offsets = [0, 0], sizes = [24, 8], strides = [1, 1]} : vector<24x32xf32> to vector<24x8xf32>
    %136 = arith.truncf %135 : vector<24x8xf32> to vector<24x8xbf16>
    %137 = vector.extract_strided_slice %133 {offsets = [0, 0], sizes = [24, 8], strides = [1, 1]} : vector<24x32xf32> to vector<24x8xf32>
    %138 = arith.truncf %137 : vector<24x8xf32> to vector<24x8xbf16>
    %139 = vector.extract_strided_slice %134 {offsets = [0, 0], sizes = [24, 8], strides = [1, 1]} : vector<24x32xf32> to vector<24x8xf32>
    %140 = arith.truncf %139 : vector<24x8xf32> to vector<24x8xbf16>
    %cst_39 = arith.constant dense<0.000000e+00> : vector<24x24xf32>
    %141 = tpu.matmul %136, %138, %cst_39 {dimension_numbers = #tpu.dot_dimension_numbers<[1], [1], [0], [0], [0, 0, 1, 0], [], []>} : vector<24x8xbf16>, vector<24x8xbf16>, vector<24x24xf32> -> vector<24x24xf32>
    %142 = arith.addf %141, %43 : vector<24x24xf32>
    %cst_40 = arith.constant dense<0xFF800000> : vector<24xf32>
    %143 = vector.multi_reduction <maximumf>, %142, %cst_40 [1] : vector<24x24xf32> to vector<24xf32>
    %144 = vector.shape_cast %143 : vector<24xf32> to vector<24x1xf32>
    %145 = vector.broadcast %144 : vector<24x1xf32> to vector<24x24xf32>
    %146 = arith.subf %142, %145 : vector<24x24xf32>
    %147 = math.exp %146 : vector<24x24xf32>
    %cst_41 = arith.constant dense<0.000000e+00> : vector<24xf32>
    %148 = vector.multi_reduction <add>, %147, %cst_41 [1] : vector<24x24xf32> to vector<24xf32>
    %149 = vector.shape_cast %148 : vector<24xf32> to vector<24x1xf32>
    %150 = tpu.reciprocal %149 {approx = true} : vector<24x1xf32> -> vector<24x1xf32>
    %151 = vector.broadcast %150 : vector<24x1xf32> to vector<24x24xf32>
    %152 = arith.mulf %147, %151 : vector<24x24xf32>
    %153 = arith.truncf %152 : vector<24x24xf32> to vector<24x24xbf16>
    %cst_42 = arith.constant dense<0.000000e+00> : vector<24x8xf32>
    %154 = tpu.matmul %153, %140, %cst_42 {dimension_numbers = #tpu.dot_dimension_numbers<[1], [0], [0], [1], [0, 0, 1, 1], [], []>} : vector<24x24xbf16>, vector<24x8xbf16>, vector<24x8xf32> -> vector<24x8xf32>
    %155 = vector.extract_strided_slice %132 {offsets = [0, 8], sizes = [24, 8], strides = [1, 1]} : vector<24x32xf32> to vector<24x8xf32>
    %156 = arith.truncf %155 : vector<24x8xf32> to vector<24x8xbf16>
    %157 = vector.extract_strided_slice %133 {offsets = [0, 8], sizes = [24, 8], strides = [1, 1]} : vector<24x32xf32> to vector<24x8xf32>
    %158 = arith.truncf %157 : vector<24x8xf32> to vector<24x8xbf16>
    %159 = vector.extract_strided_slice %134 {offsets = [0, 8], sizes = [24, 8], strides = [1, 1]} : vector<24x32xf32> to vector<24x8xf32>
    %160 = arith.truncf %159 : vector<24x8xf32> to vector<24x8xbf16>
    %cst_43 = arith.constant dense<0.000000e+00> : vector<24x24xf32>
    %161 = tpu.matmul %156, %158, %cst_43 {dimension_numbers = #tpu.dot_dimension_numbers<[1], [1], [0], [0], [0, 0, 1, 0], [], []>} : vector<24x8xbf16>, vector<24x8xbf16>, vector<24x24xf32> -> vector<24x24xf32>
    %162 = arith.addf %161, %43 : vector<24x24xf32>
    %cst_44 = arith.constant dense<0xFF800000> : vector<24xf32>
    %163 = vector.multi_reduction <maximumf>, %162, %cst_44 [1] : vector<24x24xf32> to vector<24xf32>
    %164 = vector.shape_cast %163 : vector<24xf32> to vector<24x1xf32>
    %165 = vector.broadcast %164 : vector<24x1xf32> to vector<24x24xf32>
    %166 = arith.subf %162, %165 : vector<24x24xf32>
    %167 = math.exp %166 : vector<24x24xf32>
    %cst_45 = arith.constant dense<0.000000e+00> : vector<24xf32>
    %168 = vector.multi_reduction <add>, %167, %cst_45 [1] : vector<24x24xf32> to vector<24xf32>
    %169 = vector.shape_cast %168 : vector<24xf32> to vector<24x1xf32>
    %170 = tpu.reciprocal %169 {approx = true} : vector<24x1xf32> -> vector<24x1xf32>
    %171 = vector.broadcast %170 : vector<24x1xf32> to vector<24x24xf32>
    %172 = arith.mulf %167, %171 : vector<24x24xf32>
    %173 = arith.truncf %172 : vector<24x24xf32> to vector<24x24xbf16>
    %cst_46 = arith.constant dense<0.000000e+00> : vector<24x8xf32>
    %174 = tpu.matmul %173, %160, %cst_46 {dimension_numbers = #tpu.dot_dimension_numbers<[1], [0], [0], [1], [0, 0, 1, 1], [], []>} : vector<24x24xbf16>, vector<24x8xbf16>, vector<24x8xf32> -> vector<24x8xf32>
    %175 = vector.extract_strided_slice %132 {offsets = [0, 16], sizes = [24, 8], strides = [1, 1]} : vector<24x32xf32> to vector<24x8xf32>
    %176 = arith.truncf %175 : vector<24x8xf32> to vector<24x8xbf16>
    %177 = vector.extract_strided_slice %133 {offsets = [0, 16], sizes = [24, 8], strides = [1, 1]} : vector<24x32xf32> to vector<24x8xf32>
    %178 = arith.truncf %177 : vector<24x8xf32> to vector<24x8xbf16>
    %179 = vector.extract_strided_slice %134 {offsets = [0, 16], sizes = [24, 8], strides = [1, 1]} : vector<24x32xf32> to vector<24x8xf32>
    %180 = arith.truncf %179 : vector<24x8xf32> to vector<24x8xbf16>
    %cst_47 = arith.constant dense<0.000000e+00> : vector<24x24xf32>
    %181 = tpu.matmul %176, %178, %cst_47 {dimension_numbers = #tpu.dot_dimension_numbers<[1], [1], [0], [0], [0, 0, 1, 0], [], []>} : vector<24x8xbf16>, vector<24x8xbf16>, vector<24x24xf32> -> vector<24x24xf32>
    %182 = arith.addf %181, %43 : vector<24x24xf32>
    %cst_48 = arith.constant dense<0xFF800000> : vector<24xf32>
    %183 = vector.multi_reduction <maximumf>, %182, %cst_48 [1] : vector<24x24xf32> to vector<24xf32>
    %184 = vector.shape_cast %183 : vector<24xf32> to vector<24x1xf32>
    %185 = vector.broadcast %184 : vector<24x1xf32> to vector<24x24xf32>
    %186 = arith.subf %182, %185 : vector<24x24xf32>
    %187 = math.exp %186 : vector<24x24xf32>
    %cst_49 = arith.constant dense<0.000000e+00> : vector<24xf32>
    %188 = vector.multi_reduction <add>, %187, %cst_49 [1] : vector<24x24xf32> to vector<24xf32>
    %189 = vector.shape_cast %188 : vector<24xf32> to vector<24x1xf32>
    %190 = tpu.reciprocal %189 {approx = true} : vector<24x1xf32> -> vector<24x1xf32>
    %191 = vector.broadcast %190 : vector<24x1xf32> to vector<24x24xf32>
    %192 = arith.mulf %187, %191 : vector<24x24xf32>
    %193 = arith.truncf %192 : vector<24x24xf32> to vector<24x24xbf16>
    %cst_50 = arith.constant dense<0.000000e+00> : vector<24x8xf32>
    %194 = tpu.matmul %193, %180, %cst_50 {dimension_numbers = #tpu.dot_dimension_numbers<[1], [0], [0], [1], [0, 0, 1, 1], [], []>} : vector<24x24xbf16>, vector<24x8xbf16>, vector<24x8xf32> -> vector<24x8xf32>
    %195 = vector.extract_strided_slice %132 {offsets = [0, 24], sizes = [24, 8], strides = [1, 1]} : vector<24x32xf32> to vector<24x8xf32>
    %196 = arith.truncf %195 : vector<24x8xf32> to vector<24x8xbf16>
    %197 = vector.extract_strided_slice %133 {offsets = [0, 24], sizes = [24, 8], strides = [1, 1]} : vector<24x32xf32> to vector<24x8xf32>
    %198 = arith.truncf %197 : vector<24x8xf32> to vector<24x8xbf16>
    %199 = vector.extract_strided_slice %134 {offsets = [0, 24], sizes = [24, 8], strides = [1, 1]} : vector<24x32xf32> to vector<24x8xf32>
    %200 = arith.truncf %199 : vector<24x8xf32> to vector<24x8xbf16>
    %cst_51 = arith.constant dense<0.000000e+00> : vector<24x24xf32>
    %201 = tpu.matmul %196, %198, %cst_51 {dimension_numbers = #tpu.dot_dimension_numbers<[1], [1], [0], [0], [0, 0, 1, 0], [], []>} : vector<24x8xbf16>, vector<24x8xbf16>, vector<24x24xf32> -> vector<24x24xf32>
    %202 = arith.addf %201, %43 : vector<24x24xf32>
    %cst_52 = arith.constant dense<0xFF800000> : vector<24xf32>
    %203 = vector.multi_reduction <maximumf>, %202, %cst_52 [1] : vector<24x24xf32> to vector<24xf32>
    %204 = vector.shape_cast %203 : vector<24xf32> to vector<24x1xf32>
    %205 = vector.broadcast %204 : vector<24x1xf32> to vector<24x24xf32>
    %206 = arith.subf %202, %205 : vector<24x24xf32>
    %207 = math.exp %206 : vector<24x24xf32>
    %cst_53 = arith.constant dense<0.000000e+00> : vector<24xf32>
    %208 = vector.multi_reduction <add>, %207, %cst_53 [1] : vector<24x24xf32> to vector<24xf32>
    %209 = vector.shape_cast %208 : vector<24xf32> to vector<24x1xf32>
    %210 = tpu.reciprocal %209 {approx = true} : vector<24x1xf32> -> vector<24x1xf32>
    %211 = vector.broadcast %210 : vector<24x1xf32> to vector<24x24xf32>
    %212 = arith.mulf %207, %211 : vector<24x24xf32>
    %213 = arith.truncf %212 : vector<24x24xf32> to vector<24x24xbf16>
    %cst_54 = arith.constant dense<0.000000e+00> : vector<24x8xf32>
    %214 = tpu.matmul %213, %200, %cst_54 {dimension_numbers = #tpu.dot_dimension_numbers<[1], [0], [0], [1], [0, 0, 1, 1], [], []>} : vector<24x24xbf16>, vector<24x8xbf16>, vector<24x8xf32> -> vector<24x8xf32>
    %215 = tpu.concatenate %154, %174, %194, %214 in 1 : vector<24x8xf32>, vector<24x8xf32>, vector<24x8xf32>, vector<24x8xf32> -> vector<24x32xf32>
    %216 = tpu.concatenate %129, %215 in 0 : vector<24x32xf32>, vector<24x32xf32> -> vector<48x32xf32>
    %217 = arith.truncf %216 : vector<48x32xf32> to vector<48x32xbf16>
    %c0_55 = arith.constant 0 : index
    %c0_56 = arith.constant 0 : index
    %c0_57 = arith.constant 0 : index
    %218 = vector.load %arg11[%c0_55, %c0_56, %c0_57] : memref<1x32x32xbf16, #tpu.memory_space<vmem>>, vector<1x32x32xbf16>
    %219 = vector.shape_cast %218 : vector<1x32x32xbf16> to vector<32x32xbf16>
    %cst_58 = arith.constant dense<0.000000e+00> : vector<48x32xf32>
    %220 = tpu.matmul %217, %219, %cst_58 {dimension_numbers = #tpu.dot_dimension_numbers<[1], [0], [0], [1], [0, 0, 1, 1], [], []>} : vector<48x32xbf16>, vector<32x32xbf16>, vector<48x32xf32> -> vector<48x32xf32>
    %c0_59 = arith.constant 0 : index
    %c0_60 = arith.constant 0 : index
    %c0_61 = arith.constant 0 : index
    %221 = vector.load %arg12[%c0_59, %c0_60, %c0_61] : memref<1x1x32xf32, #tpu.memory_space<vmem>>, vector<1x1x32xf32>
    %222 = vector.shape_cast %221 : vector<1x1x32xf32> to vector<1x32xf32>
    %223 = vector.broadcast %222 : vector<1x32xf32> to vector<48x32xf32>
    %224 = arith.addf %220, %223 : vector<48x32xf32>
    %225 = arith.addf %3, %224 : vector<48x32xf32>
    %c0_62 = arith.constant 0 : index
    %c0_63 = arith.constant 0 : index
    %c0_64 = arith.constant 0 : index
    %226 = vector.load %arg7[%c0_62, %c0_63, %c0_64] : memref<1x1x32xf32, #tpu.memory_space<vmem>>, vector<1x1x32xf32>
    %227 = vector.shape_cast %226 : vector<1x1x32xf32> to vector<1x32xf32>
    %c0_65 = arith.constant 0 : index
    %c0_66 = arith.constant 0 : index
    %c0_67 = arith.constant 0 : index
    %228 = vector.load %arg8[%c0_65, %c0_66, %c0_67] : memref<1x1x32xf32, #tpu.memory_space<vmem>>, vector<1x1x32xf32>
    %229 = vector.shape_cast %228 : vector<1x1x32xf32> to vector<1x32xf32>
    %cst_68 = arith.constant dense<0.000000e+00> : vector<48xf32>
    %230 = vector.multi_reduction <add>, %225, %cst_68 [1] : vector<48x32xf32> to vector<48xf32>
    %231 = vector.shape_cast %230 : vector<48xf32> to vector<48x1xf32>
    %cst_69 = arith.constant 3.200000e+01 : f32
    %232 = vector.broadcast %cst_69 : f32 to vector<48x1xf32>
    %233 = arith.divf %231, %232 : vector<48x1xf32>
    %234 = vector.broadcast %233 : vector<48x1xf32> to vector<48x32xf32>
    %235 = arith.subf %225, %234 : vector<48x32xf32>
    %236 = arith.mulf %235, %235 : vector<48x32xf32>
    %cst_70 = arith.constant dense<0.000000e+00> : vector<48xf32>
    %237 = vector.multi_reduction <add>, %236, %cst_70 [1] : vector<48x32xf32> to vector<48xf32>
    %238 = vector.shape_cast %237 : vector<48xf32> to vector<48x1xf32>
    %cst_71 = arith.constant 3.200000e+01 : f32
    %239 = vector.broadcast %cst_71 : f32 to vector<48x1xf32>
    %240 = arith.divf %238, %239 : vector<48x1xf32>
    %241 = vector.broadcast %233 : vector<48x1xf32> to vector<48x32xf32>
    %242 = arith.subf %225, %241 : vector<48x32xf32>
    %cst_72 = arith.constant 9.99999974E-6 : f32
    %243 = vector.broadcast %cst_72 : f32 to vector<48x1xf32>
    %244 = arith.addf %240, %243 : vector<48x1xf32>
    %245 = math.rsqrt %244 : vector<48x1xf32>
    %246 = vector.broadcast %245 : vector<48x1xf32> to vector<48x32xf32>
    %247 = arith.mulf %242, %246 : vector<48x32xf32>
    %248 = vector.broadcast %227 : vector<1x32xf32> to vector<48x32xf32>
    %249 = arith.mulf %247, %248 : vector<48x32xf32>
    %250 = vector.broadcast %229 : vector<1x32xf32> to vector<48x32xf32>
    %251 = arith.addf %249, %250 : vector<48x32xf32>
    %252 = arith.truncf %251 : vector<48x32xf32> to vector<48x32xbf16>
    %c0_73 = arith.constant 0 : index
    %c0_74 = arith.constant 0 : index
    %c0_75 = arith.constant 0 : index
    %253 = vector.load %arg13[%c0_73, %c0_74, %c0_75] : memref<1x32x64xbf16, #tpu.memory_space<vmem>>, vector<1x32x64xbf16>
    %254 = vector.shape_cast %253 : vector<1x32x64xbf16> to vector<32x64xbf16>
    %cst_76 = arith.constant dense<0.000000e+00> : vector<48x64xf32>
    %255 = tpu.matmul %252, %254, %cst_76 {dimension_numbers = #tpu.dot_dimension_numbers<[1], [0], [0], [1], [0, 0, 1, 1], [], []>} : vector<48x32xbf16>, vector<32x64xbf16>, vector<48x64xf32> -> vector<48x64xf32>
    %c0_77 = arith.constant 0 : index
    %c0_78 = arith.constant 0 : index
    %c0_79 = arith.constant 0 : index
    %256 = vector.load %arg14[%c0_77, %c0_78, %c0_79] : memref<1x1x64xf32, #tpu.memory_space<vmem>>, vector<1x1x64xf32>
    %257 = vector.shape_cast %256 : vector<1x1x64xf32> to vector<1x64xf32>
    %258 = vector.broadcast %257 : vector<1x64xf32> to vector<48x64xf32>
    %259 = arith.addf %255, %258 : vector<48x64xf32>
    %cst_80 = arith.constant 0.000000e+00 : f32
    %260 = vector.broadcast %cst_80 : f32 to vector<48x64xf32>
    %261 = arith.maximumf %259, %260 : vector<48x64xf32>
    %262 = arith.truncf %261 : vector<48x64xf32> to vector<48x64xbf16>
    %c0_81 = arith.constant 0 : index
    %c0_82 = arith.constant 0 : index
    %c0_83 = arith.constant 0 : index
    %263 = vector.load %arg15[%c0_81, %c0_82, %c0_83] : memref<1x64x32xbf16, #tpu.memory_space<vmem>>, vector<1x64x32xbf16>
    %264 = vector.shape_cast %263 : vector<1x64x32xbf16> to vector<64x32xbf16>
    %cst_84 = arith.constant dense<0.000000e+00> : vector<48x32xf32>
    %265 = tpu.matmul %262, %264, %cst_84 {dimension_numbers = #tpu.dot_dimension_numbers<[1], [0], [0], [1], [0, 0, 1, 1], [], []>} : vector<48x64xbf16>, vector<64x32xbf16>, vector<48x32xf32> -> vector<48x32xf32>
    %c0_85 = arith.constant 0 : index
    %c0_86 = arith.constant 0 : index
    %c0_87 = arith.constant 0 : index
    %266 = vector.load %arg16[%c0_85, %c0_86, %c0_87] : memref<1x1x32xf32, #tpu.memory_space<vmem>>, vector<1x1x32xf32>
    %267 = vector.shape_cast %266 : vector<1x1x32xf32> to vector<1x32xf32>
    %268 = vector.broadcast %267 : vector<1x32xf32> to vector<48x32xf32>
    %269 = arith.addf %265, %268 : vector<48x32xf32>
    %270 = arith.addf %225, %269 : vector<48x32xf32>
    %c0_88 = arith.constant 0 : index
    %c0_89 = arith.constant 0 : index
    %271 = vector.load %arg23[%c0_88, %c0_89] : memref<48x32xf32, #tpu.memory_space<vmem>>, vector<48x32xf32>
    tpu.vector_store %arg23[%c0_88, %c0_89], %270 {strides = array<i32>} : memref<48x32xf32, #tpu.memory_space<vmem>>, vector<48x32xf32>,
    %c1_i32 = arith.constant 1 : i32
    %272 = arith.cmpi eq, %arg0, %c1_i32 : i32
    %273 = arith.extui %272 : i1 to i32
    %c0_i32_90 = arith.constant 0 : i32
    %274 = arith.cmpi ne, %273, %c0_i32_90 : i32
    scf.if %274 {
      %275 = vector.shape_cast %270 : vector<48x32xf32> to vector<2x24x32xf32>
      %c0_91 = arith.constant 0 : index
      %c0_92 = arith.constant 0 : index
      %c0_93 = arith.constant 0 : index
      %276 = vector.load %arg21[%c0_91, %c0_92, %c0_93] : memref<2x24x32xf32, #tpu.memory_space<vmem>>, vector<2x24x32xf32>
      tpu.vector_store %arg21[%c0_91, %c0_92, %c0_93], %275 {strides = array<i32>} : memref<2x24x32xf32, #tpu.memory_space<vmem>>, vector<2x24x32xf32>,
      %277 = vector.extract_strided_slice %270 {offsets = [0, 0], sizes = [1, 32], strides = [1, 1]} : vector<48x32xf32> to vector<1x32xf32>
      %278 = vector.extract_strided_slice %270 {offsets = [24, 0], sizes = [1, 32], strides = [1, 1]} : vector<48x32xf32> to vector<1x32xf32>
      %279 = tpu.concatenate %277, %278 in 0 : vector<1x32xf32>, vector<1x32xf32> -> vector<2x32xf32>
      %280 = arith.truncf %279 : vector<2x32xf32> to vector<2x32xbf16>
      %c0_94 = arith.constant 0 : index
      %c0_95 = arith.constant 0 : index
      %281 = vector.load %arg17[%c0_94, %c0_95] : memref<32x16xbf16, #tpu.memory_space<vmem>>, vector<32x16xbf16>
      %cst_96 = arith.constant dense<0.000000e+00> : vector<2x16xf32>
      %282 = tpu.matmul %280, %281, %cst_96 {dimension_numbers = #tpu.dot_dimension_numbers<[1], [0], [0], [1], [0, 0, 1, 1], [], []>} : vector<2x32xbf16>, vector<32x16xbf16>, vector<2x16xf32> -> vector<2x16xf32>
      %c0_97 = arith.constant 0 : index
      %c0_98 = arith.constant 0 : index
      %283 = vector.load %arg18[%c0_97, %c0_98] : memref<1x16xf32, #tpu.memory_space<vmem>>, vector<1x16xf32>
      %284 = vector.broadcast %283 : vector<1x16xf32> to vector<2x16xf32>
      %285 = arith.addf %282, %284 : vector<2x16xf32>
      %cst_99 = arith.constant 5.000000e-01 : f32
      %286 = vector.broadcast %cst_99 : f32 to vector<2x16xf32>
      %287 = arith.mulf %286, %285 : vector<2x16xf32>
      %cst_100 = arith.constant 0.707106769 : f32
      %288 = vector.broadcast %cst_100 : f32 to vector<2x16xf32>
      %289 = arith.mulf %285, %288 : vector<2x16xf32>
      %290 = math.erf %289 : vector<2x16xf32>
      %cst_101 = arith.constant 1.000000e+00 : f32
      %291 = vector.broadcast %cst_101 : f32 to vector<2x16xf32>
      %292 = arith.addf %291, %290 : vector<2x16xf32>
      %293 = arith.mulf %287, %292 : vector<2x16xf32>
      %294 = arith.truncf %293 : vector<2x16xf32> to vector<2x16xbf16>
      %c0_102 = arith.constant 0 : index
      %c0_103 = arith.constant 0 : index
      %295 = vector.load %arg19[%c0_102, %c0_103] : memref<16x10xbf16, #tpu.memory_space<vmem>>, vector<16x10xbf16>
      %cst_104 = arith.constant dense<0.000000e+00> : vector<2x10xf32>
      %296 = tpu.matmul %294, %295, %cst_104 {dimension_numbers = #tpu.dot_dimension_numbers<[1], [0], [0], [1], [0, 0, 1, 1], [], []>} : vector<2x16xbf16>, vector<16x10xbf16>, vector<2x10xf32> -> vector<2x10xf32>
      %c0_105 = arith.constant 0 : index
      %c0_106 = arith.constant 0 : index
      %297 = vector.load %arg20[%c0_105, %c0_106] : memref<1x10xf32, #tpu.memory_space<vmem>>, vector<1x10xf32>
      %298 = vector.broadcast %297 : vector<1x10xf32> to vector<2x10xf32>
      %299 = arith.addf %296, %298 : vector<2x10xf32>
      %c0_107 = arith.constant 0 : index
      %c0_108 = arith.constant 0 : index
      %300 = vector.load %arg22[%c0_107, %c0_108] : memref<2x10xf32, #tpu.memory_space<vmem>>, vector<2x10xf32>
      tpu.vector_store %arg22[%c0_107, %c0_108], %299 {strides = array<i32>} : memref<2x10xf32, #tpu.memory_space<vmem>>, vector<2x10xf32>,
    } else {
    }
    return
  }
  func.func @transform_0(%arg0: i32) -> (i32, i32) {
    %c0_i32 = arith.constant 0 : i32
    %c0_i32_0 = arith.constant 0 : i32
    %c0_i32_1 = arith.constant 0 : i32
    return %c0_i32, %c0_i32_0 : i32, i32
  }
  func.func @transform_1(%arg0: i32) -> (i32, i32) {
    %c0_i32 = arith.constant 0 : i32
    %c0_i32_0 = arith.constant 0 : i32
    %c0_i32_1 = arith.constant 0 : i32
    return %c0_i32, %c0_i32_0 : i32, i32
  }
  func.func @transform_2(%arg0: i32) -> (i32, i32) {
    %c0_i32 = arith.constant 0 : i32
    %c0_i32_0 = arith.constant 0 : i32
    %c0_i32_1 = arith.constant 0 : i32
    return %c0_i32, %c0_i32_0 : i32, i32
  }
  func.func @transform_3(%arg0: i32) -> (i32, i32) {
    %c0_i32 = arith.constant 0 : i32
    %c0_i32_0 = arith.constant 0 : i32
    %c0_i32_1 = arith.constant 0 : i32
    return %c0_i32, %c0_i32_0 : i32, i32
  }
  func.func @transform_4(%arg0: i32) -> (i32, i32, i32) {
    %c0_i32 = arith.constant 0 : i32
    %c0_i32_0 = arith.constant 0 : i32
    %c0_i32_1 = arith.constant 0 : i32
    return %arg0, %c0_i32, %c0_i32_0 : i32, i32, i32
  }
  func.func @transform_5(%arg0: i32) -> (i32, i32, i32) {
    %c0_i32 = arith.constant 0 : i32
    %c0_i32_0 = arith.constant 0 : i32
    %c0_i32_1 = arith.constant 0 : i32
    return %arg0, %c0_i32, %c0_i32_0 : i32, i32, i32
  }
  func.func @transform_6(%arg0: i32) -> (i32, i32, i32) {
    %c0_i32 = arith.constant 0 : i32
    %c0_i32_0 = arith.constant 0 : i32
    %c0_i32_1 = arith.constant 0 : i32
    return %arg0, %c0_i32, %c0_i32_0 : i32, i32, i32
  }
  func.func @transform_7(%arg0: i32) -> (i32, i32, i32) {
    %c0_i32 = arith.constant 0 : i32
    %c0_i32_0 = arith.constant 0 : i32
    %c0_i32_1 = arith.constant 0 : i32
    return %arg0, %c0_i32, %c0_i32_0 : i32, i32, i32
  }
  func.func @transform_8(%arg0: i32) -> (i32, i32, i32) {
    %c0_i32 = arith.constant 0 : i32
    %c0_i32_0 = arith.constant 0 : i32
    %c0_i32_1 = arith.constant 0 : i32
    return %arg0, %c0_i32, %c0_i32_0 : i32, i32, i32
  }
  func.func @transform_9(%arg0: i32) -> (i32, i32, i32) {
    %c0_i32 = arith.constant 0 : i32
    %c0_i32_0 = arith.constant 0 : i32
    %c0_i32_1 = arith.constant 0 : i32
    return %arg0, %c0_i32, %c0_i32_0 : i32, i32, i32
  }
  func.func @transform_10(%arg0: i32) -> (i32, i32, i32) {
    %c0_i32 = arith.constant 0 : i32
    %c0_i32_0 = arith.constant 0 : i32
    %c0_i32_1 = arith.constant 0 : i32
    return %arg0, %c0_i32, %c0_i32_0 : i32, i32, i32
  }
  func.func @transform_11(%arg0: i32) -> (i32, i32, i32) {
    %c0_i32 = arith.constant 0 : i32
    %c0_i32_0 = arith.constant 0 : i32
    %c0_i32_1 = arith.constant 0 : i32
    return %arg0, %c0_i32, %c0_i32_0 : i32, i32, i32
  }
  func.func @transform_12(%arg0: i32) -> (i32, i32, i32) {
    %c0_i32 = arith.constant 0 : i32
    %c0_i32_0 = arith.constant 0 : i32
    %c0_i32_1 = arith.constant 0 : i32
    return %arg0, %c0_i32, %c0_i32_0 : i32, i32, i32
  }
  func.func @transform_13(%arg0: i32) -> (i32, i32, i32) {
    %c0_i32 = arith.constant 0 : i32
    %c0_i32_0 = arith.constant 0 : i32
    %c0_i32_1 = arith.constant 0 : i32
    return %arg0, %c0_i32, %c0_i32_0 : i32, i32, i32
  }
  func.func @transform_14(%arg0: i32) -> (i32, i32, i32) {
    %c0_i32 = arith.constant 0 : i32
    %c0_i32_0 = arith.constant 0 : i32
    %c0_i32_1 = arith.constant 0 : i32
    return %arg0, %c0_i32, %c0_i32_0 : i32, i32, i32
  }
  func.func @transform_15(%arg0: i32) -> (i32, i32, i32) {
    %c0_i32 = arith.constant 0 : i32
    %c0_i32_0 = arith.constant 0 : i32
    %c0_i32_1 = arith.constant 0 : i32
    return %arg0, %c0_i32, %c0_i32_0 : i32, i32, i32
  }
  func.func @transform_16(%arg0: i32) -> (i32, i32) {
    %c0_i32 = arith.constant 0 : i32
    %c0_i32_0 = arith.constant 0 : i32
    %c0_i32_1 = arith.constant 0 : i32
    return %c0_i32, %c0_i32_0 : i32, i32
  }
  func.func @transform_17(%arg0: i32) -> (i32, i32) {
    %c0_i32 = arith.constant 0 : i32
    %c0_i32_0 = arith.constant 0 : i32
    %c0_i32_1 = arith.constant 0 : i32
    return %c0_i32, %c0_i32_0 : i32, i32
  }
  func.func @transform_18(%arg0: i32) -> (i32, i32) {
    %c0_i32 = arith.constant 0 : i32
    %c0_i32_0 = arith.constant 0 : i32
    %c0_i32_1 = arith.constant 0 : i32
    return %c0_i32, %c0_i32_0 : i32, i32
  }
  func.func @transform_19(%arg0: i32) -> (i32, i32) {
    %c0_i32 = arith.constant 0 : i32
    %c0_i32_0 = arith.constant 0 : i32
    %c0_i32_1 = arith.constant 0 : i32
    return %c0_i32, %c0_i32_0 : i32, i32
  }
  func.func @transform_20(%arg0: i32) -> (i32, i32, i32) {
    %c0_i32 = arith.constant 0 : i32
    %c0_i32_0 = arith.constant 0 : i32
    %c0_i32_1 = arith.constant 0 : i32
    %c0_i32_2 = arith.constant 0 : i32
    return %c0_i32, %c0_i32_0, %c0_i32_1 : i32, i32, i32
  }
  func.func @transform_21(%arg0: i32) -> (i32, i32) {
    %c0_i32 = arith.constant 0 : i32
    %c0_i32_0 = arith.constant 0 : i32
    %c0_i32_1 = arith.constant 0 : i32
    return %c0_i32, %c0_i32_0 : i32, i32
  }
}

</mosaic_0001>

<llo_original>
// kernel: vit_forward.1
$region0: #{vit_forward.1}
  #allocation0 [shape = 'u32[]', space=smem, size = 0x4, offset = 0x4, fixed_abs, tag = 'smem constant byte address 0x4 - core index']
  #allocation1 [shape = 'u32[144,128]{1,0:T(1,128)}', space=vmem, size = 0x12000, scoped, tag = 'internal scratch']
  #allocation2 [shape = 'f32[48,32]{1,0:T(8,128)}', space=vmem, size = 0x6000, scoped, tag = 'scratch operand']
  %s0 = inlined_call_operand.vmem [shape: f32[32,64], index: 0, kind: input, shape index: {}]
  %s1 = inlined_call_operand.vmem [shape: bf16[64,32], index: 1, kind: input, shape index: {}]
  %s2 = inlined_call_operand.vmem [shape: f32[1,32], index: 2, kind: input, shape index: {}]
  %s3 = inlined_call_operand.vmem [shape: f32[17,32], index: 3, kind: input, shape index: {}]
  %s4 = inlined_call_operand.vmem [shape: f32[2,1,32], index: 4, kind: input, shape index: {}]
  %s5 = inlined_call_operand.vmem [shape: f32[2,1,32], index: 5, kind: input, shape index: {}]
  %s6 = inlined_call_operand.vmem [shape: f32[2,1,32], index: 6, kind: input, shape index: {}]
  %s7 = inlined_call_operand.vmem [shape: f32[2,1,32], index: 7, kind: input, shape index: {}]
  %s8 = inlined_call_operand.vmem [shape: bf16[2,32,96], index: 8, kind: input, shape index: {}]
  %s9 = inlined_call_operand.vmem [shape: f32[2,1,96], index: 9, kind: input, shape index: {}]
  %s10 = inlined_call_operand.vmem [shape: bf16[2,32,32], index: 10, kind: input, shape index: {}]
  %s11 = inlined_call_operand.vmem [shape: f32[2,1,32], index: 11, kind: input, shape index: {}]
  %s12 = inlined_call_operand.vmem [shape: bf16[2,32,64], index: 12, kind: input, shape index: {}]
  %s13 = inlined_call_operand.vmem [shape: f32[2,1,64], index: 13, kind: input, shape index: {}]
  %s14 = inlined_call_operand.vmem [shape: bf16[2,64,32], index: 14, kind: input, shape index: {}]
  %s15 = inlined_call_operand.vmem [shape: f32[2,1,32], index: 15, kind: input, shape index: {}]
  %s16 = inlined_call_operand.vmem [shape: bf16[32,16], index: 16, kind: input, shape index: {}]
  %s17 = inlined_call_operand.vmem [shape: f32[1,16], index: 17, kind: input, shape index: {}]
  %s18 = inlined_call_operand.vmem [shape: bf16[16,10], index: 18, kind: input, shape index: {}]
  %s19 = inlined_call_operand.vmem [shape: f32[1,10], index: 19, kind: input, shape index: {}]
  %s20 = inlined_call_operand.vmem [shape: f32[2,24,32], index: 20, kind: output, shape index: {0}]
  %s21 = inlined_call_operand.hbm [shape: f32[2,10], index: 21, kind: output, shape index: {1}]
  %22 = xla_tuple %s20, %s21
  %s23 = sld [smem:[#allocation0]]
  $region129: #{vit_forward.1} parent=0
    _
  %s25 = ssub.s32 1, %s23
  %s26 = scalar_select 0, %s25, %s23
  $region1: #{vit_forward.1} parent=0
    #allocation3 [shape = 'u8[1024]{0}', space=vmem, size = 0x400, scoped, tag = 'output window, operand 1, single buffered']
    #allocation4 [shape = 's32[2]{0}', space=sflag, size = 0x8, scoped, tag = 'scoped memory for vit_forward.1']
    %27 = vsyncpa [#allocation4], 0
    loop: start=0, step=1, limit=4
    $region2: #{vit_forward.1} parent=1 // loop_pre_header
      _
    $region3: #{vit_forward.1} parent=1 // loop_header
      %s29 = sphi 0, %s33
      %p30 = scmp.ge.s32.totalorder %s29, 4
      %s37 = sphi 0, %s37
      %s39 = sphi 0, %s37
      %s40 = sphi 0, %s39
      %s54 = sphi 0, %s40
      %s58 = sphi 0, %s58
      %s60 = sphi 0, %s58
      %s61 = sphi 0, %s60
      %s75 = sphi 0, %s61
      %s79 = sphi 0, %s79
      %s81 = sphi 0, %s79
      %s82 = sphi 0, %s81
      %s96 = sphi 0, %s82
      %s100 = sphi 0, %s100
      %s102 = sphi 0, %s100
      %s103 = sphi 0, %s102
      %s117 = sphi 0, %s103
      %s123 = sphi 0, %s125
      %s126 = sphi 0, %s123
      %s127 = sphi 0, %s126
      %s143 = sphi 0, %s127
      %s149 = sphi 0, %s151
      %s152 = sphi 0, %s149
      %s153 = sphi 0, %s152
      %s169 = sphi 0, %s153
      %s175 = sphi 0, %s177
      %s178 = sphi 0, %s175
      %s179 = sphi 0, %s178
      %s195 = sphi 0, %s179
      %s201 = sphi 0, %s203
      %s204 = sphi 0, %s201
      %s205 = sphi 0, %s204
      %s221 = sphi 0, %s205
      %s227 = sphi 0, %s229
      %s230 = sphi 0, %s227
      %s231 = sphi 0, %s230
      %s247 = sphi 0, %s231
      %s253 = sphi 0, %s255
      %s256 = sphi 0, %s253
      %s257 = sphi 0, %s256
      %s273 = sphi 0, %s257
      %s279 = sphi 0, %s281
      %s282 = sphi 0, %s279
      %s283 = sphi 0, %s282
      %s299 = sphi 0, %s283
      %s305 = sphi 0, %s307
      %s308 = sphi 0, %s305
      %s309 = sphi 0, %s308
      %s325 = sphi 0, %s309
      %s331 = sphi 0, %s333
      %s334 = sphi 0, %s331
      %s335 = sphi 0, %s334
      %s351 = sphi 0, %s335
      %s357 = sphi 0, %s359
      %s360 = sphi 0, %s357
      %s361 = sphi 0, %s360
      %s377 = sphi 0, %s361
      %s383 = sphi 0, %s385
      %s386 = sphi 0, %s383
      %s387 = sphi 0, %s386
      %s403 = sphi 0, %s387
      %s409 = sphi 0, %s411
      %s412 = sphi 0, %s409
      %s413 = sphi 0, %s412
      %s429 = sphi 0, %s413
      %s433 = sphi 0, %s433
      %s435 = sphi 0, %s433
      %s436 = sphi 0, %s435
      %s450 = sphi 0, %s436
      %s454 = sphi 0, %s454
      %s456 = sphi 0, %s454
      %s457 = sphi 0, %s456
      %s471 = sphi 0, %s457
      %s475 = sphi 0, %s475
      %s477 = sphi 0, %s475
      %s478 = sphi 0, %s477
      %s492 = sphi 0, %s478
      %s496 = sphi 0, %s496
      %s498 = sphi 0, %s496
      %s499 = sphi 0, %s498
      %s513 = sphi 0, %s499
      %s517 = sphi 0, %s517
      %s519 = sphi 0, %s517
      %s520 = sphi 0, %s519
      %s534 = sphi 0, %s520
      %s538 = sphi 0, %s538
      %s540 = sphi 0, %s538
      %s541 = sphi 0, %s540
      %s555 = sphi 0, %s541
    $region4: #{vit_forward.1} parent=1 // loop_header_branch
      %32 = sbr.rel (%p30) target = $region8
    $region5: #{vit_forward.1} parent=1 // loop_body
      %s34 = ssub.s32 %s29, 1
      %s35 = ssub.s32 %s29, 2
      %s36 = sadd.s32 %s29, 1
      %s38 = sadd.s32 %s37, 1
      %p41 = scmp.eq.s32.totalorder %s29, 1
      %p42 = scmp.ne.s32.totalorder %s37, %s39
      %p43 = scmp.eq.s32.totalorder %s29, 0
      %p44 = por %p42, %p43
      %p45 = scmp.ne.s32.totalorder %s37, %s39
      %p46 = scmp.eq.s32.totalorder %s34, 1
      %p47 = por %p45, %p46
      %p48 = scmp.ne.s32.totalorder %s39, %s40
      %p49 = scmp.eq.s32.totalorder %s34, 0
      %p50 = por %p48, %p49
      %p51 = scmp.ne.s32.totalorder %s39, %s40
      %p52 = scmp.eq.s32.totalorder %s35, 1
      %p53 = por %p51, %p52
      %p55 = scmp.ne.s32.totalorder %s40, %s54
      %p56 = scmp.eq.s32.totalorder %s35, 0
      %p57 = por %p55, %p56
      %s59 = sadd.s32 %s58, 1
      %p62 = scmp.eq.s32.totalorder %s29, 1
      %p63 = scmp.ne.s32.totalorder %s58, %s60
      %p64 = scmp.eq.s32.totalorder %s29, 0
      %p65 = por %p63, %p64
      %p66 = scmp.ne.s32.totalorder %s58, %s60
      %p67 = scmp.eq.s32.totalorder %s34, 1
      %p68 = por %p66, %p67
      %p69 = scmp.ne.s32.totalorder %s60, %s61
      %p70 = scmp.eq.s32.totalorder %s34, 0
      %p71 = por %p69, %p70
      %p72 = scmp.ne.s32.totalorder %s60, %s61
      %p73 = scmp.eq.s32.totalorder %s35, 1
      %p74 = por %p72, %p73
      %p76 = scmp.ne.s32.totalorder %s61, %s75
      %p77 = scmp.eq.s32.totalorder %s35, 0
      %p78 = por %p76, %p77
      %s80 = sadd.s32 %s79, 1
      %p83 = scmp.eq.s32.totalorder %s29, 1
      %p84 = scmp.ne.s32.totalorder %s79, %s81
      %p85 = scmp.eq.s32.totalorder %s29, 0
      %p86 = por %p84, %p85
      %p87 = scmp.ne.s32.totalorder %s79, %s81
      %p88 = scmp.eq.s32.totalorder %s34, 1
      %p89 = por %p87, %p88
      %p90 = scmp.ne.s32.totalorder %s81, %s82
      %p91 = scmp.eq.s32.totalorder %s34, 0
      %p92 = por %p90, %p91
      %p93 = scmp.ne.s32.totalorder %s81, %s82
      %p94 = scmp.eq.s32.totalorder %s35, 1
      %p95 = por %p93, %p94
      %p97 = scmp.ne.s32.totalorder %s82, %s96
      %p98 = scmp.eq.s32.totalorder %s35, 0
      %p99 = por %p97, %p98
      %s101 = sadd.s32 %s100, 1
      %p104 = scmp.eq.s32.totalorder %s29, 1
      %p105 = scmp.ne.s32.totalorder %s100, %s102
      %p106 = scmp.eq.s32.totalorder %s29, 0
      %p107 = por %p105, %p106
      %p108 = scmp.ne.s32.totalorder %s100, %s102
      %p109 = scmp.eq.s32.totalorder %s34, 1
      %p110 = por %p108, %p109
      %p111 = scmp.ne.s32.totalorder %s102, %s103
      %p112 = scmp.eq.s32.totalorder %s34, 0
      %p113 = por %p111, %p112
      %p114 = scmp.ne.s32.totalorder %s102, %s103
      %p115 = scmp.eq.s32.totalorder %s35, 1
      %p116 = por %p114, %p115
      %p118 = scmp.ne.s32.totalorder %s103, %s117
      %p119 = scmp.eq.s32.totalorder %s35, 0
      %p120 = por %p118, %p119
      %s121 = ssub.s32 %s29, %s36
      %p122 = scmp.eq.s32.totalorder %s121, 0
      %s124 = sadd.s32 %s123, 1
      %s125 = scalar_select %p122, %s123, %s124
      %p128 = pneg %p122
      %p129 = scmp.eq.s32.totalorder %s29, 1
      %p130 = por %p128, %p129
      %p131 = scmp.ne.s32.totalorder %s123, %s126
      %p132 = scmp.eq.s32.totalorder %s29, 0
      %p133 = por %p131, %p132
      %p134 = scmp.ne.s32.totalorder %s123, %s126
      %p135 = scmp.eq.s32.totalorder %s34, 1
      %p136 = por %p134, %p135
      %p137 = scmp.ne.s32.totalorder %s126, %s127
      %p138 = scmp.eq.s32.totalorder %s34, 0
      %p139 = por %p137, %p138
      %p140 = scmp.ne.s32.totalorder %s126, %s127
      %p141 = scmp.eq.s32.totalorder %s35, 1
      %p142 = por %p140, %p141
      %p144 = scmp.ne.s32.totalorder %s127, %s143
      %p145 = scmp.eq.s32.totalorder %s35, 0
      %p146 = por %p144, %p145
      %s147 = ssub.s32 %s29, %s36
      %p148 = scmp.eq.s32.totalorder %s147, 0
      %s150 = sadd.s32 %s149, 1
      %s151 = scalar_select %p148, %s149, %s150
      %p154 = pneg %p148
      %p155 = scmp.eq.s32.totalorder %s29, 1
      %p156 = por %p154, %p155
      %p157 = scmp.ne.s32.totalorder %s149, %s152
      %p158 = scmp.eq.s32.totalorder %s29, 0
      %p159 = por %p157, %p158
      %p160 = scmp.ne.s32.totalorder %s149, %s152
      %p161 = scmp.eq.s32.totalorder %s34, 1
      %p162 = por %p160, %p161
      %p163 = scmp.ne.s32.totalorder %s152, %s153
      %p164 = scmp.eq.s32.totalorder %s34, 0
      %p165 = por %p163, %p164
      %p166 = scmp.ne.s32.totalorder %s152, %s153
      %p167 = scmp.eq.s32.totalorder %s35, 1
      %p168 = por %p166, %p167
      %p170 = scmp.ne.s32.totalorder %s153, %s169
      %p171 = scmp.eq.s32.totalorder %s35, 0
      %p172 = por %p170, %p171
      %s173 = ssub.s32 %s29, %s36
      %p174 = scmp.eq.s32.totalorder %s173, 0
      %s176 = sadd.s32 %s175, 1
      %s177 = scalar_select %p174, %s175, %s176
      %p180 = pneg %p174
      %p181 = scmp.eq.s32.totalorder %s29, 1
      %p182 = por %p180, %p181
      %p183 = scmp.ne.s32.totalorder %s175, %s178
      %p184 = scmp.eq.s32.totalorder %s29, 0
      %p185 = por %p183, %p184
      %p186 = scmp.ne.s32.totalorder %s175, %s178
      %p187 = scmp.eq.s32.totalorder %s34, 1
      %p188 = por %p186, %p187
      %p189 = scmp.ne.s32.totalorder %s178, %s179
      %p190 = scmp.eq.s32.totalorder %s34, 0
      %p191 = por %p189, %p190
      %p192 = scmp.ne.s32.totalorder %s178, %s179
      %p193 = scmp.eq.s32.totalorder %s35, 1
      %p194 = por %p192, %p193
      %p196 = scmp.ne.s32.totalorder %s179, %s195
      %p197 = scmp.eq.s32.totalorder %s35, 0
      %p198 = por %p196, %p197
      %s199 = ssub.s32 %s29, %s36
      %p200 = scmp.eq.s32.totalorder %s199, 0
      %s202 = sadd.s32 %s201, 1
      %s203 = scalar_select %p200, %s201, %s202
      %p206 = pneg %p200
      %p207 = scmp.eq.s32.totalorder %s29, 1
      %p208 = por %p206, %p207
      %p209 = scmp.ne.s32.totalorder %s201, %s204
      %p210 = scmp.eq.s32.totalorder %s29, 0
      %p211 = por %p209, %p210
      %p212 = scmp.ne.s32.totalorder %s201, %s204
      %p213 = scmp.eq.s32.totalorder %s34, 1
      %p214 = por %p212, %p213
      %p215 = scmp.ne.s32.totalorder %s204, %s205
      %p216 = scmp.eq.s32.totalorder %s34, 0
      %p217 = por %p215, %p216
      %p218 = scmp.ne.s32.totalorder %s204, %s205
      %p219 = scmp.eq.s32.totalorder %s35, 1
      %p220 = por %p218, %p219
      %p222 = scmp.ne.s32.totalorder %s205, %s221
      %p223 = scmp.eq.s32.totalorder %s35, 0
      %p224 = por %p222, %p223
      %s225 = ssub.s32 %s29, %s36
      %p226 = scmp.eq.s32.totalorder %s225, 0
      %s228 = sadd.s32 %s227, 1
      %s229 = scalar_select %p226, %s227, %s228
      %p232 = pneg %p226
      %p233 = scmp.eq.s32.totalorder %s29, 1
      %p234 = por %p232, %p233
      %p235 = scmp.ne.s32.totalorder %s227, %s230
      %p236 = scmp.eq.s32.totalorder %s29, 0
      %p237 = por %p235, %p236
      %p238 = scmp.ne.s32.totalorder %s227, %s230
      %p239 = scmp.eq.s32.totalorder %s34, 1
      %p240 = por %p238, %p239
      %p241 = scmp.ne.s32.totalorder %s230, %s231
      %p242 = scmp.eq.s32.totalorder %s34, 0
      %p243 = por %p241, %p242
      %p244 = scmp.ne.s32.totalorder %s230, %s231
      %p245 = scmp.eq.s32.totalorder %s35, 1
      %p246 = por %p244, %p245
      %p248 = scmp.ne.s32.totalorder %s231, %s247
      %p249 = scmp.eq.s32.totalorder %s35, 0
      %p250 = por %p248, %p249
      %s251 = ssub.s32 %s29, %s36
      %p252 = scmp.eq.s32.totalorder %s251, 0
      %s254 = sadd.s32 %s253, 1
      %s255 = scalar_select %p252, %s253, %s254
      %p258 = pneg %p252
      %p259 = scmp.eq.s32.totalorder %s29, 1
      %p260 = por %p258, %p259
      %p261 = scmp.ne.s32.totalorder %s253, %s256
      %p262 = scmp.eq.s32.totalorder %s29, 0
      %p263 = por %p261, %p262
      %p264 = scmp.ne.s32.totalorder %s253, %s256
      %p265 = scmp.eq.s32.totalorder %s34, 1
      %p266 = por %p264, %p265
      %p267 = scmp.ne.s32.totalorder %s256, %s257
      %p268 = scmp.eq.s32.totalorder %s34, 0
      %p269 = por %p267, %p268
      %p270 = scmp.ne.s32.totalorder %s256, %s257
      %p271 = scmp.eq.s32.totalorder %s35, 1
      %p272 = por %p270, %p271
      %p274 = scmp.ne.s32.totalorder %s257, %s273
      %p275 = scmp.eq.s32.totalorder %s35, 0
      %p276 = por %p274, %p275
      %s277 = ssub.s32 %s29, %s36
      %p278 = scmp.eq.s32.totalorder %s277, 0
      %s280 = sadd.s32 %s279, 1
      %s281 = scalar_select %p278, %s279, %s280
      %p284 = pneg %p278
      %p285 = scmp.eq.s32.totalorder %s29, 1
      %p286 = por %p284, %p285
      %p287 = scmp.ne.s32.totalorder %s279, %s282
      %p288 = scmp.eq.s32.totalorder %s29, 0
      %p289 = por %p287, %p288
      %p290 = scmp.ne.s32.totalorder %s279, %s282
      %p291 = scmp.eq.s32.totalorder %s34, 1
      %p292 = por %p290, %p291
      %p293 = scmp.ne.s32.totalorder %s282, %s283
      %p294 = scmp.eq.s32.totalorder %s34, 0
      %p295 = por %p293, %p294
      %p296 = scmp.ne.s32.totalorder %s282, %s283
      %p297 = scmp.eq.s32.totalorder %s35, 1
      %p298 = por %p296, %p297
      %p300 = scmp.ne.s32.totalorder %s283, %s299
      %p301 = scmp.eq.s32.totalorder %s35, 0
      %p302 = por %p300, %p301
      %s303 = ssub.s32 %s29, %s36
      %p304 = scmp.eq.s32.totalorder %s303, 0
      %s306 = sadd.s32 %s305, 1
      %s307 = scalar_select %p304, %s305, %s306
      %p310 = pneg %p304
      %p311 = scmp.eq.s32.totalorder %s29, 1
      %p312 = por %p310, %p311
      %p313 = scmp.ne.s32.totalorder %s305, %s308
      %p314 = scmp.eq.s32.totalorder %s29, 0
      %p315 = por %p313, %p314
      %p316 = scmp.ne.s32.totalorder %s305, %s308
      %p317 = scmp.eq.s32.totalorder %s34, 1
      %p318 = por %p316, %p317
      %p319 = scmp.ne.s32.totalorder %s308, %s309
      %p320 = scmp.eq.s32.totalorder %s34, 0
      %p321 = por %p319, %p320
      %p322 = scmp.ne.s32.totalorder %s308, %s309
      %p323 = scmp.eq.s32.totalorder %s35, 1
      %p324 = por %p322, %p323
      %p326 = scmp.ne.s32.totalorder %s309, %s325
      %p327 = scmp.eq.s32.totalorder %s35, 0
      %p328 = por %p326, %p327
      %s329 = ssub.s32 %s29, %s36
      %p330 = scmp.eq.s32.totalorder %s329, 0
      %s332 = sadd.s32 %s331, 1
      %s333 = scalar_select %p330, %s331, %s332
      %p336 = pneg %p330
      %p337 = scmp.eq.s32.totalorder %s29, 1
      %p338 = por %p336, %p337
      %p339 = scmp.ne.s32.totalorder %s331, %s334
      %p340 = scmp.eq.s32.totalorder %s29, 0
      %p341 = por %p339, %p340
      %p342 = scmp.ne.s32.totalorder %s331, %s334
      %p343 = scmp.eq.s32.totalorder %s34, 1
      %p344 = por %p342, %p343
      %p345 = scmp.ne.s32.totalorder %s334, %s335
      %p346 = scmp.eq.s32.totalorder %s34, 0
      %p347 = por %p345, %p346
      %p348 = scmp.ne.s32.totalorder %s334, %s335
      %p349 = scmp.eq.s32.totalorder %s35, 1
      %p350 = por %p348, %p349
      %p352 = scmp.ne.s32.totalorder %s335, %s351
      %p353 = scmp.eq.s32.totalorder %s35, 0
      %p354 = por %p352, %p353
      %s355 = ssub.s32 %s29, %s36
      %p356 = scmp.eq.s32.totalorder %s355, 0
      %s358 = sadd.s32 %s357, 1
      %s359 = scalar_select %p356, %s357, %s358
      %p362 = pneg %p356
      %p363 = scmp.eq.s32.totalorder %s29, 1
      %p364 = por %p362, %p363
      %p365 = scmp.ne.s32.totalorder %s357, %s360
      %p366 = scmp.eq.s32.totalorder %s29, 0
      %p367 = por %p365, %p366
      %p368 = scmp.ne.s32.totalorder %s357, %s360
      %p369 = scmp.eq.s32.totalorder %s34, 1
      %p370 = por %p368, %p369
      %p371 = scmp.ne.s32.totalorder %s360, %s361
      %p372 = scmp.eq.s32.totalorder %s34, 0
      %p373 = por %p371, %p372
      %p374 = scmp.ne.s32.totalorder %s360, %s361
      %p375 = scmp.eq.s32.totalorder %s35, 1
      %p376 = por %p374, %p375
      %p378 = scmp.ne.s32.totalorder %s361, %s377
      %p379 = scmp.eq.s32.totalorder %s35, 0
      %p380 = por %p378, %p379
      %s381 = ssub.s32 %s29, %s36
      %p382 = scmp.eq.s32.totalorder %s381, 0
      %s384 = sadd.s32 %s383, 1
      %s385 = scalar_select %p382, %s383, %s384
      %p388 = pneg %p382
      %p389 = scmp.eq.s32.totalorder %s29, 1
      %p390 = por %p388, %p389
      %p391 = scmp.ne.s32.totalorder %s383, %s386
      %p392 = scmp.eq.s32.totalorder %s29, 0
      %p393 = por %p391, %p392
      %p394 = scmp.ne.s32.totalorder %s383, %s386
      %p395 = scmp.eq.s32.totalorder %s34, 1
      %p396 = por %p394, %p395
      %p397 = scmp.ne.s32.totalorder %s386, %s387
      %p398 = scmp.eq.s32.totalorder %s34, 0
      %p399 = por %p397, %p398
      %p400 = scmp.ne.s32.totalorder %s386, %s387
      %p401 = scmp.eq.s32.totalorder %s35, 1
      %p402 = por %p400, %p401
      %p404 = scmp.ne.s32.totalorder %s387, %s403
      %p405 = scmp.eq.s32.totalorder %s35, 0
      %p406 = por %p404, %p405
      %s407 = ssub.s32 %s29, %s36
      %p408 = scmp.eq.s32.totalorder %s407, 0
      %s410 = sadd.s32 %s409, 1
      %s411 = scalar_select %p408, %s409, %s410
      %p414 = pneg %p408
      %p415 = scmp.eq.s32.totalorder %s29, 1
      %p416 = por %p414, %p415
      %p417 = scmp.ne.s32.totalorder %s409, %s412
      %p418 = scmp.eq.s32.totalorder %s29, 0
      %p419 = por %p417, %p418
      %p420 = scmp.ne.s32.totalorder %s409, %s412
      %p421 = scmp.eq.s32.totalorder %s34, 1
      %p422 = por %p420, %p421
      %p423 = scmp.ne.s32.totalorder %s412, %s413
      %p424 = scmp.eq.s32.totalorder %s34, 0
      %p425 = por %p423, %p424
      %p426 = scmp.ne.s32.totalorder %s412, %s413
      %p427 = scmp.eq.s32.totalorder %s35, 1
      %p428 = por %p426, %p427
      %p430 = scmp.ne.s32.totalorder %s413, %s429
      %p431 = scmp.eq.s32.totalorder %s35, 0
      %p432 = por %p430, %p431
      %s434 = sadd.s32 %s433, 1
      %p437 = scmp.eq.s32.totalorder %s29, 1
      %p438 = scmp.ne.s32.totalorder %s433, %s435
      %p439 = scmp.eq.s32.totalorder %s29, 0
      %p440 = por %p438, %p439
      %p441 = scmp.ne.s32.totalorder %s433, %s435
      %p442 = scmp.eq.s32.totalorder %s34, 1
      %p443 = por %p441, %p442
      %p444 = scmp.ne.s32.totalorder %s435, %s436
      %p445 = scmp.eq.s32.totalorder %s34, 0
      %p446 = por %p444, %p445
      %p447 = scmp.ne.s32.totalorder %s435, %s436
      %p448 = scmp.eq.s32.totalorder %s35, 1
      %p449 = por %p447, %p448
      %p451 = scmp.ne.s32.totalorder %s436, %s450
      %p452 = scmp.eq.s32.totalorder %s35, 0
      %p453 = por %p451, %p452
      %s455 = sadd.s32 %s454, 1
      %p458 = scmp.eq.s32.totalorder %s29, 1
      %p459 = scmp.ne.s32.totalorder %s454, %s456
      %p460 = scmp.eq.s32.totalorder %s29, 0
      %p461 = por %p459, %p460
      %p462 = scmp.ne.s32.totalorder %s454, %s456
      %p463 = scmp.eq.s32.totalorder %s34, 1
      %p464 = por %p462, %p463
      %p465 = scmp.ne.s32.totalorder %s456, %s457
      %p466 = scmp.eq.s32.totalorder %s34, 0
      %p467 = por %p465, %p466
      %p468 = scmp.ne.s32.totalorder %s456, %s457
      %p469 = scmp.eq.s32.totalorder %s35, 1
      %p470 = por %p468, %p469
      %p472 = scmp.ne.s32.totalorder %s457, %s471
      %p473 = scmp.eq.s32.totalorder %s35, 0
      %p474 = por %p472, %p473
      %s476 = sadd.s32 %s475, 1
      %p479 = scmp.eq.s32.totalorder %s29, 1
      %p480 = scmp.ne.s32.totalorder %s475, %s477
      %p481 = scmp.eq.s32.totalorder %s29, 0
      %p482 = por %p480, %p481
      %p483 = scmp.ne.s32.totalorder %s475, %s477
      %p484 = scmp.eq.s32.totalorder %s34, 1
      %p485 = por %p483, %p484
      %p486 = scmp.ne.s32.totalorder %s477, %s478
      %p487 = scmp.eq.s32.totalorder %s34, 0
      %p488 = por %p486, %p487
      %p489 = scmp.ne.s32.totalorder %s477, %s478
      %p490 = scmp.eq.s32.totalorder %s35, 1
      %p491 = por %p489, %p490
      %p493 = scmp.ne.s32.totalorder %s478, %s492
      %p494 = scmp.eq.s32.totalorder %s35, 0
      %p495 = por %p493, %p494
      %s497 = sadd.s32 %s496, 1
      %p500 = scmp.eq.s32.totalorder %s29, 1
      %p501 = scmp.ne.s32.totalorder %s496, %s498
      %p502 = scmp.eq.s32.totalorder %s29, 0
      %p503 = por %p501, %p502
      %p504 = scmp.ne.s32.totalorder %s496, %s498
      %p505 = scmp.eq.s32.totalorder %s34, 1
      %p506 = por %p504, %p505
      %p507 = scmp.ne.s32.totalorder %s498, %s499
      %p508 = scmp.eq.s32.totalorder %s34, 0
      %p509 = por %p507, %p508
      %p510 = scmp.ne.s32.totalorder %s498, %s499
      %p511 = scmp.eq.s32.totalorder %s35, 1
      %p512 = por %p510, %p511
      %p514 = scmp.ne.s32.totalorder %s499, %s513
      %p515 = scmp.eq.s32.totalorder %s35, 0
      %p516 = por %p514, %p515
      %s518 = sadd.s32 %s517, 1
      %p521 = scmp.eq.s32.totalorder %s29, 1
      %p522 = scmp.ne.s32.totalorder %s517, %s519
      %p523 = scmp.eq.s32.totalorder %s29, 0
      %p524 = por %p522, %p523
      %p525 = scmp.ne.s32.totalorder %s517, %s519
      %p526 = scmp.eq.s32.totalorder %s34, 1
      %p527 = por %p525, %p526
      %p528 = scmp.ne.s32.totalorder %s519, %s520
      %p529 = scmp.eq.s32.totalorder %s34, 0
      %p530 = por %p528, %p529
      %p531 = scmp.ne.s32.totalorder %s519, %s520
      %p532 = scmp.eq.s32.totalorder %s35, 1
      %p533 = por %p531, %p532
      %p535 = scmp.ne.s32.totalorder %s520, %s534
      %p536 = scmp.eq.s32.totalorder %s35, 0
      %p537 = por %p535, %p536
      %s539 = sadd.s32 %s538, 1
      %p542 = scmp.eq.s32.totalorder %s29, 1
      %p543 = scmp.ne.s32.totalorder %s538, %s540
      %p544 = scmp.eq.s32.totalorder %s29, 0
      %p545 = por %p543, %p544
      %p546 = scmp.ne.s32.totalorder %s538, %s540
      %p547 = scmp.eq.s32.totalorder %s34, 1
      %p548 = por %p546, %p547
      %p549 = scmp.ne.s32.totalorder %s540, %s541
      %p550 = scmp.eq.s32.totalorder %s34, 0
      %p551 = por %p549, %p550
      %p552 = scmp.ne.s32.totalorder %s540, %s541
      %p553 = scmp.eq.s32.totalorder %s35, 1
      %p554 = por %p552, %p553
      %p556 = scmp.ne.s32.totalorder %s541, %s555
      %p557 = scmp.eq.s32.totalorder %s35, 0
      %p558 = por %p556, %p557
      %p559 = scmp.le.s32.totalorder 1, %s29
      %p560 = scmp.lt.s32.totalorder %s29, 3
      %p561 = pnand %p559, %p560
      %p562 = pneg %p561
      // Predicated region
      $region9: #{vit_forward.1} parent=5 // pred_check
        _
      $region10: #{vit_forward.1} parent=5 // pred_check_branch
        %564 = sbr.rel (%p561) target = $region12
      $region11: #{vit_forward.1} parent=5 // pred_region
        %s565 = ssub.s32 %s29, 1
        // Predicated region
        $region13: #{vit_forward.1} parent=11 // pred_check
          %p566 = pneg %p50
        $region14: #{vit_forward.1} parent=11 // pred_check_branch
          %568 = sbr.rel (%p566) target = $region16
        $region15: #{vit_forward.1} parent=11 // pred_region
          _
        $region16: #{vit_forward.1} parent=11 // pred_fallthru
          _
        // Predicated region
        $region17: #{vit_forward.1} parent=11 // pred_check
          %p569 = pneg %p71
        $region18: #{vit_forward.1} parent=11 // pred_check_branch
          %571 = sbr.rel (%p569) target = $region20
        $region19: #{vit_forward.1} parent=11 // pred_region
          _
        $region20: #{vit_forward.1} parent=11 // pred_fallthru
          _
        // Predicated region
        $region21: #{vit_forward.1} parent=11 // pred_check
          %p572 = pneg %p92
        $region22: #{vit_forward.1} parent=11 // pred_check_branch
          %574 = sbr.rel (%p572) target = $region24
        $region23: #{vit_forward.1} parent=11 // pred_region
          _
        $region24: #{vit_forward.1} parent=11 // pred_fallthru
          _
        // Predicated region
        $region25: #{vit_forward.1} parent=11 // pred_check
          %p575 = pneg %p113
        $region26: #{vit_forward.1} parent=11 // pred_check_branch
          %577 = sbr.rel (%p575) target = $region28
        $region27: #{vit_forward.1} parent=11 // pred_region
          _
        $region28: #{vit_forward.1} parent=11 // pred_fallthru
          _
        // Predicated region
        $region29: #{vit_forward.1} parent=11 // pred_check
          %p578 = pneg %p446
        $region30: #{vit_forward.1} parent=11 // pred_check_branch
          %580 = sbr.rel (%p578) target = $region32
        $region31: #{vit_forward.1} parent=11 // pred_region
          _
        $region32: #{vit_forward.1} parent=11 // pred_fallthru
          _
        // Predicated region
        $region33: #{vit_forward.1} parent=11 // pred_check
          %p581 = pneg %p467
        $region34: #{vit_forward.1} parent=11 // pred_check_branch
          %583 = sbr.rel (%p581) target = $region36
        $region35: #{vit_forward.1} parent=11 // pred_region
          _
        $region36: #{vit_forward.1} parent=11 // pred_fallthru
          _
        // Predicated region
        $region37: #{vit_forward.1} parent=11 // pred_check
          %p584 = pneg %p488
        $region38: #{vit_forward.1} parent=11 // pred_check_branch
          %586 = sbr.rel (%p584) target = $region40
        $region39: #{vit_forward.1} parent=11 // pred_region
          _
        $region40: #{vit_forward.1} parent=11 // pred_fallthru
          _
        // Predicated region
        $region41: #{vit_forward.1} parent=11 // pred_check
          %p587 = pneg %p509
        $region42: #{vit_forward.1} parent=11 // pred_check_branch
          %589 = sbr.rel (%p587) target = $region44
        $region43: #{vit_forward.1} parent=11 // pred_region
          _
        $region44: #{vit_forward.1} parent=11 // pred_fallthru
          _
      $region12: #{vit_forward.1} parent=5 // pred_fallthru
        _
      %p590 = scmp.lt.s32.totalorder %s29, 2
      // Predicated region
      $region45: #{vit_forward.1} parent=5 // pred_check
        %p591 = pneg %p590
      $region46: #{vit_forward.1} parent=5 // pred_check_branch
        %593 = sbr.rel (%p591) target = $region48
      $region47: #{vit_forward.1} parent=5 // pred_region
        // Predicated region
        $region49: #{vit_forward.1} parent=47 // pred_check
          %p594 = pneg %p133
        $region50: #{vit_forward.1} parent=47 // pred_check_branch
          %596 = sbr.rel (%p594) target = $region52
        $region51: #{vit_forward.1} parent=47 // pred_region
          %p597 = scmp.lt.s32.totalorder %s29, 1
          %s598 = scalar_select %p597, %s29, 1
          %s599 = scalar_lea.vmem %s4, %s598
        $region52: #{vit_forward.1} parent=47 // pred_fallthru
          _
        // Predicated region
        $region53: #{vit_forward.1} parent=47 // pred_check
          %p600 = pneg %p159
        $region54: #{vit_forward.1} parent=47 // pred_check_branch
          %602 = sbr.rel (%p600) target = $region56
        $region55: #{vit_forward.1} parent=47 // pred_region
          %p603 = scmp.lt.s32.totalorder %s29, 1
          %s604 = scalar_select %p603, %s29, 1
          %s605 = scalar_lea.vmem %s5, %s604
        $region56: #{vit_forward.1} parent=47 // pred_fallthru
          _
        // Predicated region
        $region57: #{vit_forward.1} parent=47 // pred_check
          %p606 = pneg %p185
        $region58: #{vit_forward.1} parent=47 // pred_check_branch
          %608 = sbr.rel (%p606) target = $region60
        $region59: #{vit_forward.1} parent=47 // pred_region
          %p609 = scmp.lt.s32.totalorder %s29, 1
          %s610 = scalar_select %p609, %s29, 1
          %s611 = scalar_lea.vmem %s6, %s610
        $region60: #{vit_forward.1} parent=47 // pred_fallthru
          _
        // Predicated region
        $region61: #{vit_forward.1} parent=47 // pred_check
          %p612 = pneg %p211
        $region62: #{vit_forward.1} parent=47 // pred_check_branch
          %614 = sbr.rel (%p612) target = $region64
        $region63: #{vit_forward.1} parent=47 // pred_region
          %p615 = scmp.lt.s32.totalorder %s29, 1
          %s616 = scalar_select %p615, %s29, 1
          %s617 = scalar_lea.vmem %s7, %s616
        $region64: #{vit_forward.1} parent=47 // pred_fallthru
          _
        // Predicated region
        $region65: #{vit_forward.1} parent=47 // pred_check
          %p618 = pneg %p237
        $region66: #{vit_forward.1} parent=47 // pred_check_branch
          %620 = sbr.rel (%p618) target = $region68
        $region67: #{vit_forward.1} parent=47 // pred_region
          %p621 = scmp.lt.s32.totalorder %s29, 1
          %s622 = scalar_select %p621, %s29, 1
          %s623 = smul.addr %s622, 4
          %s624 = smul.addr %s623, 4
          %s625 = scalar_lea.vmem %s8, %s624
        $region68: #{vit_forward.1} parent=47 // pred_fallthru
          _
        // Predicated region
        $region69: #{vit_forward.1} parent=47 // pred_check
          %p626 = pneg %p263
        $region70: #{vit_forward.1} parent=47 // pred_check_branch
          %628 = sbr.rel (%p626) target = $region72
        $region71: #{vit_forward.1} parent=47 // pred_region
          %p629 = scmp.lt.s32.totalorder %s29, 1
          %s630 = scalar_select %p629, %s29, 1
          %s631 = scalar_lea.vmem %s9, %s630
        $region72: #{vit_forward.1} parent=47 // pred_fallthru
          _
        // Predicated region
        $region73: #{vit_forward.1} parent=47 // pred_check
          %p632 = pneg %p289
        $region74: #{vit_forward.1} parent=47 // pred_check_branch
          %634 = sbr.rel (%p632) target = $region76
        $region75: #{vit_forward.1} parent=47 // pred_region
          %p635 = scmp.lt.s32.totalorder %s29, 1
          %s636 = scalar_select %p635, %s29, 1
          %s637 = smul.addr %s636, 4
          %s638 = smul.addr %s637, 4
          %s639 = scalar_lea.vmem %s10, %s638
        $region76: #{vit_forward.1} parent=47 // pred_fallthru
          _
        // Predicated region
        $region77: #{vit_forward.1} parent=47 // pred_check
          %p640 = pneg %p315
        $region78: #{vit_forward.1} parent=47 // pred_check_branch
          %642 = sbr.rel (%p640) target = $region80
        $region79: #{vit_forward.1} parent=47 // pred_region
          %p643 = scmp.lt.s32.totalorder %s29, 1
          %s644 = scalar_select %p643, %s29, 1
          %s645 = scalar_lea.vmem %s11, %s644
        $region80: #{vit_forward.1} parent=47 // pred_fallthru
          _
        // Predicated region
        $region81: #{vit_forward.1} parent=47 // pred_check
          %p646 = pneg %p341
        $region82: #{vit_forward.1} parent=47 // pred_check_branch
          %648 = sbr.rel (%p646) target = $region84
        $region83: #{vit_forward.1} parent=47 // pred_region
          %p649 = scmp.lt.s32.totalorder %s29, 1
          %s650 = scalar_select %p649, %s29, 1
          %s651 = smul.addr %s650, 4
          %s652 = smul.addr %s651, 4
          %s653 = scalar_lea.vmem %s12, %s652
        $region84: #{vit_forward.1} parent=47 // pred_fallthru
          _
        // Predicated region
        $region85: #{vit_forward.1} parent=47 // pred_check
          %p654 = pneg %p367
        $region86: #{vit_forward.1} parent=47 // pred_check_branch
          %656 = sbr.rel (%p654) target = $region88
        $region87: #{vit_forward.1} parent=47 // pred_region
          %p657 = scmp.lt.s32.totalorder %s29, 1
          %s658 = scalar_select %p657, %s29, 1
          %s659 = scalar_lea.vmem %s13, %s658
        $region88: #{vit_forward.1} parent=47 // pred_fallthru
          _
        // Predicated region
        $region89: #{vit_forward.1} parent=47 // pred_check
          %p660 = pneg %p393
        $region90: #{vit_forward.1} parent=47 // pred_check_branch
          %662 = sbr.rel (%p660) target = $region92
        $region91: #{vit_forward.1} parent=47 // pred_region
          %p663 = scmp.lt.s32.totalorder %s29, 1
          %s664 = scalar_select %p663, %s29, 1
          %s665 = smul.addr %s664, 8
          %s666 = smul.addr %s665, 4
          %s667 = scalar_lea.vmem %s14, %s666
        $region92: #{vit_forward.1} parent=47 // pred_fallthru
          _
        // Predicated region
        $region93: #{vit_forward.1} parent=47 // pred_check
          %p668 = pneg %p419
        $region94: #{vit_forward.1} parent=47 // pred_check_branch
          %670 = sbr.rel (%p668) target = $region96
        $region95: #{vit_forward.1} parent=47 // pred_region
          %p671 = scmp.lt.s32.totalorder %s29, 1
          %s672 = scalar_select %p671, %s29, 1
          %s673 = scalar_lea.vmem %s15, %s672
        $region96: #{vit_forward.1} parent=47 // pred_fallthru
          _
      $region48: #{vit_forward.1} parent=5 // pred_fallthru
        _
      %p674 = scmp.le.s32.totalorder 1, %s29
      %p675 = scmp.lt.s32.totalorder %s29, 3
      %p676 = pnand %p674, %p675
      %p677 = pneg %p676
      // Predicated region
      $region97: #{vit_forward.1} parent=5 // pred_check
        _
      $region98: #{vit_forward.1} parent=5 // pred_check_branch
        %679 = sbr.rel (%p676) target = $region100
      $region99: #{vit_forward.1} parent=5 // pred_region
        %s680 = ssub.s32 %s29, 1
        %p681 = pneg %p50
        %p682 = pneg %p47
        %p683 = pneg %p71
        %p684 = pneg %p68
        %p685 = pneg %p92
        %p686 = pneg %p89
        %p687 = pneg %p113
        %p688 = pneg %p110
        %p689 = scmp.lt.s32.totalorder %s34, 1
        %s690 = scalar_select %p689, %s34, 1
        %s691 = scalar_lea.vmem %s4, %s690
        %p692 = pneg %p139
        %p693 = pneg %p136
        %p694 = scmp.lt.s32.totalorder %s34, 1
        %s695 = scalar_select %p694, %s34, 1
        %s696 = scalar_lea.vmem %s5, %s695
        %p697 = pneg %p165
        %p698 = pneg %p162
        %p699 = scmp.lt.s32.totalorder %s34, 1
        %s700 = scalar_select %p699, %s34, 1
        %s701 = scalar_lea.vmem %s6, %s700
        %p702 = pneg %p191
        %p703 = pneg %p188
        %p704 = scmp.lt.s32.totalorder %s34, 1
        %s705 = scalar_select %p704, %s34, 1
        %s706 = scalar_lea.vmem %s7, %s705
        %p707 = pneg %p217
        %p708 = pneg %p214
        %p709 = scmp.lt.s32.totalorder %s34, 1
        %s710 = scalar_select %p709, %s34, 1
        %s711 = smul.addr %s710, 4
        %s712 = smul.addr %s711, 4
        %s713 = scalar_lea.vmem %s8, %s712
        %p714 = pneg %p243
        %p715 = pneg %p240
        %p716 = scmp.lt.s32.totalorder %s34, 1
        %s717 = scalar_select %p716, %s34, 1
        %s718 = scalar_lea.vmem %s9, %s717
        %p719 = pneg %p269
        %p720 = pneg %p266
        %p721 = scmp.lt.s32.totalorder %s34, 1
        %s722 = scalar_select %p721, %s34, 1
        %s723 = smul.addr %s722, 4
        %s724 = smul.addr %s723, 4
        %s725 = scalar_lea.vmem %s10, %s724
        %p726 = pneg %p295
        %p727 = pneg %p292
        %p728 = scmp.lt.s32.totalorder %s34, 1
        %s729 = scalar_select %p728, %s34, 1
        %s730 = scalar_lea.vmem %s11, %s729
        %p731 = pneg %p321
        %p732 = pneg %p318
        %p733 = scmp.lt.s32.totalorder %s34, 1
        %s734 = scalar_select %p733, %s34, 1
        %s735 = smul.addr %s734, 4
        %s736 = smul.addr %s735, 4
        %s737 = scalar_lea.vmem %s12, %s736
        %p738 = pneg %p347
        %p739 = pneg %p344
        %p740 = scmp.lt.s32.totalorder %s34, 1
        %s741 = scalar_select %p740, %s34, 1
        %s742 = scalar_lea.vmem %s13, %s741
        %p743 = pneg %p373
        %p744 = pneg %p370
        %p745 = scmp.lt.s32.totalorder %s34, 1
        %s746 = scalar_select %p745, %s34, 1
        %s747 = smul.addr %s746, 8
        %s748 = smul.addr %s747, 4
        %s749 = scalar_lea.vmem %s14, %s748
        %p750 = pneg %p399
        %p751 = pneg %p396
        %p752 = scmp.lt.s32.totalorder %s34, 1
        %s753 = scalar_select %p752, %s34, 1
        %s754 = scalar_lea.vmem %s15, %s753
        %p755 = pneg %p425
        %p756 = pneg %p422
        %p757 = pneg %p446
        %p758 = pneg %p443
        %p759 = pneg %p467
        %p760 = pneg %p464
        %p761 = pneg %p488
        %p762 = pneg %p485
        %p763 = pneg %p509
        %p764 = pneg %p506
        %p765 = pneg %p530
        %p766 = pneg %p527
        %p767 = pneg %p551
        %p768 = pneg %p548
        %p769 = scmp.lt.s32.totalorder %s34, 1
        %s770 = scalar_select %p769, %s34, 1
        %s771 = scalar_lea.vmem %s4, %s770
        %p772 = scmp.lt.s32.totalorder %s34, 1
        %s773 = scalar_select %p772, %s34, 1
        %s774 = scalar_lea.vmem %s5, %s773
        %p775 = scmp.lt.s32.totalorder %s34, 1
        %s776 = scalar_select %p775, %s34, 1
        %s777 = scalar_lea.vmem %s6, %s776
        %p778 = scmp.lt.s32.totalorder %s34, 1
        %s779 = scalar_select %p778, %s34, 1
        %s780 = scalar_lea.vmem %s7, %s779
        %p781 = scmp.lt.s32.totalorder %s34, 1
        %s782 = scalar_select %p781, %s34, 1
        %s783 = smul.addr %s782, 4
        %s784 = smul.addr %s783, 4
        %s785 = scalar_lea.vmem %s8, %s784
        %p786 = scmp.lt.s32.totalorder %s34, 1
        %s787 = scalar_select %p786, %s34, 1
        %s788 = scalar_lea.vmem %s9, %s787
        %p789 = scmp.lt.s32.totalorder %s34, 1
        %s790 = scalar_select %p789, %s34, 1
        %s791 = smul.addr %s790, 4
        %s792 = smul.addr %s791, 4
        %s793 = scalar_lea.vmem %s10, %s792
        %p794 = scmp.lt.s32.totalorder %s34, 1
        %s795 = scalar_select %p794, %s34, 1
        %s796 = scalar_lea.vmem %s11, %s795
        %p797 = scmp.lt.s32.totalorder %s34, 1
        %s798 = scalar_select %p797, %s34, 1
        %s799 = smul.addr %s798, 4
        %s800 = smul.addr %s799, 4
        %s801 = scalar_lea.vmem %s12, %s800
        %p802 = scmp.lt.s32.totalorder %s34, 1
        %s803 = scalar_select %p802, %s34, 1
        %s804 = scalar_lea.vmem %s13, %s803
        %p805 = scmp.lt.s32.totalorder %s34, 1
        %s806 = scalar_select %p805, %s34, 1
        %s807 = smul.addr %s806, 8
        %s808 = smul.addr %s807, 4
        %s809 = scalar_lea.vmem %s14, %s808
        %p810 = scmp.lt.s32.totalorder %s34, 1
        %s811 = scalar_select %p810, %s34, 1
        %s812 = scalar_lea.vmem %s15, %s811
        %p814 = scmp.eq.s32.totalorder %s34, 0
        // Predicated region
        $region101: #{vit_forward.1} parent=99 // pred_check
          %p815 = pneg %p814
        $region102: #{vit_forward.1} parent=99 // pred_check_branch
          %817 = sbr.rel (%p815) target = $region104
        $region103: #{vit_forward.1} parent=99 // pred_region
          %v818 = vld [vmem:[%s0] sm:$0xff]
          %v819 = vld [vmem:[%s0 + $0x8] sm:$0xff]
          %v820 = vld [vmem:[%s0 + $0x10] sm:$0xff]
          %v821 = vld [vmem:[%s0 + $0x18] sm:$0xff]
          %v822 = vpack.c.bf16 %v819, %v818
          %v823 = vpack.c.bf16 %v821, %v820
          %v824 = vld [vmem:[%s1] sm:$0xf]
          %v825 = vld [vmem:[%s1 + $0x4] sm:$0xf]
          %v826 = vld [vmem:[%s1 + $0x8] sm:$0xf]
          %v827 = vld [vmem:[%s1 + $0xc] sm:$0xf]
          %v828 = vld [vmem:[%s1 + $0x10] sm:$0xf]
          %v829 = vld [vmem:[%s1 + $0x14] sm:$0xf]
          %v830 = vld [vmem:[%s1 + $0x18] sm:$0xf]
          %v831 = vld [vmem:[%s1 + $0x1c] sm:$0xf]
          %v832 = vld [vmem:[%s2] sm:$0x1]
          %v834 = vlaneseq
          %v835 = vshrl.u32 %v834, 7
          %v836 = vsub.s32 0, %v835
          %v837 = vrot.slane %v832, %v836
          %v847 = vunpack.c.l.b16 %v824
          %v848 = vunpack.c.l.b16 %v825
          %v849 = vunpack.c.l.b16 %v826
          %v850 = vunpack.c.l.b16 %v827
          %v851 = vunpack.c.l.b16 %v828
          %v852 = vunpack.c.l.b16 %v829
          %v853 = vunpack.c.l.b16 %v830
          %v854 = vunpack.c.l.b16 %v831
          %v855 = vpack.c.b16 %v848, %v847
          %v856 = vpack.c.b16 %v850, %v849
          %v857 = vpack.c.b16 %v852, %v851
          %v858 = vpack.c.b16 %v854, %v853
          %vm863 = vcmask 523264
          %v865 = vsel %vm863, %v822, 0
          %v868 = vsel %vm863, %v823, 0
          %870 = vmatprep.subr.bf16.mxu0 0
          %871 = vmatpush1.bf16.msra.mxu0 0
          %872 = vmatprep.subr.bf16.mxu0 0
          %873 = vmatpush1.bf16.msra.mxu0 0
          %874 = vmatprep.subr.bf16.mxu0 0
          %875 = vmatpush1.bf16.msra.mxu0 0
          %876 = vmatprep.subr.bf16.mxu0 0
          %877 = vmatpush1.bf16.msra.mxu0 0
          %878 = vmatprep.subr.bf16.mxu0 0
          %879 = vmatpush1.bf16.msra.mxu0 %v858
          %880 = vmatprep.subr.bf16.mxu0 0
          %881 = vmatpush1.bf16.msra.mxu0 %v857
          %882 = vmatprep.subr.bf16.mxu0 0
          %883 = vmatpush1.bf16.msra.mxu0 %v856
          %884 = vmatprep.subr.bf16.mxu0 0
          %885 = vmatpush1.bf16.msra.mxu0 %v855
          %886 = vmatprep.subr.bf16.mxu0 0
          %887 = vmatpush2.bf16.msra.mxu0 0
          %888 = vmatprep.subr.bf16.mxu0 0
          %889 = vmatpush2.bf16.msra.mxu0 0
          %890 = vmatprep.subr.bf16.mxu0 0
          %891 = vmatpush2.bf16.msra.mxu0 0
          %892 = vmatprep.subr.bf16.mxu0 0
          %893 = vmatpush2.bf16.msra.mxu0 0
          %894 = vmatprep.subr.bf16.mxu0 0
          %895 = vmatpush2.bf16.msra.mxu0 0
          %896 = vmatprep.subr.bf16.mxu0 0
          %897 = vmatpush2.bf16.msra.mxu0 0
          %898 = vmatprep.subr.bf16.mxu0 0
          %899 = vmatpush2.bf16.msra.mxu0 0
          %900 = vmatprep.subr.bf16.mxu0 0
          %901 = vmatpush2.bf16.msra.mxu0 0
          %902 = vmatprep.mubr.bf16.mxu0 0
          %903 = vmatmul.mubr.bf16.gmra.mxu0 %v865
          %v904 = vpop.f32.mrf.mxu0
          %v905 = vadd.f32 %v837, %v904
          %v906 = vpop.f32.mrf.mxu0
          %v907 = vpop.f32.mrf.mxu0
          %v908 = vadd.f32 %v837, %v907
          %v909 = vpop.f32.mrf.mxu0
          %910 = vmatprep.mubr.bf16.mxu0 0
          %911 = vmatmul.mubr.bf16.gmra.mxu0 %v868
          %v912 = vpop.f32.mrf.mxu0
          %v913 = vadd.f32 %v837, %v912
          %v914 = vpop.f32.mrf.mxu0
          %v915 = vpop.f32.mrf.mxu0
          %v916 = vadd.f32 %v837, %v915
          %v917 = vpop.f32.mrf.mxu0
          %918 = vdwg.mxu0
          %v919 = vld [vmem:[%s3] sm:$0x1]
          %v920 = vld [vmem:[%s3 + $0x1] sm:$0xff]
          %v921 = vld [vmem:[%s3 + $0x9] sm:$0xff]
          %v922 = vadd.f32 %v905, %v920
          %v923 = vadd.f32 %v908, %v921
          %v924 = vadd.f32 %v913, %v920
          %v925 = vadd.f32 %v916, %v921
          %vm928 = vcmask 1040384
          %v929 = vrot.slane %v922, 7
          %v930 = vrot.slane %v923, 7
          %v931 = vsel %vm928, %v929, %v930
          %v937 = vrot.slane %v924, 7
          %v938 = vrot.slane %v925, 7
          %v939 = vsel %vm928, %v937, %v938
          %v943 = vsel %vm928, %v919, %v929
          %v944 = vsel %vm928, %v930, 0.0
          %v945 = vsel %vm928, %v919, %v937
          %v946 = vsel %vm928, %v938, 0.0
          %vm947 = vcmask 261120
          %948 = vst.msk [vmem:[#allocation2] sm:$0xff] %vm947, %v943
          %949 = vst.msk [vmem:[#allocation2 + $0x8] sm:$0xff] %vm947, %v931
          %950 = vst.msk [vmem:[#allocation2 + $0x10] sm:$0xff] %vm947, %v944
          %951 = vst.msk [vmem:[#allocation2 + $0x18] sm:$0xff] %vm947, %v945
          %952 = vst.msk [vmem:[#allocation2 + $0x20] sm:$0xff] %vm947, %v939
          %953 = vst.msk [vmem:[#allocation2 + $0x28] sm:$0xff] %vm947, %v946
        $region104: #{vit_forward.1} parent=99 // pred_fallthru
          _
        %v954 = vld [vmem:[#allocation2] sm:$0xff]
        %v955 = vld [vmem:[#allocation2 + $0x8] sm:$0xff]
        %v956 = vld [vmem:[#allocation2 + $0x10] sm:$0xff]
        %v957 = vld [vmem:[#allocation2 + $0x18] sm:$0xff]
        %v958 = vld [vmem:[#allocation2 + $0x20] sm:$0xff]
        %v959 = vld [vmem:[#allocation2 + $0x28] sm:$0xff]
        %v960 = vld [vmem:[%s771] sm:$0x1]
        %v961 = vld [vmem:[%s774] sm:$0x1]
        %vm962 = vcmask 261120
        %v963 = vsel %vm962, %v954, 0.0
        %964 = vadd.xlane.f32.xlu0 %v963
        %v965 = vpop.xlane.xlu0 %964
        %v966 = vsel %vm962, %v955, 0.0
        %967 = vadd.xlane.f32.xlu0 %v966
        %v968 = vpop.xlane.xlu0 %967
        %v969 = vsel %vm962, %v956, 0.0
        %970 = vadd.xlane.f32.xlu0 %v969
        %v971 = vpop.xlane.xlu0 %970
        %v972 = vsel %vm962, %v957, 0.0
        %973 = vadd.xlane.f32.xlu0 %v972
        %v974 = vpop.xlane.xlu0 %973
        %v975 = vsel %vm962, %v958, 0.0
        %976 = vadd.xlane.f32.xlu0 %v975
        %v977 = vpop.xlane.xlu0 %976
        %v978 = vsel %vm962, %v959, 0.0
        %979 = vadd.xlane.f32.xlu0 %v978
        %v980 = vpop.xlane.xlu0 %979
        %v981 = vrcp.pop 32.0
        %v982 = vmul.f32 %v965, %v981
        %v983 = vmul.f32 %v968, %v981
        %v984 = vmul.f32 %v971, %v981
        %v985 = vmul.f32 %v974, %v981
        %v986 = vmul.f32 %v977, %v981
        %v987 = vmul.f32 %v980, %v981
        %v988 = vsub.f32 %v954, %v982
        %v989 = vsub.f32 %v955, %v983
        %v990 = vsub.f32 %v956, %v984
        %v991 = vsub.f32 %v957, %v985
        %v992 = vsub.f32 %v958, %v986
        %v993 = vsub.f32 %v959, %v987
        %v994 = vmul.f32 %v988, %v988
        %v995 = vmul.f32 %v989, %v989
        %v996 = vmul.f32 %v990, %v990
        %v997 = vmul.f32 %v991, %v991
        %v998 = vmul.f32 %v992, %v992
        %v999 = vmul.f32 %v993, %v993
        %v1000 = vsel %vm962, %v994, 0.0
        %1001 = vadd.xlane.f32.xlu0 %v1000
        %v1002 = vpop.xlane.xlu0 %1001
        %v1003 = vsel %vm962, %v995, 0.0
        %1004 = vadd.xlane.f32.xlu0 %v1003
        %v1005 = vpop.xlane.xlu0 %1004
        %v1006 = vsel %vm962, %v996, 0.0
        %1007 = vadd.xlane.f32.xlu0 %v1006
        %v1008 = vpop.xlane.xlu0 %1007
        %v1009 = vsel %vm962, %v997, 0.0
        %1010 = vadd.xlane.f32.xlu0 %v1009
        %v1011 = vpop.xlane.xlu0 %1010
        %v1012 = vsel %vm962, %v998, 0.0
        %1013 = vadd.xlane.f32.xlu0 %v1012
        %v1014 = vpop.xlane.xlu0 %1013
        %v1015 = vsel %vm962, %v999, 0.0
        %1016 = vadd.xlane.f32.xlu0 %v1015
        %v1017 = vpop.xlane.xlu0 %1016
        %v1018 = vmul.f32 %v1002, %v981
        %v1019 = vmul.f32 %v1005, %v981
        %v1020 = vmul.f32 %v1008, %v981
        %v1021 = vmul.f32 %v1011, %v981
        %v1022 = vmul.f32 %v1014, %v981
        %v1023 = vmul.f32 %v1017, %v981
        %v1024 = vadd.f32 %v1018, 1e-05
        %v1025 = vadd.f32 %v1019, 1e-05
        %v1026 = vadd.f32 %v1020, 1e-05
        %v1027 = vadd.f32 %v1021, 1e-05
        %v1028 = vadd.f32 %v1022, 1e-05
        %v1029 = vadd.f32 %v1023, 1e-05
        %v1030 = vrsqrt.pop %v1024
        %v1031 = vrsqrt.pop %v1025
        %v1032 = vrsqrt.pop %v1026
        %v1033 = vrsqrt.pop %v1027
        %v1034 = vrsqrt.pop %v1028
        %v1035 = vrsqrt.pop %v1029
        %v1036 = vmul.f32 %v988, %v1030
        %v1037 = vmul.f32 %v989, %v1031
        %v1038 = vmul.f32 %v990, %v1032
        %v1039 = vmul.f32 %v991, %v1033
        %v1040 = vmul.f32 %v992, %v1034
        %v1041 = vmul.f32 %v993, %v1035
        %v1043 = vlaneseq
        %v1044 = vshrl.u32 %v1043, 7
        %v1045 = vsub.s32 0, %v1044
        %v1046 = vrot.slane %v960, %v1045
        %v1048 = vmul.f32 %v1036, %v1046
        %v1049 = vmul.f32 %v1037, %v1046
        %v1050 = vmul.f32 %v1038, %v1046
        %v1051 = vmul.f32 %v1039, %v1046
        %v1052 = vmul.f32 %v1040, %v1046
        %v1053 = vmul.f32 %v1041, %v1046
        %v1055 = vlaneseq
        %v1056 = vshrl.u32 %v1055, 7
        %v1057 = vsub.s32 0, %v1056
        %v1058 = vrot.slane %v961, %v1057
        %v1060 = vadd.f32 %v1048, %v1058
        %v1061 = vadd.f32 %v1049, %v1058
        %v1062 = vadd.f32 %v1050, %v1058
        %v1063 = vadd.f32 %v1051, %v1058
        %v1064 = vadd.f32 %v1052, %v1058
        %v1065 = vadd.f32 %v1053, %v1058
        %v1066 = vpack.c.bf16 %v1061, %v1060
        %v1067 = vpack.c.bf16 %v1063, %v1062
        %v1068 = vpack.c.bf16 %v1065, %v1064
        %v1069 = vld [vmem:[%s785] sm:$0xf]
        %v1070 = vld [vmem:[%s785 + $0x4] sm:$0xf]
        %v1071 = vld [vmem:[%s785 + $0x8] sm:$0xf]
        %v1072 = vld [vmem:[%s785 + $0xc] sm:$0xf]
        %v1073 = vld [vmem:[%s788] sm:$0x1]
        %v1075 = vlaneseq
        %v1076 = vshrl.u32 %v1075, 7
        %v1077 = vsub.s32 0, %v1076
        %v1078 = vrot.slane %v1073, %v1077
        %v1084 = vunpack.c.l.b16 %v1069
        %v1085 = vunpack.c.l.b16 %v1070
        %v1086 = vunpack.c.l.b16 %v1071
        %v1087 = vunpack.c.l.b16 %v1072
        %v1088 = vpack.c.b16 %v1085, %v1084
        %v1089 = vpack.c.b16 %v1087, %v1086
        %v1093 = vsel %vm962, %v1066, 0
        %v1096 = vsel %vm962, %v1067, 0
        %v1099 = vsel %vm962, %v1068, 0
        %1101 = vmatprep.subr.bf16.mxu0 0
        %1102 = vmatpush1.bf16.msra.mxu0 0
        %1103 = vmatprep.subr.bf16.mxu0 0
        %1104 = vmatpush1.bf16.msra.mxu0 0
        %1105 = vmatprep.subr.bf16.mxu0 0
        %1106 = vmatpush1.bf16.msra.mxu0 0
        %1107 = vmatprep.subr.bf16.mxu0 0
        %1108 = vmatpush1.bf16.msra.mxu0 0
        %1109 = vmatprep.subr.bf16.mxu0 0
        %1110 = vmatpush1.bf16.msra.mxu0 0
        %1111 = vmatprep.subr.bf16.mxu0 0
        %1112 = vmatpush1.bf16.msra.mxu0 0
        %1113 = vmatprep.subr.bf16.mxu0 0
        %1114 = vmatpush1.bf16.msra.mxu0 %v1089
        %1115 = vmatprep.subr.bf16.mxu0 0
        %1116 = vmatpush1.bf16.msra.mxu0 %v1088
        %1117 = vmatprep.subr.bf16.mxu0 0
        %1118 = vmatpush2.bf16.msra.mxu0 0
        %1119 = vmatprep.subr.bf16.mxu0 0
        %1120 = vmatpush2.bf16.msra.mxu0 0
        %1121 = vmatprep.subr.bf16.mxu0 0
        %1122 = vmatpush2.bf16.msra.mxu0 0
        %1123 = vmatprep.subr.bf16.mxu0 0
        %1124 = vmatpush2.bf16.msra.mxu0 0
        %1125 = vmatprep.subr.bf16.mxu0 0
        %1126 = vmatpush2.bf16.msra.mxu0 0
        %1127 = vmatprep.subr.bf16.mxu0 0
        %1128 = vmatpush2.bf16.msra.mxu0 0
        %1129 = vmatprep.subr.bf16.mxu0 0
        %1130 = vmatpush2.bf16.msra.mxu0 0
        %1131 = vmatprep.subr.bf16.mxu0 0
        %1132 = vmatpush2.bf16.msra.mxu0 0
        %1133 = vmatprep.mubr.bf16.mxu0 0
        %1134 = vmatmul.mubr.bf16.gmra.mxu0 %v1093
        %v1135 = vpop.f32.mrf.mxu0
        %v1136 = vadd.f32 %v1078, %v1135
        %v1137 = vpop.f32.mrf.mxu0
        %v1138 = vpop.f32.mrf.mxu0
        %v1139 = vadd.f32 %v1078, %v1138
        %v1140 = vpop.f32.mrf.mxu0
        %1141 = vmatprep.mubr.bf16.mxu0 0
        %1142 = vmatmul.mubr.bf16.gmra.mxu0 %v1096
        %v1143 = vpop.f32.mrf.mxu0
        %v1144 = vadd.f32 %v1078, %v1143
        %v1145 = vpop.f32.mrf.mxu0
        %v1146 = vpop.f32.mrf.mxu0
        %v1147 = vadd.f32 %v1078, %v1146
        %v1148 = vpop.f32.mrf.mxu0
        %1149 = vmatprep.mubr.bf16.mxu0 0
        %1150 = vmatmul.mubr.bf16.gmra.mxu0 %v1099
        %v1151 = vpop.f32.mrf.mxu0
        %v1152 = vadd.f32 %v1078, %v1151
        %v1153 = vpop.f32.mrf.mxu0
        %v1154 = vpop.f32.mrf.mxu0
        %v1155 = vadd.f32 %v1078, %v1154
        %v1156 = vpop.f32.mrf.mxu0
        %1157 = vdwg.mxu0
        %v1158 = vlaneseq
        %v1159 = vand.u32 %v1158, 127
        %vm1160 = vcmp.lt.s32.totalorder %v1159, 17
        %v1161 = vsel %vm1160, 0.0, -1e+30
        %v1162 = vmul.f32 %v1136, 0.35355338
        %v1163 = vmul.f32 %v1139, 0.35355338
        %v1164 = vmul.f32 %v1144, 0.35355338
        %v1165 = vpack.c.bf16 %v1163, %v1162
        %v1166 = vpack.c.bf16 %v1164, %v1164
        %v1167 = vpack.c.bf16 %v1139, %v1136
        %v1168 = vpack.c.bf16 %v1144, %v1144
        %1171 = vrot.lane.b32.xlu0 %v1167, 96
        %v1172 = vpop.permute.xlu0 %1171
        %1173 = vrot.lane.b32.xlu0 %v1168, 96
        %v1174 = vpop.permute.xlu0 %1173
        %vm1175 = vcmask 64512
        %v1177 = vsel %vm1175, %v1165, 0
        %v1180 = vsel %vm1175, %v1166, 0
        %v1183 = vsel %vm1175, %v1172, 0
        %v1186 = vsel %vm1175, %v1174, 0
        %1188 = vmatprep.subr.bf16.mxu0 0
        %1189 = vmatpush1.bf16.xpose.msra.mxu0 0
        %1190 = vmatprep.subr.bf16.mxu0 0
        %1191 = vmatpush1.bf16.xpose.msra.mxu0 0
        %1192 = vmatprep.subr.bf16.mxu0 0
        %1193 = vmatpush1.bf16.xpose.msra.mxu0 0
        %1194 = vmatprep.subr.bf16.mxu0 0
        %1195 = vmatpush1.bf16.xpose.msra.mxu0 0
        %1196 = vmatprep.subr.bf16.mxu0 0
        %1197 = vmatpush1.bf16.xpose.msra.mxu0 0
        %1198 = vmatprep.subr.bf16.mxu0 0
        %1199 = vmatpush1.bf16.xpose.msra.mxu0 0
        %1200 = vmatprep.subr.bf16.mxu0 0
        %1201 = vmatpush1.bf16.xpose.msra.mxu0 %v1186
        %1202 = vmatprep.subr.bf16.mxu0 0
        %1203 = vmatpush1.bf16.xpose.msra.mxu0 %v1183
        %1204 = vmatprep.subr.bf16.mxu0 0
        %1205 = vmatpush2.bf16.xpose.msra.mxu0 0
        %1206 = vmatprep.subr.bf16.mxu0 0
        %1207 = vmatpush2.bf16.xpose.msra.mxu0 0
        %1208 = vmatprep.subr.bf16.mxu0 0
        %1209 = vmatpush2.bf16.xpose.msra.mxu0 0
        %1210 = vmatprep.subr.bf16.mxu0 0
        %1211 = vmatpush2.bf16.xpose.msra.mxu0 0
        %1212 = vmatprep.subr.bf16.mxu0 0
        %1213 = vmatpush2.bf16.xpose.msra.mxu0 0
        %1214 = vmatprep.subr.bf16.mxu0 0
        %1215 = vmatpush2.bf16.xpose.msra.mxu0 0
        %1216 = vmatprep.subr.bf16.mxu0 0
        %1217 = vmatpush2.bf16.xpose.msra.mxu0 0
        %1218 = vmatprep.subr.bf16.mxu0 0
        %1219 = vmatpush2.bf16.xpose.msra.mxu0 0
        %1220 = vmatprep.mubr.bf16.mxu0 0
        %1221 = vmatmul.mubr.bf16.gmra.mxu0 %v1177
        %v1222 = vpop.f32.mrf.mxu0
        %v1223 = vadd.f32 %v1161, %v1222
        %v1224 = vpop.f32.mrf.mxu0
        %v1225 = vpop.f32.mrf.mxu0
        %v1226 = vadd.f32 %v1161, %v1225
        %v1227 = vpop.f32.mrf.mxu0
        %1228 = vmatprep.mubr.bf16.mxu0 0
        %1229 = vmatmul.mubr.bf16.gmra.mxu0 %v1180
        %v1230 = vpop.f32.mrf.mxu0
        %v1231 = vadd.f32 %v1161, %v1230
        %v1232 = vpop.f32.mrf.mxu0
        %v1233 = vpop.f32.mrf.mxu0
        %v1234 = vpop.f32.mrf.mxu0
        %1235 = vdwg.mxu0
        %vm1236 = vcmask 195584
        %v1237 = vsel %vm1236, %v1223, -inf
        %1238 = vmax.xlane.f32.xlu0 %v1237
        %v1239 = vpop.xlane.xlu0 %1238
        %v1240 = vsel %vm1236, %v1226, -inf
        %1241 = vmax.xlane.f32.xlu0 %v1240
        %v1242 = vpop.xlane.xlu0 %1241
        %v1243 = vsel %vm1236, %v1231, -inf
        %1244 = vmax.xlane.f32.xlu0 %v1243
        %v1245 = vpop.xlane.xlu0 %1244
        %v1246 = vsub.f32 %v1223, %v1239
        %v1247 = vsub.f32 %v1226, %v1242
        %v1248 = vsub.f32 %v1231, %v1245
        %v1249 = vmul.f32 %v1246, 1.442695
        %v1250 = vpow.pop %v1249
        %v1251 = vmul.f32 %v1247, 1.442695
        %v1252 = vpow.pop %v1251
        %v1253 = vmul.f32 %v1248, 1.442695
        %v1254 = vpow.pop %v1253
        %v1255 = vsel %vm1236, %v1250, 0.0
        %1256 = vadd.xlane.f32.xlu0 %v1255
        %v1257 = vpop.xlane.xlu0 %1256
        %v1258 = vsel %vm1236, %v1252, 0.0
        %1259 = vadd.xlane.f32.xlu0 %v1258
        %v1260 = vpop.xlane.xlu0 %1259
        %v1261 = vsel %vm1236, %v1254, 0.0
        %1262 = vadd.xlane.f32.xlu0 %v1261
        %v1263 = vpop.xlane.xlu0 %1262
        %v1264 = vrcp.pop %v1257
        %v1265 = vrcp.pop %v1260
        %v1266 = vrcp.pop %v1263
        %v1267 = vmul.f32 %v1250, %v1264
        %v1268 = vmul.f32 %v1252, %v1265
        %v1269 = vmul.f32 %v1254, %v1266
        %v1270 = vpack.c.bf16 %v1268, %v1267
        %v1271 = vpack.c.bf16 %v1269, %v1269
        %1272 = vrot.lane.b32.xlu0 %v1167, 64
        %v1273 = vpop.permute.xlu0 %1272
        %1274 = vrot.lane.b32.xlu0 %v1168, 64
        %v1275 = vpop.permute.xlu0 %1274
        %v1278 = vsel %vm1236, %v1270, 0
        %v1281 = vsel %vm1236, %v1271, 0
        %vm1283 = vcmask 1043456
        %v1285 = vsel %vm1283, %v1275, 0
        %1287 = vmatprep.subr.bf16.mxu0 0
        %1288 = vmatpush1.bf16.msra.mxu0 0
        %1289 = vmatprep.subr.bf16.mxu0 0
        %1290 = vmatpush1.bf16.msra.mxu0 0
        %1291 = vmatprep.subr.bf16.mxu0 0
        %1292 = vmatpush1.bf16.msra.mxu0 0
        %1293 = vmatprep.subr.bf16.mxu0 0
        %1294 = vmatpush1.bf16.msra.mxu0 0
        %1295 = vmatprep.subr.bf16.mxu0 0
        %1296 = vmatpush1.bf16.msra.mxu0 0
        %1297 = vmatprep.subr.bf16.mxu0 0
        %1298 = vmatpush1.bf16.msra.mxu0 0
        %1299 = vmatprep.subr.bf16.mxu0 0
        %1300 = vmatpush1.bf16.msra.mxu0 %v1285
        %1301 = vmatprep.subr.bf16.mxu0 0
        %1302 = vmatpush1.bf16.msra.mxu0 %v1273
        %1303 = vmatprep.subr.bf16.mxu0 0
        %1304 = vmatpush2.bf16.msra.mxu0 0
        %1305 = vmatprep.subr.bf16.mxu0 0
        %1306 = vmatpush2.bf16.msra.mxu0 0
        %1307 = vmatprep.subr.bf16.mxu0 0
        %1308 = vmatpush2.bf16.msra.mxu0 0
        %1309 = vmatprep.subr.bf16.mxu0 0
        %1310 = vmatpush2.bf16.msra.mxu0 0
        %1311 = vmatprep.subr.bf16.mxu0 0
        %1312 = vmatpush2.bf16.msra.mxu0 0
        %1313 = vmatprep.subr.bf16.mxu0 0
        %1314 = vmatpush2.bf16.msra.mxu0 0
        %1315 = vmatprep.subr.bf16.mxu0 0
        %1316 = vmatpush2.bf16.msra.mxu0 0
        %1317 = vmatprep.subr.bf16.mxu0 0
        %1318 = vmatpush2.bf16.msra.mxu0 0
        %1319 = vmatprep.mubr.bf16.mxu0 0
        %1320 = vmatmul.mubr.bf16.gmra.mxu0 %v1278
        %v1321 = vpop.f32.mrf.mxu0
        %v1322 = vadd.f32 0.0, %v1321
        %v1323 = vpop.f32.mrf.mxu0
        %v1324 = vpop.f32.mrf.mxu0
        %v1325 = vadd.f32 0.0, %v1324
        %v1326 = vpop.f32.mrf.mxu0
        %1327 = vmatprep.mubr.bf16.mxu0 0
        %1328 = vmatmul.mubr.bf16.gmra.mxu0 %v1281
        %v1329 = vpop.f32.mrf.mxu0
        %v1330 = vadd.f32 0.0, %v1329
        %v1331 = vpop.f32.mrf.mxu0
        %v1332 = vpop.f32.mrf.mxu0
        %v1333 = vpop.f32.mrf.mxu0
        %1334 = vdwg.mxu0
        %1337 = vrot.lane.b32.xlu0 %v1165, 120
        %v1338 = vpop.permute.xlu0 %1337
        %1339 = vrot.lane.b32.xlu0 %v1166, 120
        %v1340 = vpop.permute.xlu0 %1339
        %1341 = vrot.lane.b32.xlu0 %v1167, 88
        %v1342 = vpop.permute.xlu0 %1341
        %1343 = vrot.lane.b32.xlu0 %v1168, 88
        %v1344 = vpop.permute.xlu0 %1343
        %v1346 = vsel %vm1175, %v1338, 0
        %v1349 = vsel %vm1175, %v1340, 0
        %v1352 = vsel %vm1175, %v1342, 0
        %v1355 = vsel %vm1175, %v1344, 0
        %1357 = vmatprep.subr.bf16.mxu0 0
        %1358 = vmatpush1.bf16.xpose.msra.mxu0 0
        %1359 = vmatprep.subr.bf16.mxu0 0
        %1360 = vmatpush1.bf16.xpose.msra.mxu0 0
        %1361 = vmatprep.subr.bf16.mxu0 0
        %1362 = vmatpush1.bf16.xpose.msra.mxu0 0
        %1363 = vmatprep.subr.bf16.mxu0 0
        %1364 = vmatpush1.bf16.xpose.msra.mxu0 0
        %1365 = vmatprep.subr.bf16.mxu0 0
        %1366 = vmatpush1.bf16.xpose.msra.mxu0 0
        %1367 = vmatprep.subr.bf16.mxu0 0
        %1368 = vmatpush1.bf16.xpose.msra.mxu0 0
        %1369 = vmatprep.subr.bf16.mxu0 0
        %1370 = vmatpush1.bf16.xpose.msra.mxu0 %v1355
        %1371 = vmatprep.subr.bf16.mxu0 0
        %1372 = vmatpush1.bf16.xpose.msra.mxu0 %v1352
        %1373 = vmatprep.subr.bf16.mxu0 0
        %1374 = vmatpush2.bf16.xpose.msra.mxu0 0
        %1375 = vmatprep.subr.bf16.mxu0 0
        %1376 = vmatpush2.bf16.xpose.msra.mxu0 0
        %1377 = vmatprep.subr.bf16.mxu0 0
        %1378 = vmatpush2.bf16.xpose.msra.mxu0 0
        %1379 = vmatprep.subr.bf16.mxu0 0
        %1380 = vmatpush2.bf16.xpose.msra.mxu0 0
        %1381 = vmatprep.subr.bf16.mxu0 0
        %1382 = vmatpush2.bf16.xpose.msra.mxu0 0
        %1383 = vmatprep.subr.bf16.mxu0 0
        %1384 = vmatpush2.bf16.xpose.msra.mxu0 0
        %1385 = vmatprep.subr.bf16.mxu0 0
        %1386 = vmatpush2.bf16.xpose.msra.mxu0 0
        %1387 = vmatprep.subr.bf16.mxu0 0
        %1388 = vmatpush2.bf16.xpose.msra.mxu0 0
        %1389 = vmatprep.mubr.bf16.mxu0 0
        %1390 = vmatmul.mubr.bf16.gmra.mxu0 %v1346
        %v1391 = vpop.f32.mrf.mxu0
        %v1392 = vadd.f32 %v1161, %v1391
        %v1393 = vpop.f32.mrf.mxu0
        %v1394 = vpop.f32.mrf.mxu0
        %v1395 = vadd.f32 %v1161, %v1394
        %v1396 = vpop.f32.mrf.mxu0
        %1397 = vmatprep.mubr.bf16.mxu0 0
        %1398 = vmatmul.mubr.bf16.gmra.mxu0 %v1349
        %v1399 = vpop.f32.mrf.mxu0
        %v1400 = vadd.f32 %v1161, %v1399
        %v1401 = vpop.f32.mrf.mxu0
        %v1402 = vpop.f32.mrf.mxu0
        %v1403 = vpop.f32.mrf.mxu0
        %1404 = vdwg.mxu0
        %v1405 = vsel %vm1236, %v1392, -inf
        %1406 = vmax.xlane.f32.xlu0 %v1405
        %v1407 = vpop.xlane.xlu0 %1406
        %v1408 = vsel %vm1236, %v1395, -inf
        %1409 = vmax.xlane.f32.xlu0 %v1408
        %v1410 = vpop.xlane.xlu0 %1409
        %v1411 = vsel %vm1236, %v1400, -inf
        %1412 = vmax.xlane.f32.xlu0 %v1411
        %v1413 = vpop.xlane.xlu0 %1412
        %v1414 = vsub.f32 %v1392, %v1407
        %v1415 = vsub.f32 %v1395, %v1410
        %v1416 = vsub.f32 %v1400, %v1413
        %v1417 = vmul.f32 %v1414, 1.442695
        %v1418 = vpow.pop %v1417
        %v1419 = vmul.f32 %v1415, 1.442695
        %v1420 = vpow.pop %v1419
        %v1421 = vmul.f32 %v1416, 1.442695
        %v1422 = vpow.pop %v1421
        %v1423 = vsel %vm1236, %v1418, 0.0
        %1424 = vadd.xlane.f32.xlu0 %v1423
        %v1425 = vpop.xlane.xlu0 %1424
        %v1426 = vsel %vm1236, %v1420, 0.0
        %1427 = vadd.xlane.f32.xlu0 %v1426
        %v1428 = vpop.xlane.xlu0 %1427
        %v1429 = vsel %vm1236, %v1422, 0.0
        %1430 = vadd.xlane.f32.xlu0 %v1429
        %v1431 = vpop.xlane.xlu0 %1430
        %v1432 = vrcp.pop %v1425
        %v1433 = vrcp.pop %v1428
        %v1434 = vrcp.pop %v1431
        %v1435 = vmul.f32 %v1418, %v1432
        %v1436 = vmul.f32 %v1420, %v1433
        %v1437 = vmul.f32 %v1422, %v1434
        %v1438 = vpack.c.bf16 %v1436, %v1435
        %v1439 = vpack.c.bf16 %v1437, %v1437
        %1440 = vrot.lane.b32.xlu0 %v1167, 56
        %v1441 = vpop.permute.xlu0 %1440
        %1442 = vrot.lane.b32.xlu0 %v1168, 56
        %v1443 = vpop.permute.xlu0 %1442
        %v1446 = vsel %vm1236, %v1438, 0
        %v1449 = vsel %vm1236, %v1439, 0
        %v1452 = vsel %vm1283, %v1443, 0
        %1454 = vmatprep.subr.bf16.mxu0 0
        %1455 = vmatpush1.bf16.msra.mxu0 0
        %1456 = vmatprep.subr.bf16.mxu0 0
        %1457 = vmatpush1.bf16.msra.mxu0 0
        %1458 = vmatprep.subr.bf16.mxu0 0
        %1459 = vmatpush1.bf16.msra.mxu0 0
        %1460 = vmatprep.subr.bf16.mxu0 0
        %1461 = vmatpush1.bf16.msra.mxu0 0
        %1462 = vmatprep.subr.bf16.mxu0 0
        %1463 = vmatpush1.bf16.msra.mxu0 0
        %1464 = vmatprep.subr.bf16.mxu0 0
        %1465 = vmatpush1.bf16.msra.mxu0 0
        %1466 = vmatprep.subr.bf16.mxu0 0
        %1467 = vmatpush1.bf16.msra.mxu0 %v1452
        %1468 = vmatprep.subr.bf16.mxu0 0
        %1469 = vmatpush1.bf16.msra.mxu0 %v1441
        %1470 = vmatprep.subr.bf16.mxu0 0
        %1471 = vmatpush2.bf16.msra.mxu0 0
        %1472 = vmatprep.subr.bf16.mxu0 0
        %1473 = vmatpush2.bf16.msra.mxu0 0
        %1474 = vmatprep.subr.bf16.mxu0 0
        %1475 = vmatpush2.bf16.msra.mxu0 0
        %1476 = vmatprep.subr.bf16.mxu0 0
        %1477 = vmatpush2.bf16.msra.mxu0 0
        %1478 = vmatprep.subr.bf16.mxu0 0
        %1479 = vmatpush2.bf16.msra.mxu0 0
        %1480 = vmatprep.subr.bf16.mxu0 0
        %1481 = vmatpush2.bf16.msra.mxu0 0
        %1482 = vmatprep.subr.bf16.mxu0 0
        %1483 = vmatpush2.bf16.msra.mxu0 0
        %1484 = vmatprep.subr.bf16.mxu0 0
        %1485 = vmatpush2.bf16.msra.mxu0 0
        %1486 = vmatprep.mubr.bf16.mxu0 0
        %1487 = vmatmul.mubr.bf16.gmra.mxu0 %v1446
        %v1488 = vpop.f32.mrf.mxu0
        %v1489 = vadd.f32 0.0, %v1488
        %v1490 = vpop.f32.mrf.mxu0
        %v1491 = vpop.f32.mrf.mxu0
        %v1492 = vadd.f32 0.0, %v1491
        %v1493 = vpop.f32.mrf.mxu0
        %1494 = vmatprep.mubr.bf16.mxu0 0
        %1495 = vmatmul.mubr.bf16.gmra.mxu0 %v1449
        %v1496 = vpop.f32.mrf.mxu0
        %v1497 = vadd.f32 0.0, %v1496
        %v1498 = vpop.f32.mrf.mxu0
        %v1499 = vpop.f32.mrf.mxu0
        %v1500 = vpop.f32.mrf.mxu0
        %1501 = vdwg.mxu0
        %1502 = vrot.lane.b32.xlu0 %v1165, 112
        %v1503 = vpop.permute.xlu0 %1502
        %1504 = vrot.lane.b32.xlu0 %v1166, 112
        %v1505 = vpop.permute.xlu0 %1504
        %1506 = vrot.lane.b32.xlu0 %v1167, 80
        %v1507 = vpop.permute.xlu0 %1506
        %1508 = vrot.lane.b32.xlu0 %v1168, 80
        %v1509 = vpop.permute.xlu0 %1508
        %v1511 = vsel %vm1175, %v1503, 0
        %v1514 = vsel %vm1175, %v1505, 0
        %v1517 = vsel %vm1175, %v1507, 0
        %v1520 = vsel %vm1175, %v1509, 0
        %1522 = vmatprep.subr.bf16.mxu0 0
        %1523 = vmatpush1.bf16.xpose.msra.mxu0 0
        %1524 = vmatprep.subr.bf16.mxu0 0
        %1525 = vmatpush1.bf16.xpose.msra.mxu0 0
        %1526 = vmatprep.subr.bf16.mxu0 0
        %1527 = vmatpush1.bf16.xpose.msra.mxu0 0
        %1528 = vmatprep.subr.bf16.mxu0 0
        %1529 = vmatpush1.bf16.xpose.msra.mxu0 0
        %1530 = vmatprep.subr.bf16.mxu0 0
        %1531 = vmatpush1.bf16.xpose.msra.mxu0 0
        %1532 = vmatprep.subr.bf16.mxu0 0
        %1533 = vmatpush1.bf16.xpose.msra.mxu0 0
        %1534 = vmatprep.subr.bf16.mxu0 0
        %1535 = vmatpush1.bf16.xpose.msra.mxu0 %v1520
        %1536 = vmatprep.subr.bf16.mxu0 0
        %1537 = vmatpush1.bf16.xpose.msra.mxu0 %v1517
        %1538 = vmatprep.subr.bf16.mxu0 0
        %1539 = vmatpush2.bf16.xpose.msra.mxu0 0
        %1540 = vmatprep.subr.bf16.mxu0 0
        %1541 = vmatpush2.bf16.xpose.msra.mxu0 0
        %1542 = vmatprep.subr.bf16.mxu0 0
        %1543 = vmatpush2.bf16.xpose.msra.mxu0 0
        %1544 = vmatprep.subr.bf16.mxu0 0
        %1545 = vmatpush2.bf16.xpose.msra.mxu0 0
        %1546 = vmatprep.subr.bf16.mxu0 0
        %1547 = vmatpush2.bf16.xpose.msra.mxu0 0
        %1548 = vmatprep.subr.bf16.mxu0 0
        %1549 = vmatpush2.bf16.xpose.msra.mxu0 0
        %1550 = vmatprep.subr.bf16.mxu0 0
        %1551 = vmatpush2.bf16.xpose.msra.mxu0 0
        %1552 = vmatprep.subr.bf16.mxu0 0
        %1553 = vmatpush2.bf16.xpose.msra.mxu0 0
        %1554 = vmatprep.mubr.bf16.mxu0 0
        %1555 = vmatmul.mubr.bf16.gmra.mxu0 %v1511
        %v1556 = vpop.f32.mrf.mxu0
        %v1557 = vadd.f32 %v1161, %v1556
        %v1558 = vpop.f32.mrf.mxu0
        %v1559 = vpop.f32.mrf.mxu0
        %v1560 = vadd.f32 %v1161, %v1559
        %v1561 = vpop.f32.mrf.mxu0
        %1562 = vmatprep.mubr.bf16.mxu0 0
        %1563 = vmatmul.mubr.bf16.gmra.mxu0 %v1514
        %v1564 = vpop.f32.mrf.mxu0
        %v1565 = vadd.f32 %v1161, %v1564
        %v1566 = vpop.f32.mrf.mxu0
        %v1567 = vpop.f32.mrf.mxu0
        %v1568 = vpop.f32.mrf.mxu0
        %1569 = vdwg.mxu0
        %v1570 = vsel %vm1236, %v1557, -inf
        %1571 = vmax.xlane.f32.xlu0 %v1570
        %v1572 = vpop.xlane.xlu0 %1571
        %v1573 = vsel %vm1236, %v1560, -inf
        %1574 = vmax.xlane.f32.xlu0 %v1573
        %v1575 = vpop.xlane.xlu0 %1574
        %v1576 = vsel %vm1236, %v1565, -inf
        %1577 = vmax.xlane.f32.xlu0 %v1576
        %v1578 = vpop.xlane.xlu0 %1577
        %v1579 = vsub.f32 %v1557, %v1572
        %v1580 = vsub.f32 %v1560, %v1575
        %v1581 = vsub.f32 %v1565, %v1578
        %v1582 = vmul.f32 %v1579, 1.442695
        %v1583 = vpow.pop %v1582
        %v1584 = vmul.f32 %v1580, 1.442695
        %v1585 = vpow.pop %v1584
        %v1586 = vmul.f32 %v1581, 1.442695
        %v1587 = vpow.pop %v1586
        %v1588 = vsel %vm1236, %v1583, 0.0
        %1589 = vadd.xlane.f32.xlu0 %v1588
        %v1590 = vpop.xlane.xlu0 %1589
        %v1591 = vsel %vm1236, %v1585, 0.0
        %1592 = vadd.xlane.f32.xlu0 %v1591
        %v1593 = vpop.xlane.xlu0 %1592
        %v1594 = vsel %vm1236, %v1587, 0.0
        %1595 = vadd.xlane.f32.xlu0 %v1594
        %v1596 = vpop.xlane.xlu0 %1595
        %v1597 = vrcp.pop %v1590
        %v1598 = vrcp.pop %v1593
        %v1599 = vrcp.pop %v1596
        %v1600 = vmul.f32 %v1583, %v1597
        %v1601 = vmul.f32 %v1585, %v1598
        %v1602 = vmul.f32 %v1587, %v1599
        %v1603 = vpack.c.bf16 %v1601, %v1600
        %v1604 = vpack.c.bf16 %v1602, %v1602
        %1605 = vrot.lane.b32.xlu0 %v1167, 48
        %v1606 = vpop.permute.xlu0 %1605
        %1607 = vrot.lane.b32.xlu0 %v1168, 48
        %v1608 = vpop.permute.xlu0 %1607
        %v1611 = vsel %vm1236, %v1603, 0
        %v1614 = vsel %vm1236, %v1604, 0
        %v1617 = vsel %vm1283, %v1608, 0
        %1619 = vmatprep.subr.bf16.mxu0 0
        %1620 = vmatpush1.bf16.msra.mxu0 0
        %1621 = vmatprep.subr.bf16.mxu0 0
        %1622 = vmatpush1.bf16.msra.mxu0 0
        %1623 = vmatprep.subr.bf16.mxu0 0
        %1624 = vmatpush1.bf16.msra.mxu0 0
        %1625 = vmatprep.subr.bf16.mxu0 0
        %1626 = vmatpush1.bf16.msra.mxu0 0
        %1627 = vmatprep.subr.bf16.mxu0 0
        %1628 = vmatpush1.bf16.msra.mxu0 0
        %1629 = vmatprep.subr.bf16.mxu0 0
        %1630 = vmatpush1.bf16.msra.mxu0 0
        %1631 = vmatprep.subr.bf16.mxu0 0
        %1632 = vmatpush1.bf16.msra.mxu0 %v1617
        %1633 = vmatprep.subr.bf16.mxu0 0
        %1634 = vmatpush1.bf16.msra.mxu0 %v1606
        %1635 = vmatprep.subr.bf16.mxu0 0
        %1636 = vmatpush2.bf16.msra.mxu0 0
        %1637 = vmatprep.subr.bf16.mxu0 0
        %1638 = vmatpush2.bf16.msra.mxu0 0
        %1639 = vmatprep.subr.bf16.mxu0 0
        %1640 = vmatpush2.bf16.msra.mxu0 0
        %1641 = vmatprep.subr.bf16.mxu0 0
        %1642 = vmatpush2.bf16.msra.mxu0 0
        %1643 = vmatprep.subr.bf16.mxu0 0
        %1644 = vmatpush2.bf16.msra.mxu0 0
        %1645 = vmatprep.subr.bf16.mxu0 0
        %1646 = vmatpush2.bf16.msra.mxu0 0
        %1647 = vmatprep.subr.bf16.mxu0 0
        %1648 = vmatpush2.bf16.msra.mxu0 0
        %1649 = vmatprep.subr.bf16.mxu0 0
        %1650 = vmatpush2.bf16.msra.mxu0 0
        %1651 = vmatprep.mubr.bf16.mxu0 0
        %1652 = vmatmul.mubr.bf16.gmra.mxu0 %v1611
        %v1653 = vpop.f32.mrf.mxu0
        %v1654 = vadd.f32 0.0, %v1653
        %v1655 = vpop.f32.mrf.mxu0
        %v1656 = vpop.f32.mrf.mxu0
        %v1657 = vadd.f32 0.0, %v1656
        %v1658 = vpop.f32.mrf.mxu0
        %1659 = vmatprep.mubr.bf16.mxu0 0
        %1660 = vmatmul.mubr.bf16.gmra.mxu0 %v1614
        %v1661 = vpop.f32.mrf.mxu0
        %v1662 = vadd.f32 0.0, %v1661
        %v1663 = vpop.f32.mrf.mxu0
        %v1664 = vpop.f32.mrf.mxu0
        %v1665 = vpop.f32.mrf.mxu0
        %1666 = vdwg.mxu0
        %1667 = vrot.lane.b32.xlu0 %v1165, 104
        %v1668 = vpop.permute.xlu0 %1667
        %1669 = vrot.lane.b32.xlu0 %v1166, 104
        %v1670 = vpop.permute.xlu0 %1669
        %1671 = vrot.lane.b32.xlu0 %v1167, 72
        %v1672 = vpop.permute.xlu0 %1671
        %1673 = vrot.lane.b32.xlu0 %v1168, 72
        %v1674 = vpop.permute.xlu0 %1673
        %v1676 = vsel %vm1175, %v1668, 0
        %v1679 = vsel %vm1175, %v1670, 0
        %v1682 = vsel %vm1175, %v1672, 0
        %v1685 = vsel %vm1175, %v1674, 0
        %1687 = vmatprep.subr.bf16.mxu0 0
        %1688 = vmatpush1.bf16.xpose.msra.mxu0 0
        %1689 = vmatprep.subr.bf16.mxu0 0
        %1690 = vmatpush1.bf16.xpose.msra.mxu0 0
        %1691 = vmatprep.subr.bf16.mxu0 0
        %1692 = vmatpush1.bf16.xpose.msra.mxu0 0
        %1693 = vmatprep.subr.bf16.mxu0 0
        %1694 = vmatpush1.bf16.xpose.msra.mxu0 0
        %1695 = vmatprep.subr.bf16.mxu0 0
        %1696 = vmatpush1.bf16.xpose.msra.mxu0 0
        %1697 = vmatprep.subr.bf16.mxu0 0
        %1698 = vmatpush1.bf16.xpose.msra.mxu0 0
        %1699 = vmatprep.subr.bf16.mxu0 0
        %1700 = vmatpush1.bf16.xpose.msra.mxu0 %v1685
        %1701 = vmatprep.subr.bf16.mxu0 0
        %1702 = vmatpush1.bf16.xpose.msra.mxu0 %v1682
        %1703 = vmatprep.subr.bf16.mxu0 0
        %1704 = vmatpush2.bf16.xpose.msra.mxu0 0
        %1705 = vmatprep.subr.bf16.mxu0 0
        %1706 = vmatpush2.bf16.xpose.msra.mxu0 0
        %1707 = vmatprep.subr.bf16.mxu0 0
        %1708 = vmatpush2.bf16.xpose.msra.mxu0 0
        %1709 = vmatprep.subr.bf16.mxu0 0
        %1710 = vmatpush2.bf16.xpose.msra.mxu0 0
        %1711 = vmatprep.subr.bf16.mxu0 0
        %1712 = vmatpush2.bf16.xpose.msra.mxu0 0
        %1713 = vmatprep.subr.bf16.mxu0 0
        %1714 = vmatpush2.bf16.xpose.msra.mxu0 0
        %1715 = vmatprep.subr.bf16.mxu0 0
        %1716 = vmatpush2.bf16.xpose.msra.mxu0 0
        %1717 = vmatprep.subr.bf16.mxu0 0
        %1718 = vmatpush2.bf16.xpose.msra.mxu0 0
        %1719 = vmatprep.mubr.bf16.mxu0 0
        %1720 = vmatmul.mubr.bf16.gmra.mxu0 %v1676
        %v1721 = vpop.f32.mrf.mxu0
        %v1722 = vadd.f32 %v1161, %v1721
        %v1723 = vpop.f32.mrf.mxu0
        %v1724 = vpop.f32.mrf.mxu0
        %v1725 = vadd.f32 %v1161, %v1724
        %v1726 = vpop.f32.mrf.mxu0
        %1727 = vmatprep.mubr.bf16.mxu0 0
        %1728 = vmatmul.mubr.bf16.gmra.mxu0 %v1679
        %v1729 = vpop.f32.mrf.mxu0
        %v1730 = vadd.f32 %v1161, %v1729
        %v1731 = vpop.f32.mrf.mxu0
        %v1732 = vpop.f32.mrf.mxu0
        %v1733 = vpop.f32.mrf.mxu0
        %1734 = vdwg.mxu0
        %v1735 = vsel %vm1236, %v1722, -inf
        %1736 = vmax.xlane.f32.xlu0 %v1735
        %v1737 = vpop.xlane.xlu0 %1736
        %v1738 = vsel %vm1236, %v1725, -inf
        %1739 = vmax.xlane.f32.xlu0 %v1738
        %v1740 = vpop.xlane.xlu0 %1739
        %v1741 = vsel %vm1236, %v1730, -inf
        %1742 = vmax.xlane.f32.xlu0 %v1741
        %v1743 = vpop.xlane.xlu0 %1742
        %v1744 = vsub.f32 %v1722, %v1737
        %v1745 = vsub.f32 %v1725, %v1740
        %v1746 = vsub.f32 %v1730, %v1743
        %v1747 = vmul.f32 %v1744, 1.442695
        %v1748 = vpow.pop %v1747
        %v1749 = vmul.f32 %v1745, 1.442695
        %v1750 = vpow.pop %v1749
        %v1751 = vmul.f32 %v1746, 1.442695
        %v1752 = vpow.pop %v1751
        %v1753 = vsel %vm1236, %v1748, 0.0
        %1754 = vadd.xlane.f32.xlu0 %v1753
        %v1755 = vpop.xlane.xlu0 %1754
        %v1756 = vsel %vm1236, %v1750, 0.0
        %1757 = vadd.xlane.f32.xlu0 %v1756
        %v1758 = vpop.xlane.xlu0 %1757
        %v1759 = vsel %vm1236, %v1752, 0.0
        %1760 = vadd.xlane.f32.xlu0 %v1759
        %v1761 = vpop.xlane.xlu0 %1760
        %v1762 = vrcp.pop %v1755
        %v1763 = vrcp.pop %v1758
        %v1764 = vrcp.pop %v1761
        %v1765 = vmul.f32 %v1748, %v1762
        %v1766 = vmul.f32 %v1750, %v1763
        %v1767 = vmul.f32 %v1752, %v1764
        %v1768 = vpack.c.bf16 %v1766, %v1765
        %v1769 = vpack.c.bf16 %v1767, %v1767
        %1770 = vrot.lane.b32.xlu0 %v1167, 40
        %v1771 = vpop.permute.xlu0 %1770
        %1772 = vrot.lane.b32.xlu0 %v1168, 40
        %v1773 = vpop.permute.xlu0 %1772
        %v1776 = vsel %vm1236, %v1768, 0
        %v1779 = vsel %vm1236, %v1769, 0
        %v1782 = vsel %vm1283, %v1773, 0
        %1784 = vmatprep.subr.bf16.mxu0 0
        %1785 = vmatpush1.bf16.msra.mxu0 0
        %1786 = vmatprep.subr.bf16.mxu0 0
        %1787 = vmatpush1.bf16.msra.mxu0 0
        %1788 = vmatprep.subr.bf16.mxu0 0
        %1789 = vmatpush1.bf16.msra.mxu0 0
        %1790 = vmatprep.subr.bf16.mxu0 0
        %1791 = vmatpush1.bf16.msra.mxu0 0
        %1792 = vmatprep.subr.bf16.mxu0 0
        %1793 = vmatpush1.bf16.msra.mxu0 0
        %1794 = vmatprep.subr.bf16.mxu0 0
        %1795 = vmatpush1.bf16.msra.mxu0 0
        %1796 = vmatprep.subr.bf16.mxu0 0
        %1797 = vmatpush1.bf16.msra.mxu0 %v1782
        %1798 = vmatprep.subr.bf16.mxu0 0
        %1799 = vmatpush1.bf16.msra.mxu0 %v1771
        %1800 = vmatprep.subr.bf16.mxu0 0
        %1801 = vmatpush2.bf16.msra.mxu0 0
        %1802 = vmatprep.subr.bf16.mxu0 0
        %1803 = vmatpush2.bf16.msra.mxu0 0
        %1804 = vmatprep.subr.bf16.mxu0 0
        %1805 = vmatpush2.bf16.msra.mxu0 0
        %1806 = vmatprep.subr.bf16.mxu0 0
        %1807 = vmatpush2.bf16.msra.mxu0 0
        %1808 = vmatprep.subr.bf16.mxu0 0
        %1809 = vmatpush2.bf16.msra.mxu0 0
        %1810 = vmatprep.subr.bf16.mxu0 0
        %1811 = vmatpush2.bf16.msra.mxu0 0
        %1812 = vmatprep.subr.bf16.mxu0 0
        %1813 = vmatpush2.bf16.msra.mxu0 0
        %1814 = vmatprep.subr.bf16.mxu0 0
        %1815 = vmatpush2.bf16.msra.mxu0 0
        %1816 = vmatprep.mubr.bf16.mxu0 0
        %1817 = vmatmul.mubr.bf16.gmra.mxu0 %v1776
        %v1818 = vpop.f32.mrf.mxu0
        %v1819 = vadd.f32 0.0, %v1818
        %v1820 = vpop.f32.mrf.mxu0
        %v1821 = vpop.f32.mrf.mxu0
        %v1822 = vadd.f32 0.0, %v1821
        %v1823 = vpop.f32.mrf.mxu0
        %1824 = vmatprep.mubr.bf16.mxu0 0
        %1825 = vmatmul.mubr.bf16.gmra.mxu0 %v1779
        %v1826 = vpop.f32.mrf.mxu0
        %v1827 = vadd.f32 0.0, %v1826
        %v1828 = vpop.f32.mrf.mxu0
        %v1829 = vpop.f32.mrf.mxu0
        %v1830 = vpop.f32.mrf.mxu0
        %1831 = vdwg.mxu0
        %1835 = vrot.lane.b32.xlu0 %v1489, 8
        %v1836 = vpop.permute.xlu0 %1835
        %1837 = vrot.lane.b32.xlu0 %v1492, 8
        %v1838 = vpop.permute.xlu0 %1837
        %1839 = vrot.lane.b32.xlu0 %v1497, 8
        %v1840 = vpop.permute.xlu0 %1839
        %1847 = vrot.lane.b32.xlu0 %v1654, 16
        %v1848 = vpop.permute.xlu0 %1847
        %1849 = vrot.lane.b32.xlu0 %v1657, 16
        %v1850 = vpop.permute.xlu0 %1849
        %1851 = vrot.lane.b32.xlu0 %v1662, 16
        %v1852 = vpop.permute.xlu0 %1851
        %1859 = vrot.lane.b32.xlu0 %v1819, 24
        %v1860 = vpop.permute.xlu0 %1859
        %1861 = vrot.lane.b32.xlu0 %v1822, 24
        %v1862 = vpop.permute.xlu0 %1861
        %1863 = vrot.lane.b32.xlu0 %v1827, 24
        %v1864 = vpop.permute.xlu0 %1863
        %v1868 = vsel %vm1175, %v1322, %v1836
        %v1869 = vsel %vm1175, %v1325, %v1838
        %v1870 = vsel %vm1175, %v1330, %v1840
        %vm1871 = vcmask 130048
        %v1872 = vsel %vm1871, %v1868, %v1848
        %v1873 = vsel %vm1871, %v1869, %v1850
        %v1874 = vsel %vm1871, %v1870, %v1852
        %v1875 = vsel %vm1236, %v1872, %v1860
        %v1876 = vsel %vm1236, %v1873, %v1862
        %v1877 = vsel %vm1236, %v1874, %v1864
        %v1878 = vmul.f32 %v1147, 0.35355338
        %v1879 = vmul.f32 %v1152, 0.35355338
        %v1880 = vmul.f32 %v1155, 0.35355338
        %v1881 = vpack.c.bf16 %v1879, %v1878
        %v1882 = vpack.c.bf16 %v1880, %v1880
        %v1883 = vpack.c.bf16 %v1152, %v1147
        %v1884 = vpack.c.bf16 %v1155, %v1155
        %1887 = vrot.lane.b32.xlu0 %v1883, 96
        %v1888 = vpop.permute.xlu0 %1887
        %1889 = vrot.lane.b32.xlu0 %v1884, 96
        %v1890 = vpop.permute.xlu0 %1889
        %v1892 = vsel %vm1175, %v1881, 0
        %v1895 = vsel %vm1175, %v1882, 0
        %v1898 = vsel %vm1175, %v1888, 0
        %v1901 = vsel %vm1175, %v1890, 0
        %1903 = vmatprep.subr.bf16.mxu0 0
        %1904 = vmatpush1.bf16.xpose.msra.mxu0 0
        %1905 = vmatprep.subr.bf16.mxu0 0
        %1906 = vmatpush1.bf16.xpose.msra.mxu0 0
        %1907 = vmatprep.subr.bf16.mxu0 0
        %1908 = vmatpush1.bf16.xpose.msra.mxu0 0
        %1909 = vmatprep.subr.bf16.mxu0 0
        %1910 = vmatpush1.bf16.xpose.msra.mxu0 0
        %1911 = vmatprep.subr.bf16.mxu0 0
        %1912 = vmatpush1.bf16.xpose.msra.mxu0 0
        %1913 = vmatprep.subr.bf16.mxu0 0
        %1914 = vmatpush1.bf16.xpose.msra.mxu0 0
        %1915 = vmatprep.subr.bf16.mxu0 0
        %1916 = vmatpush1.bf16.xpose.msra.mxu0 %v1901
        %1917 = vmatprep.subr.bf16.mxu0 0
        %1918 = vmatpush1.bf16.xpose.msra.mxu0 %v1898
        %1919 = vmatprep.subr.bf16.mxu0 0
        %1920 = vmatpush2.bf16.xpose.msra.mxu0 0
        %1921 = vmatprep.subr.bf16.mxu0 0
        %1922 = vmatpush2.bf16.xpose.msra.mxu0 0
        %1923 = vmatprep.subr.bf16.mxu0 0
        %1924 = vmatpush2.bf16.xpose.msra.mxu0 0
        %1925 = vmatprep.subr.bf16.mxu0 0
        %1926 = vmatpush2.bf16.xpose.msra.mxu0 0
        %1927 = vmatprep.subr.bf16.mxu0 0
        %1928 = vmatpush2.bf16.xpose.msra.mxu0 0
        %1929 = vmatprep.subr.bf16.mxu0 0
        %1930 = vmatpush2.bf16.xpose.msra.mxu0 0
        %1931 = vmatprep.subr.bf16.mxu0 0
        %1932 = vmatpush2.bf16.xpose.msra.mxu0 0
        %1933 = vmatprep.subr.bf16.mxu0 0
        %1934 = vmatpush2.bf16.xpose.msra.mxu0 0
        %1935 = vmatprep.mubr.bf16.mxu0 0
        %1936 = vmatmul.mubr.bf16.gmra.mxu0 %v1892
        %v1937 = vpop.f32.mrf.mxu0
        %v1938 = vadd.f32 %v1161, %v1937
        %v1939 = vpop.f32.mrf.mxu0
        %v1940 = vpop.f32.mrf.mxu0
        %v1941 = vadd.f32 %v1161, %v1940
        %v1942 = vpop.f32.mrf.mxu0
        %1943 = vmatprep.mubr.bf16.mxu0 0
        %1944 = vmatmul.mubr.bf16.gmra.mxu0 %v1895
        %v1945 = vpop.f32.mrf.mxu0
        %v1946 = vadd.f32 %v1161, %v1945
        %v1947 = vpop.f32.mrf.mxu0
        %v1948 = vpop.f32.mrf.mxu0
        %v1949 = vpop.f32.mrf.mxu0
        %1950 = vdwg.mxu0
        %v1951 = vsel %vm1236, %v1938, -inf
        %1952 = vmax.xlane.f32.xlu0 %v1951
        %v1953 = vpop.xlane.xlu0 %1952
        %v1954 = vsel %vm1236, %v1941, -inf
        %1955 = vmax.xlane.f32.xlu0 %v1954
        %v1956 = vpop.xlane.xlu0 %1955
        %v1957 = vsel %vm1236, %v1946, -inf
        %1958 = vmax.xlane.f32.xlu0 %v1957
        %v1959 = vpop.xlane.xlu0 %1958
        %v1960 = vsub.f32 %v1938, %v1953
        %v1961 = vsub.f32 %v1941, %v1956
        %v1962 = vsub.f32 %v1946, %v1959
        %v1963 = vmul.f32 %v1960, 1.442695
        %v1964 = vpow.pop %v1963
        %v1965 = vmul.f32 %v1961, 1.442695
        %v1966 = vpow.pop %v1965
        %v1967 = vmul.f32 %v1962, 1.442695
        %v1968 = vpow.pop %v1967
        %v1969 = vsel %vm1236, %v1964, 0.0
        %1970 = vadd.xlane.f32.xlu0 %v1969
        %v1971 = vpop.xlane.xlu0 %1970
        %v1972 = vsel %vm1236, %v1966, 0.0
        %1973 = vadd.xlane.f32.xlu0 %v1972
        %v1974 = vpop.xlane.xlu0 %1973
        %v1975 = vsel %vm1236, %v1968, 0.0
        %1976 = vadd.xlane.f32.xlu0 %v1975
        %v1977 = vpop.xlane.xlu0 %1976
        %v1978 = vrcp.pop %v1971
        %v1979 = vrcp.pop %v1974
        %v1980 = vrcp.pop %v1977
        %v1981 = vmul.f32 %v1964, %v1978
        %v1982 = vmul.f32 %v1966, %v1979
        %v1983 = vmul.f32 %v1968, %v1980
        %v1984 = vpack.c.bf16 %v1982, %v1981
        %v1985 = vpack.c.bf16 %v1983, %v1983
        %1986 = vrot.lane.b32.xlu0 %v1883, 64
        %v1987 = vpop.permute.xlu0 %1986
        %1988 = vrot.lane.b32.xlu0 %v1884, 64
        %v1989 = vpop.permute.xlu0 %1988
        %v1992 = vsel %vm1236, %v1984, 0
        %v1995 = vsel %vm1236, %v1985, 0
        %v1998 = vsel %vm1283, %v1989, 0
        %2000 = vmatprep.subr.bf16.mxu0 0
        %2001 = vmatpush1.bf16.msra.mxu0 0
        %2002 = vmatprep.subr.bf16.mxu0 0
        %2003 = vmatpush1.bf16.msra.mxu0 0
        %2004 = vmatprep.subr.bf16.mxu0 0
        %2005 = vmatpush1.bf16.msra.mxu0 0
        %2006 = vmatprep.subr.bf16.mxu0 0
        %2007 = vmatpush1.bf16.msra.mxu0 0
        %2008 = vmatprep.subr.bf16.mxu0 0
        %2009 = vmatpush1.bf16.msra.mxu0 0
        %2010 = vmatprep.subr.bf16.mxu0 0
        %2011 = vmatpush1.bf16.msra.mxu0 0
        %2012 = vmatprep.subr.bf16.mxu0 0
        %2013 = vmatpush1.bf16.msra.mxu0 %v1998
        %2014 = vmatprep.subr.bf16.mxu0 0
        %2015 = vmatpush1.bf16.msra.mxu0 %v1987
        %2016 = vmatprep.subr.bf16.mxu0 0
        %2017 = vmatpush2.bf16.msra.mxu0 0
        %2018 = vmatprep.subr.bf16.mxu0 0
        %2019 = vmatpush2.bf16.msra.mxu0 0
        %2020 = vmatprep.subr.bf16.mxu0 0
        %2021 = vmatpush2.bf16.msra.mxu0 0
        %2022 = vmatprep.subr.bf16.mxu0 0
        %2023 = vmatpush2.bf16.msra.mxu0 0
        %2024 = vmatprep.subr.bf16.mxu0 0
        %2025 = vmatpush2.bf16.msra.mxu0 0
        %2026 = vmatprep.subr.bf16.mxu0 0
        %2027 = vmatpush2.bf16.msra.mxu0 0
        %2028 = vmatprep.subr.bf16.mxu0 0
        %2029 = vmatpush2.bf16.msra.mxu0 0
        %2030 = vmatprep.subr.bf16.mxu0 0
        %2031 = vmatpush2.bf16.msra.mxu0 0
        %2032 = vmatprep.mubr.bf16.mxu0 0
        %2033 = vmatmul.mubr.bf16.gmra.mxu0 %v1992
        %v2034 = vpop.f32.mrf.mxu0
        %v2035 = vadd.f32 0.0, %v2034
        %v2036 = vpop.f32.mrf.mxu0
        %v2037 = vpop.f32.mrf.mxu0
        %v2038 = vadd.f32 0.0, %v2037
        %v2039 = vpop.f32.mrf.mxu0
        %2040 = vmatprep.mubr.bf16.mxu0 0
        %2041 = vmatmul.mubr.bf16.gmra.mxu0 %v1995
        %v2042 = vpop.f32.mrf.mxu0
        %v2043 = vadd.f32 0.0, %v2042
        %v2044 = vpop.f32.mrf.mxu0
        %v2045 = vpop.f32.mrf.mxu0
        %v2046 = vpop.f32.mrf.mxu0
        %2047 = vdwg.mxu0
        %2050 = vrot.lane.b32.xlu0 %v1881, 120
        %v2051 = vpop.permute.xlu0 %2050
        %2052 = vrot.lane.b32.xlu0 %v1882, 120
        %v2053 = vpop.permute.xlu0 %2052
        %2054 = vrot.lane.b32.xlu0 %v1883, 88
        %v2055 = vpop.permute.xlu0 %2054
        %2056 = vrot.lane.b32.xlu0 %v1884, 88
        %v2057 = vpop.permute.xlu0 %2056
        %v2059 = vsel %vm1175, %v2051, 0
        %v2062 = vsel %vm1175, %v2053, 0
        %v2065 = vsel %vm1175, %v2055, 0
        %v2068 = vsel %vm1175, %v2057, 0
        %2070 = vmatprep.subr.bf16.mxu0 0
        %2071 = vmatpush1.bf16.xpose.msra.mxu0 0
        %2072 = vmatprep.subr.bf16.mxu0 0
        %2073 = vmatpush1.bf16.xpose.msra.mxu0 0
        %2074 = vmatprep.subr.bf16.mxu0 0
        %2075 = vmatpush1.bf16.xpose.msra.mxu0 0
        %2076 = vmatprep.subr.bf16.mxu0 0
        %2077 = vmatpush1.bf16.xpose.msra.mxu0 0
        %2078 = vmatprep.subr.bf16.mxu0 0
        %2079 = vmatpush1.bf16.xpose.msra.mxu0 0
        %2080 = vmatprep.subr.bf16.mxu0 0
        %2081 = vmatpush1.bf16.xpose.msra.mxu0 0
        %2082 = vmatprep.subr.bf16.mxu0 0
        %2083 = vmatpush1.bf16.xpose.msra.mxu0 %v2068
        %2084 = vmatprep.subr.bf16.mxu0 0
        %2085 = vmatpush1.bf16.xpose.msra.mxu0 %v2065
        %2086 = vmatprep.subr.bf16.mxu0 0
        %2087 = vmatpush2.bf16.xpose.msra.mxu0 0
        %2088 = vmatprep.subr.bf16.mxu0 0
        %2089 = vmatpush2.bf16.xpose.msra.mxu0 0
        %2090 = vmatprep.subr.bf16.mxu0 0
        %2091 = vmatpush2.bf16.xpose.msra.mxu0 0
        %2092 = vmatprep.subr.bf16.mxu0 0
        %2093 = vmatpush2.bf16.xpose.msra.mxu0 0
        %2094 = vmatprep.subr.bf16.mxu0 0
        %2095 = vmatpush2.bf16.xpose.msra.mxu0 0
        %2096 = vmatprep.subr.bf16.mxu0 0
        %2097 = vmatpush2.bf16.xpose.msra.mxu0 0
        %2098 = vmatprep.subr.bf16.mxu0 0
        %2099 = vmatpush2.bf16.xpose.msra.mxu0 0
        %2100 = vmatprep.subr.bf16.mxu0 0
        %2101 = vmatpush2.bf16.xpose.msra.mxu0 0
        %2102 = vmatprep.mubr.bf16.mxu0 0
        %2103 = vmatmul.mubr.bf16.gmra.mxu0 %v2059
        %v2104 = vpop.f32.mrf.mxu0
        %v2105 = vadd.f32 %v1161, %v2104
        %v2106 = vpop.f32.mrf.mxu0
        %v2107 = vpop.f32.mrf.mxu0
        %v2108 = vadd.f32 %v1161, %v2107
        %v2109 = vpop.f32.mrf.mxu0
        %2110 = vmatprep.mubr.bf16.mxu0 0
        %2111 = vmatmul.mubr.bf16.gmra.mxu0 %v2062
        %v2112 = vpop.f32.mrf.mxu0
        %v2113 = vadd.f32 %v1161, %v2112
        %v2114 = vpop.f32.mrf.mxu0
        %v2115 = vpop.f32.mrf.mxu0
        %v2116 = vpop.f32.mrf.mxu0
        %2117 = vdwg.mxu0
        %v2118 = vsel %vm1236, %v2105, -inf
        %2119 = vmax.xlane.f32.xlu0 %v2118
        %v2120 = vpop.xlane.xlu0 %2119
        %v2121 = vsel %vm1236, %v2108, -inf
        %2122 = vmax.xlane.f32.xlu0 %v2121
        %v2123 = vpop.xlane.xlu0 %2122
        %v2124 = vsel %vm1236, %v2113, -inf
        %2125 = vmax.xlane.f32.xlu0 %v2124
        %v2126 = vpop.xlane.xlu0 %2125
        %v2127 = vsub.f32 %v2105, %v2120
        %v2128 = vsub.f32 %v2108, %v2123
        %v2129 = vsub.f32 %v2113, %v2126
        %v2130 = vmul.f32 %v2127, 1.442695
        %v2131 = vpow.pop %v2130
        %v2132 = vmul.f32 %v2128, 1.442695
        %v2133 = vpow.pop %v2132
        %v2134 = vmul.f32 %v2129, 1.442695
        %v2135 = vpow.pop %v2134
        %v2136 = vsel %vm1236, %v2131, 0.0
        %2137 = vadd.xlane.f32.xlu0 %v2136
        %v2138 = vpop.xlane.xlu0 %2137
        %v2139 = vsel %vm1236, %v2133, 0.0
        %2140 = vadd.xlane.f32.xlu0 %v2139
        %v2141 = vpop.xlane.xlu0 %2140
        %v2142 = vsel %vm1236, %v2135, 0.0
        %2143 = vadd.xlane.f32.xlu0 %v2142
        %v2144 = vpop.xlane.xlu0 %2143
        %v2145 = vrcp.pop %v2138
        %v2146 = vrcp.pop %v2141
        %v2147 = vrcp.pop %v2144
        %v2148 = vmul.f32 %v2131, %v2145
        %v2149 = vmul.f32 %v2133, %v2146
        %v2150 = vmul.f32 %v2135, %v2147
        %v2151 = vpack.c.bf16 %v2149, %v2148
        %v2152 = vpack.c.bf16 %v2150, %v2150
        %2153 = vrot.lane.b32.xlu0 %v1883, 56
        %v2154 = vpop.permute.xlu0 %2153
        %2155 = vrot.lane.b32.xlu0 %v1884, 56
        %v2156 = vpop.permute.xlu0 %2155
        %v2159 = vsel %vm1236, %v2151, 0
        %v2162 = vsel %vm1236, %v2152, 0
        %v2165 = vsel %vm1283, %v2156, 0
        %2167 = vmatprep.subr.bf16.mxu0 0
        %2168 = vmatpush1.bf16.msra.mxu0 0
        %2169 = vmatprep.subr.bf16.mxu0 0
        %2170 = vmatpush1.bf16.msra.mxu0 0
        %2171 = vmatprep.subr.bf16.mxu0 0
        %2172 = vmatpush1.bf16.msra.mxu0 0
        %2173 = vmatprep.subr.bf16.mxu0 0
        %2174 = vmatpush1.bf16.msra.mxu0 0
        %2175 = vmatprep.subr.bf16.mxu0 0
        %2176 = vmatpush1.bf16.msra.mxu0 0
        %2177 = vmatprep.subr.bf16.mxu0 0
        %2178 = vmatpush1.bf16.msra.mxu0 0
        %2179 = vmatprep.subr.bf16.mxu0 0
        %2180 = vmatpush1.bf16.msra.mxu0 %v2165
        %2181 = vmatprep.subr.bf16.mxu0 0
        %2182 = vmatpush1.bf16.msra.mxu0 %v2154
        %2183 = vmatprep.subr.bf16.mxu0 0
        %2184 = vmatpush2.bf16.msra.mxu0 0
        %2185 = vmatprep.subr.bf16.mxu0 0
        %2186 = vmatpush2.bf16.msra.mxu0 0
        %2187 = vmatprep.subr.bf16.mxu0 0
        %2188 = vmatpush2.bf16.msra.mxu0 0
        %2189 = vmatprep.subr.bf16.mxu0 0
        %2190 = vmatpush2.bf16.msra.mxu0 0
        %2191 = vmatprep.subr.bf16.mxu0 0
        %2192 = vmatpush2.bf16.msra.mxu0 0
        %2193 = vmatprep.subr.bf16.mxu0 0
        %2194 = vmatpush2.bf16.msra.mxu0 0
        %2195 = vmatprep.subr.bf16.mxu0 0
        %2196 = vmatpush2.bf16.msra.mxu0 0
        %2197 = vmatprep.subr.bf16.mxu0 0
        %2198 = vmatpush2.bf16.msra.mxu0 0
        %2199 = vmatprep.mubr.bf16.mxu0 0
        %2200 = vmatmul.mubr.bf16.gmra.mxu0 %v2159
        %v2201 = vpop.f32.mrf.mxu0
        %v2202 = vadd.f32 0.0, %v2201
        %v2203 = vpop.f32.mrf.mxu0
        %v2204 = vpop.f32.mrf.mxu0
        %v2205 = vadd.f32 0.0, %v2204
        %v2206 = vpop.f32.mrf.mxu0
        %2207 = vmatprep.mubr.bf16.mxu0 0
        %2208 = vmatmul.mubr.bf16.gmra.mxu0 %v2162
        %v2209 = vpop.f32.mrf.mxu0
        %v2210 = vadd.f32 0.0, %v2209
        %v2211 = vpop.f32.mrf.mxu0
        %v2212 = vpop.f32.mrf.mxu0
        %v2213 = vpop.f32.mrf.mxu0
        %2214 = vdwg.mxu0
        %2215 = vrot.lane.b32.xlu0 %v1881, 112
        %v2216 = vpop.permute.xlu0 %2215
        %2217 = vrot.lane.b32.xlu0 %v1882, 112
        %v2218 = vpop.permute.xlu0 %2217
        %2219 = vrot.lane.b32.xlu0 %v1883, 80
        %v2220 = vpop.permute.xlu0 %2219
        %2221 = vrot.lane.b32.xlu0 %v1884, 80
        %v2222 = vpop.permute.xlu0 %2221
        %v2224 = vsel %vm1175, %v2216, 0
        %v2227 = vsel %vm1175, %v2218, 0
        %v2230 = vsel %vm1175, %v2220, 0
        %v2233 = vsel %vm1175, %v2222, 0
        %2235 = vmatprep.subr.bf16.mxu0 0
        %2236 = vmatpush1.bf16.xpose.msra.mxu0 0
        %2237 = vmatprep.subr.bf16.mxu0 0
        %2238 = vmatpush1.bf16.xpose.msra.mxu0 0
        %2239 = vmatprep.subr.bf16.mxu0 0
        %2240 = vmatpush1.bf16.xpose.msra.mxu0 0
        %2241 = vmatprep.subr.bf16.mxu0 0
        %2242 = vmatpush1.bf16.xpose.msra.mxu0 0
        %2243 = vmatprep.subr.bf16.mxu0 0
        %2244 = vmatpush1.bf16.xpose.msra.mxu0 0
        %2245 = vmatprep.subr.bf16.mxu0 0
        %2246 = vmatpush1.bf16.xpose.msra.mxu0 0
        %2247 = vmatprep.subr.bf16.mxu0 0
        %2248 = vmatpush1.bf16.xpose.msra.mxu0 %v2233
        %2249 = vmatprep.subr.bf16.mxu0 0
        %2250 = vmatpush1.bf16.xpose.msra.mxu0 %v2230
        %2251 = vmatprep.subr.bf16.mxu0 0
        %2252 = vmatpush2.bf16.xpose.msra.mxu0 0
        %2253 = vmatprep.subr.bf16.mxu0 0
        %2254 = vmatpush2.bf16.xpose.msra.mxu0 0
        %2255 = vmatprep.subr.bf16.mxu0 0
        %2256 = vmatpush2.bf16.xpose.msra.mxu0 0
        %2257 = vmatprep.subr.bf16.mxu0 0
        %2258 = vmatpush2.bf16.xpose.msra.mxu0 0
        %2259 = vmatprep.subr.bf16.mxu0 0
        %2260 = vmatpush2.bf16.xpose.msra.mxu0 0
        %2261 = vmatprep.subr.bf16.mxu0 0
        %2262 = vmatpush2.bf16.xpose.msra.mxu0 0
        %2263 = vmatprep.subr.bf16.mxu0 0
        %2264 = vmatpush2.bf16.xpose.msra.mxu0 0
        %2265 = vmatprep.subr.bf16.mxu0 0
        %2266 = vmatpush2.bf16.xpose.msra.mxu0 0
        %2267 = vmatprep.mubr.bf16.mxu0 0
        %2268 = vmatmul.mubr.bf16.gmra.mxu0 %v2224
        %v2269 = vpop.f32.mrf.mxu0
        %v2270 = vadd.f32 %v1161, %v2269
        %v2271 = vpop.f32.mrf.mxu0
        %v2272 = vpop.f32.mrf.mxu0
        %v2273 = vadd.f32 %v1161, %v2272
        %v2274 = vpop.f32.mrf.mxu0
        %2275 = vmatprep.mubr.bf16.mxu0 0
        %2276 = vmatmul.mubr.bf16.gmra.mxu0 %v2227
        %v2277 = vpop.f32.mrf.mxu0
        %v2278 = vadd.f32 %v1161, %v2277
        %v2279 = vpop.f32.mrf.mxu0
        %v2280 = vpop.f32.mrf.mxu0
        %v2281 = vpop.f32.mrf.mxu0
        %2282 = vdwg.mxu0
        %v2283 = vsel %vm1236, %v2270, -inf
        %2284 = vmax.xlane.f32.xlu0 %v2283
        %v2285 = vpop.xlane.xlu0 %2284
        %v2286 = vsel %vm1236, %v2273, -inf
        %2287 = vmax.xlane.f32.xlu0 %v2286
        %v2288 = vpop.xlane.xlu0 %2287
        %v2289 = vsel %vm1236, %v2278, -inf
        %2290 = vmax.xlane.f32.xlu0 %v2289
        %v2291 = vpop.xlane.xlu0 %2290
        %v2292 = vsub.f32 %v2270, %v2285
        %v2293 = vsub.f32 %v2273, %v2288
        %v2294 = vsub.f32 %v2278, %v2291
        %v2295 = vmul.f32 %v2292, 1.442695
        %v2296 = vpow.pop %v2295
        %v2297 = vmul.f32 %v2293, 1.442695
        %v2298 = vpow.pop %v2297
        %v2299 = vmul.f32 %v2294, 1.442695
        %v2300 = vpow.pop %v2299
        %v2301 = vsel %vm1236, %v2296, 0.0
        %2302 = vadd.xlane.f32.xlu0 %v2301
        %v2303 = vpop.xlane.xlu0 %2302
        %v2304 = vsel %vm1236, %v2298, 0.0
        %2305 = vadd.xlane.f32.xlu0 %v2304
        %v2306 = vpop.xlane.xlu0 %2305
        %v2307 = vsel %vm1236, %v2300, 0.0
        %2308 = vadd.xlane.f32.xlu0 %v2307
        %v2309 = vpop.xlane.xlu0 %2308
        %v2310 = vrcp.pop %v2303
        %v2311 = vrcp.pop %v2306
        %v2312 = vrcp.pop %v2309
        %v2313 = vmul.f32 %v2296, %v2310
        %v2314 = vmul.f32 %v2298, %v2311
        %v2315 = vmul.f32 %v2300, %v2312
        %v2316 = vpack.c.bf16 %v2314, %v2313
        %v2317 = vpack.c.bf16 %v2315, %v2315
        %2318 = vrot.lane.b32.xlu0 %v1883, 48
        %v2319 = vpop.permute.xlu0 %2318
        %2320 = vrot.lane.b32.xlu0 %v1884, 48
        %v2321 = vpop.permute.xlu0 %2320
        %v2324 = vsel %vm1236, %v2316, 0
        %v2327 = vsel %vm1236, %v2317, 0
        %v2330 = vsel %vm1283, %v2321, 0
        %2332 = vmatprep.subr.bf16.mxu0 0
        %2333 = vmatpush1.bf16.msra.mxu0 0
        %2334 = vmatprep.subr.bf16.mxu0 0
        %2335 = vmatpush1.bf16.msra.mxu0 0
        %2336 = vmatprep.subr.bf16.mxu0 0
        %2337 = vmatpush1.bf16.msra.mxu0 0
        %2338 = vmatprep.subr.bf16.mxu0 0
        %2339 = vmatpush1.bf16.msra.mxu0 0
        %2340 = vmatprep.subr.bf16.mxu0 0
        %2341 = vmatpush1.bf16.msra.mxu0 0
        %2342 = vmatprep.subr.bf16.mxu0 0
        %2343 = vmatpush1.bf16.msra.mxu0 0
        %2344 = vmatprep.subr.bf16.mxu0 0
        %2345 = vmatpush1.bf16.msra.mxu0 %v2330
        %2346 = vmatprep.subr.bf16.mxu0 0
        %2347 = vmatpush1.bf16.msra.mxu0 %v2319
        %2348 = vmatprep.subr.bf16.mxu0 0
        %2349 = vmatpush2.bf16.msra.mxu0 0
        %2350 = vmatprep.subr.bf16.mxu0 0
        %2351 = vmatpush2.bf16.msra.mxu0 0
        %2352 = vmatprep.subr.bf16.mxu0 0
        %2353 = vmatpush2.bf16.msra.mxu0 0
        %2354 = vmatprep.subr.bf16.mxu0 0
        %2355 = vmatpush2.bf16.msra.mxu0 0
        %2356 = vmatprep.subr.bf16.mxu0 0
        %2357 = vmatpush2.bf16.msra.mxu0 0
        %2358 = vmatprep.subr.bf16.mxu0 0
        %2359 = vmatpush2.bf16.msra.mxu0 0
        %2360 = vmatprep.subr.bf16.mxu0 0
        %2361 = vmatpush2.bf16.msra.mxu0 0
        %2362 = vmatprep.subr.bf16.mxu0 0
        %2363 = vmatpush2.bf16.msra.mxu0 0
        %2364 = vmatprep.mubr.bf16.mxu0 0
        %2365 = vmatmul.mubr.bf16.gmra.mxu0 %v2324
        %v2366 = vpop.f32.mrf.mxu0
        %v2367 = vadd.f32 0.0, %v2366
        %v2368 = vpop.f32.mrf.mxu0
        %v2369 = vpop.f32.mrf.mxu0
        %v2370 = vadd.f32 0.0, %v2369
        %v2371 = vpop.f32.mrf.mxu0
        %2372 = vmatprep.mubr.bf16.mxu0 0
        %2373 = vmatmul.mubr.bf16.gmra.mxu0 %v2327
        %v2374 = vpop.f32.mrf.mxu0
        %v2375 = vadd.f32 0.0, %v2374
        %v2376 = vpop.f32.mrf.mxu0
        %v2377 = vpop.f32.mrf.mxu0
        %v2378 = vpop.f32.mrf.mxu0
        %2379 = vdwg.mxu0
        %2380 = vrot.lane.b32.xlu0 %v1881, 104
        %v2381 = vpop.permute.xlu0 %2380
        %2382 = vrot.lane.b32.xlu0 %v1882, 104
        %v2383 = vpop.permute.xlu0 %2382
        %2384 = vrot.lane.b32.xlu0 %v1883, 72
        %v2385 = vpop.permute.xlu0 %2384
        %2386 = vrot.lane.b32.xlu0 %v1884, 72
        %v2387 = vpop.permute.xlu0 %2386
        %v2389 = vsel %vm1175, %v2381, 0
        %v2392 = vsel %vm1175, %v2383, 0
        %v2395 = vsel %vm1175, %v2385, 0
        %v2398 = vsel %vm1175, %v2387, 0
        %2400 = vmatprep.subr.bf16.mxu0 0
        %2401 = vmatpush1.bf16.xpose.msra.mxu0 0
        %2402 = vmatprep.subr.bf16.mxu0 0
        %2403 = vmatpush1.bf16.xpose.msra.mxu0 0
        %2404 = vmatprep.subr.bf16.mxu0 0
        %2405 = vmatpush1.bf16.xpose.msra.mxu0 0
        %2406 = vmatprep.subr.bf16.mxu0 0
        %2407 = vmatpush1.bf16.xpose.msra.mxu0 0
        %2408 = vmatprep.subr.bf16.mxu0 0
        %2409 = vmatpush1.bf16.xpose.msra.mxu0 0
        %2410 = vmatprep.subr.bf16.mxu0 0
        %2411 = vmatpush1.bf16.xpose.msra.mxu0 0
        %2412 = vmatprep.subr.bf16.mxu0 0
        %2413 = vmatpush1.bf16.xpose.msra.mxu0 %v2398
        %2414 = vmatprep.subr.bf16.mxu0 0
        %2415 = vmatpush1.bf16.xpose.msra.mxu0 %v2395
        %2416 = vmatprep.subr.bf16.mxu0 0
        %2417 = vmatpush2.bf16.xpose.msra.mxu0 0
        %2418 = vmatprep.subr.bf16.mxu0 0
        %2419 = vmatpush2.bf16.xpose.msra.mxu0 0
        %2420 = vmatprep.subr.bf16.mxu0 0
        %2421 = vmatpush2.bf16.xpose.msra.mxu0 0
        %2422 = vmatprep.subr.bf16.mxu0 0
        %2423 = vmatpush2.bf16.xpose.msra.mxu0 0
        %2424 = vmatprep.subr.bf16.mxu0 0
        %2425 = vmatpush2.bf16.xpose.msra.mxu0 0
        %2426 = vmatprep.subr.bf16.mxu0 0
        %2427 = vmatpush2.bf16.xpose.msra.mxu0 0
        %2428 = vmatprep.subr.bf16.mxu0 0
        %2429 = vmatpush2.bf16.xpose.msra.mxu0 0
        %2430 = vmatprep.subr.bf16.mxu0 0
        %2431 = vmatpush2.bf16.xpose.msra.mxu0 0
        %2432 = vmatprep.mubr.bf16.mxu0 0
        %2433 = vmatmul.mubr.bf16.gmra.mxu0 %v2389
        %v2434 = vpop.f32.mrf.mxu0
        %v2435 = vadd.f32 %v1161, %v2434
        %v2436 = vpop.f32.mrf.mxu0
        %v2437 = vpop.f32.mrf.mxu0
        %v2438 = vadd.f32 %v1161, %v2437
        %v2439 = vpop.f32.mrf.mxu0
        %2440 = vmatprep.mubr.bf16.mxu0 0
        %2441 = vmatmul.mubr.bf16.gmra.mxu0 %v2392
        %v2442 = vpop.f32.mrf.mxu0
        %v2443 = vadd.f32 %v1161, %v2442
        %v2444 = vpop.f32.mrf.mxu0
        %v2445 = vpop.f32.mrf.mxu0
        %v2446 = vpop.f32.mrf.mxu0
        %2447 = vdwg.mxu0
        %v2448 = vsel %vm1236, %v2435, -inf
        %2449 = vmax.xlane.f32.xlu0 %v2448
        %v2450 = vpop.xlane.xlu0 %2449
        %v2451 = vsel %vm1236, %v2438, -inf
        %2452 = vmax.xlane.f32.xlu0 %v2451
        %v2453 = vpop.xlane.xlu0 %2452
        %v2454 = vsel %vm1236, %v2443, -inf
        %2455 = vmax.xlane.f32.xlu0 %v2454
        %v2456 = vpop.xlane.xlu0 %2455
        %v2457 = vsub.f32 %v2435, %v2450
        %v2458 = vsub.f32 %v2438, %v2453
        %v2459 = vsub.f32 %v2443, %v2456
        %v2460 = vmul.f32 %v2457, 1.442695
        %v2461 = vpow.pop %v2460
        %v2462 = vmul.f32 %v2458, 1.442695
        %v2463 = vpow.pop %v2462
        %v2464 = vmul.f32 %v2459, 1.442695
        %v2465 = vpow.pop %v2464
        %v2466 = vsel %vm1236, %v2461, 0.0
        %2467 = vadd.xlane.f32.xlu0 %v2466
        %v2468 = vpop.xlane.xlu0 %2467
        %v2469 = vsel %vm1236, %v2463, 0.0
        %2470 = vadd.xlane.f32.xlu0 %v2469
        %v2471 = vpop.xlane.xlu0 %2470
        %v2472 = vsel %vm1236, %v2465, 0.0
        %2473 = vadd.xlane.f32.xlu0 %v2472
        %v2474 = vpop.xlane.xlu0 %2473
        %v2475 = vrcp.pop %v2468
        %v2476 = vrcp.pop %v2471
        %v2477 = vrcp.pop %v2474
        %v2478 = vmul.f32 %v2461, %v2475
        %v2479 = vmul.f32 %v2463, %v2476
        %v2480 = vmul.f32 %v2465, %v2477
        %v2481 = vpack.c.bf16 %v2479, %v2478
        %v2482 = vpack.c.bf16 %v2480, %v2480
        %2483 = vrot.lane.b32.xlu0 %v1883, 40
        %v2484 = vpop.permute.xlu0 %2483
        %2485 = vrot.lane.b32.xlu0 %v1884, 40
        %v2486 = vpop.permute.xlu0 %2485
        %v2489 = vsel %vm1236, %v2481, 0
        %v2492 = vsel %vm1236, %v2482, 0
        %v2495 = vsel %vm1283, %v2486, 0
        %2497 = vmatprep.subr.bf16.mxu0 0
        %2498 = vmatpush1.bf16.msra.mxu0 0
        %2499 = vmatprep.subr.bf16.mxu0 0
        %2500 = vmatpush1.bf16.msra.mxu0 0
        %2501 = vmatprep.subr.bf16.mxu0 0
        %2502 = vmatpush1.bf16.msra.mxu0 0
        %2503 = vmatprep.subr.bf16.mxu0 0
        %2504 = vmatpush1.bf16.msra.mxu0 0
        %2505 = vmatprep.subr.bf16.mxu0 0
        %2506 = vmatpush1.bf16.msra.mxu0 0
        %2507 = vmatprep.subr.bf16.mxu0 0
        %2508 = vmatpush1.bf16.msra.mxu0 0
        %2509 = vmatprep.subr.bf16.mxu0 0
        %2510 = vmatpush1.bf16.msra.mxu0 %v2495
        %2511 = vmatprep.subr.bf16.mxu0 0
        %2512 = vmatpush1.bf16.msra.mxu0 %v2484
        %2513 = vmatprep.subr.bf16.mxu0 0
        %2514 = vmatpush2.bf16.msra.mxu0 0
        %2515 = vmatprep.subr.bf16.mxu0 0
        %2516 = vmatpush2.bf16.msra.mxu0 0
        %2517 = vmatprep.subr.bf16.mxu0 0
        %2518 = vmatpush2.bf16.msra.mxu0 0
        %2519 = vmatprep.subr.bf16.mxu0 0
        %2520 = vmatpush2.bf16.msra.mxu0 0
        %2521 = vmatprep.subr.bf16.mxu0 0
        %2522 = vmatpush2.bf16.msra.mxu0 0
        %2523 = vmatprep.subr.bf16.mxu0 0
        %2524 = vmatpush2.bf16.msra.mxu0 0
        %2525 = vmatprep.subr.bf16.mxu0 0
        %2526 = vmatpush2.bf16.msra.mxu0 0
        %2527 = vmatprep.subr.bf16.mxu0 0
        %2528 = vmatpush2.bf16.msra.mxu0 0
        %2529 = vmatprep.mubr.bf16.mxu0 0
        %2530 = vmatmul.mubr.bf16.gmra.mxu0 %v2489
        %v2531 = vpop.f32.mrf.mxu0
        %v2532 = vadd.f32 0.0, %v2531
        %v2533 = vpop.f32.mrf.mxu0
        %v2534 = vpop.f32.mrf.mxu0
        %v2535 = vadd.f32 0.0, %v2534
        %v2536 = vpop.f32.mrf.mxu0
        %2537 = vmatprep.mubr.bf16.mxu0 0
        %2538 = vmatmul.mubr.bf16.gmra.mxu0 %v2492
        %v2539 = vpop.f32.mrf.mxu0
        %v2540 = vadd.f32 0.0, %v2539
        %v2541 = vpop.f32.mrf.mxu0
        %v2542 = vpop.f32.mrf.mxu0
        %v2543 = vpop.f32.mrf.mxu0
        %2544 = vdwg.mxu0
        %2548 = vrot.lane.b32.xlu0 %v2202, 8
        %v2549 = vpop.permute.xlu0 %2548
        %2550 = vrot.lane.b32.xlu0 %v2205, 8
        %v2551 = vpop.permute.xlu0 %2550
        %2552 = vrot.lane.b32.xlu0 %v2210, 8
        %v2553 = vpop.permute.xlu0 %2552
        %2560 = vrot.lane.b32.xlu0 %v2367, 16
        %v2561 = vpop.permute.xlu0 %2560
        %2562 = vrot.lane.b32.xlu0 %v2370, 16
        %v2563 = vpop.permute.xlu0 %2562
        %2564 = vrot.lane.b32.xlu0 %v2375, 16
        %v2565 = vpop.permute.xlu0 %2564
        %2572 = vrot.lane.b32.xlu0 %v2532, 24
        %v2573 = vpop.permute.xlu0 %2572
        %2574 = vrot.lane.b32.xlu0 %v2535, 24
        %v2575 = vpop.permute.xlu0 %2574
        %2576 = vrot.lane.b32.xlu0 %v2540, 24
        %v2577 = vpop.permute.xlu0 %2576
        %v2581 = vsel %vm1175, %v2035, %v2549
        %v2582 = vsel %vm1175, %v2038, %v2551
        %v2583 = vsel %vm1175, %v2043, %v2553
        %v2584 = vsel %vm1871, %v2581, %v2561
        %v2585 = vsel %vm1871, %v2582, %v2563
        %v2586 = vsel %vm1871, %v2583, %v2565
        %v2587 = vsel %vm1236, %v2584, %v2573
        %v2588 = vsel %vm1236, %v2585, %v2575
        %v2589 = vsel %vm1236, %v2586, %v2577
        %v2590 = vpack.c.bf16 %v1876, %v1875
        %v2591 = vpack.c.bf16 %v2587, %v1877
        %v2592 = vpack.c.bf16 %v2589, %v2588
        %v2593 = vld [vmem:[%s793] sm:$0xf]
        %v2594 = vld [vmem:[%s793 + $0x4] sm:$0xf]
        %v2595 = vld [vmem:[%s793 + $0x8] sm:$0xf]
        %v2596 = vld [vmem:[%s793 + $0xc] sm:$0xf]
        %v2597 = vld [vmem:[%s796] sm:$0x1]
        %v2599 = vlaneseq
        %v2600 = vshrl.u32 %v2599, 7
        %v2601 = vsub.s32 0, %v2600
        %v2602 = vrot.slane %v2597, %v2601
        %v2608 = vunpack.c.l.b16 %v2593
        %v2609 = vunpack.c.l.b16 %v2594
        %v2610 = vunpack.c.l.b16 %v2595
        %v2611 = vunpack.c.l.b16 %v2596
        %v2612 = vpack.c.b16 %v2609, %v2608
        %v2613 = vpack.c.b16 %v2611, %v2610
        %v2617 = vsel %vm962, %v2590, 0
        %v2620 = vsel %vm962, %v2591, 0
        %v2623 = vsel %vm962, %v2592, 0
        %2625 = vmatprep.subr.bf16.mxu0 0
        %2626 = vmatpush1.bf16.msra.mxu0 0
        %2627 = vmatprep.subr.bf16.mxu0 0
        %2628 = vmatpush1.bf16.msra.mxu0 0
        %2629 = vmatprep.subr.bf16.mxu0 0
        %2630 = vmatpush1.bf16.msra.mxu0 0
        %2631 = vmatprep.subr.bf16.mxu0 0
        %2632 = vmatpush1.bf16.msra.mxu0 0
        %2633 = vmatprep.subr.bf16.mxu0 0
        %2634 = vmatpush1.bf16.msra.mxu0 0
        %2635 = vmatprep.subr.bf16.mxu0 0
        %2636 = vmatpush1.bf16.msra.mxu0 0
        %2637 = vmatprep.subr.bf16.mxu0 0
        %2638 = vmatpush1.bf16.msra.mxu0 %v2613
        %2639 = vmatprep.subr.bf16.mxu0 0
        %2640 = vmatpush1.bf16.msra.mxu0 %v2612
        %2641 = vmatprep.subr.bf16.mxu0 0
        %2642 = vmatpush2.bf16.msra.mxu0 0
        %2643 = vmatprep.subr.bf16.mxu0 0
        %2644 = vmatpush2.bf16.msra.mxu0 0
        %2645 = vmatprep.subr.bf16.mxu0 0
        %2646 = vmatpush2.bf16.msra.mxu0 0
        %2647 = vmatprep.subr.bf16.mxu0 0
        %2648 = vmatpush2.bf16.msra.mxu0 0
        %2649 = vmatprep.subr.bf16.mxu0 0
        %2650 = vmatpush2.bf16.msra.mxu0 0
        %2651 = vmatprep.subr.bf16.mxu0 0
        %2652 = vmatpush2.bf16.msra.mxu0 0
        %2653 = vmatprep.subr.bf16.mxu0 0
        %2654 = vmatpush2.bf16.msra.mxu0 0
        %2655 = vmatprep.subr.bf16.mxu0 0
        %2656 = vmatpush2.bf16.msra.mxu0 0
        %2657 = vmatprep.mubr.bf16.mxu0 0
        %2658 = vmatmul.mubr.bf16.gmra.mxu0 %v2617
        %v2659 = vpop.f32.mrf.mxu0
        %v2660 = vadd.f32 %v2602, %v2659
        %v2661 = vpop.f32.mrf.mxu0
        %v2662 = vpop.f32.mrf.mxu0
        %v2663 = vadd.f32 %v2602, %v2662
        %v2664 = vpop.f32.mrf.mxu0
        %2665 = vmatprep.mubr.bf16.mxu0 0
        %2666 = vmatmul.mubr.bf16.gmra.mxu0 %v2620
        %v2667 = vpop.f32.mrf.mxu0
        %v2668 = vadd.f32 %v2602, %v2667
        %v2669 = vpop.f32.mrf.mxu0
        %v2670 = vpop.f32.mrf.mxu0
        %v2671 = vadd.f32 %v2602, %v2670
        %v2672 = vpop.f32.mrf.mxu0
        %2673 = vmatprep.mubr.bf16.mxu0 0
        %2674 = vmatmul.mubr.bf16.gmra.mxu0 %v2623
        %v2675 = vpop.f32.mrf.mxu0
        %v2676 = vadd.f32 %v2602, %v2675
        %v2677 = vpop.f32.mrf.mxu0
        %v2678 = vpop.f32.mrf.mxu0
        %v2679 = vadd.f32 %v2602, %v2678
        %v2680 = vpop.f32.mrf.mxu0
        %2681 = vdwg.mxu0
        %v2682 = vadd.f32 %v954, %v2660
        %v2683 = vadd.f32 %v955, %v2663
        %v2684 = vadd.f32 %v956, %v2668
        %v2685 = vadd.f32 %v957, %v2671
        %v2686 = vadd.f32 %v958, %v2676
        %v2687 = vadd.f32 %v959, %v2679
        %v2688 = vld [vmem:[%s777] sm:$0x1]
        %v2689 = vld [vmem:[%s780] sm:$0x1]
        %v2690 = vsel %vm962, %v2682, 0.0
        %2691 = vadd.xlane.f32.xlu0 %v2690
        %v2692 = vpop.xlane.xlu0 %2691
        %v2693 = vsel %vm962, %v2683, 0.0
        %2694 = vadd.xlane.f32.xlu0 %v2693
        %v2695 = vpop.xlane.xlu0 %2694
        %v2696 = vsel %vm962, %v2684, 0.0
        %2697 = vadd.xlane.f32.xlu0 %v2696
        %v2698 = vpop.xlane.xlu0 %2697
        %v2699 = vsel %vm962, %v2685, 0.0
        %2700 = vadd.xlane.f32.xlu0 %v2699
        %v2701 = vpop.xlane.xlu0 %2700
        %v2702 = vsel %vm962, %v2686, 0.0
        %2703 = vadd.xlane.f32.xlu0 %v2702
        %v2704 = vpop.xlane.xlu0 %2703
        %v2705 = vsel %vm962, %v2687, 0.0
        %2706 = vadd.xlane.f32.xlu0 %v2705
        %v2707 = vpop.xlane.xlu0 %2706
        %v2708 = vmul.f32 %v2692, %v981
        %v2709 = vmul.f32 %v2695, %v981
        %v2710 = vmul.f32 %v2698, %v981
        %v2711 = vmul.f32 %v2701, %v981
        %v2712 = vmul.f32 %v2704, %v981
        %v2713 = vmul.f32 %v2707, %v981
        %v2714 = vsub.f32 %v2682, %v2708
        %v2715 = vsub.f32 %v2683, %v2709
        %v2716 = vsub.f32 %v2684, %v2710
        %v2717 = vsub.f32 %v2685, %v2711
        %v2718 = vsub.f32 %v2686, %v2712
        %v2719 = vsub.f32 %v2687, %v2713
        %v2720 = vmul.f32 %v2714, %v2714
        %v2721 = vmul.f32 %v2715, %v2715
        %v2722 = vmul.f32 %v2716, %v2716
        %v2723 = vmul.f32 %v2717, %v2717
        %v2724 = vmul.f32 %v2718, %v2718
        %v2725 = vmul.f32 %v2719, %v2719
        %v2726 = vsel %vm962, %v2720, 0.0
        %2727 = vadd.xlane.f32.xlu0 %v2726
        %v2728 = vpop.xlane.xlu0 %2727
        %v2729 = vsel %vm962, %v2721, 0.0
        %2730 = vadd.xlane.f32.xlu0 %v2729
        %v2731 = vpop.xlane.xlu0 %2730
        %v2732 = vsel %vm962, %v2722, 0.0
        %2733 = vadd.xlane.f32.xlu0 %v2732
        %v2734 = vpop.xlane.xlu0 %2733
        %v2735 = vsel %vm962, %v2723, 0.0
        %2736 = vadd.xlane.f32.xlu0 %v2735
        %v2737 = vpop.xlane.xlu0 %2736
        %v2738 = vsel %vm962, %v2724, 0.0
        %2739 = vadd.xlane.f32.xlu0 %v2738
        %v2740 = vpop.xlane.xlu0 %2739
        %v2741 = vsel %vm962, %v2725, 0.0
        %2742 = vadd.xlane.f32.xlu0 %v2741
        %v2743 = vpop.xlane.xlu0 %2742
        %v2744 = vmul.f32 %v2728, %v981
        %v2745 = vmul.f32 %v2731, %v981
        %v2746 = vmul.f32 %v2734, %v981
        %v2747 = vmul.f32 %v2737, %v981
        %v2748 = vmul.f32 %v2740, %v981
        %v2749 = vmul.f32 %v2743, %v981
        %v2750 = vadd.f32 %v2744, 1e-05
        %v2751 = vadd.f32 %v2745, 1e-05
        %v2752 = vadd.f32 %v2746, 1e-05
        %v2753 = vadd.f32 %v2747, 1e-05
        %v2754 = vadd.f32 %v2748, 1e-05
        %v2755 = vadd.f32 %v2749, 1e-05
        %v2756 = vrsqrt.pop %v2750
        %v2757 = vrsqrt.pop %v2751
        %v2758 = vrsqrt.pop %v2752
        %v2759 = vrsqrt.pop %v2753
        %v2760 = vrsqrt.pop %v2754
        %v2761 = vrsqrt.pop %v2755
        %v2762 = vmul.f32 %v2714, %v2756
        %v2763 = vmul.f32 %v2715, %v2757
        %v2764 = vmul.f32 %v2716, %v2758
        %v2765 = vmul.f32 %v2717, %v2759
        %v2766 = vmul.f32 %v2718, %v2760
        %v2767 = vmul.f32 %v2719, %v2761
        %v2769 = vlaneseq
        %v2770 = vshrl.u32 %v2769, 7
        %v2771 = vsub.s32 0, %v2770
        %v2772 = vrot.slane %v2688, %v2771
        %v2774 = vmul.f32 %v2762, %v2772
        %v2775 = vmul.f32 %v2763, %v2772
        %v2776 = vmul.f32 %v2764, %v2772
        %v2777 = vmul.f32 %v2765, %v2772
        %v2778 = vmul.f32 %v2766, %v2772
        %v2779 = vmul.f32 %v2767, %v2772
        %v2781 = vlaneseq
        %v2782 = vshrl.u32 %v2781, 7
        %v2783 = vsub.s32 0, %v2782
        %v2784 = vrot.slane %v2689, %v2783
        %v2786 = vadd.f32 %v2774, %v2784
        %v2787 = vadd.f32 %v2775, %v2784
        %v2788 = vadd.f32 %v2776, %v2784
        %v2789 = vadd.f32 %v2777, %v2784
        %v2790 = vadd.f32 %v2778, %v2784
        %v2791 = vadd.f32 %v2779, %v2784
        %v2792 = vpack.c.bf16 %v2787, %v2786
        %v2793 = vpack.c.bf16 %v2789, %v2788
        %v2794 = vpack.c.bf16 %v2791, %v2790
        %v2795 = vld [vmem:[%s801] sm:$0xf]
        %v2796 = vld [vmem:[%s801 + $0x4] sm:$0xf]
        %v2797 = vld [vmem:[%s801 + $0x8] sm:$0xf]
        %v2798 = vld [vmem:[%s801 + $0xc] sm:$0xf]
        %v2799 = vld [vmem:[%s804] sm:$0x1]
        %v2801 = vlaneseq
        %v2802 = vshrl.u32 %v2801, 7
        %v2803 = vsub.s32 0, %v2802
        %v2804 = vrot.slane %v2799, %v2803
        %v2810 = vunpack.c.l.b16 %v2795
        %v2811 = vunpack.c.l.b16 %v2796
        %v2812 = vunpack.c.l.b16 %v2797
        %v2813 = vunpack.c.l.b16 %v2798
        %v2814 = vpack.c.b16 %v2811, %v2810
        %v2815 = vpack.c.b16 %v2813, %v2812
        %v2819 = vsel %vm962, %v2792, 0
        %v2822 = vsel %vm962, %v2793, 0
        %v2825 = vsel %vm962, %v2794, 0
        %2827 = vmatprep.subr.bf16.mxu0 0
        %2828 = vmatpush1.bf16.msra.mxu0 0
        %2829 = vmatprep.subr.bf16.mxu0 0
        %2830 = vmatpush1.bf16.msra.mxu0 0
        %2831 = vmatprep.subr.bf16.mxu0 0
        %2832 = vmatpush1.bf16.msra.mxu0 0
        %2833 = vmatprep.subr.bf16.mxu0 0
        %2834 = vmatpush1.bf16.msra.mxu0 0
        %2835 = vmatprep.subr.bf16.mxu0 0
        %2836 = vmatpush1.bf16.msra.mxu0 0
        %2837 = vmatprep.subr.bf16.mxu0 0
        %2838 = vmatpush1.bf16.msra.mxu0 0
        %2839 = vmatprep.subr.bf16.mxu0 0
        %2840 = vmatpush1.bf16.msra.mxu0 %v2815
        %2841 = vmatprep.subr.bf16.mxu0 0
        %2842 = vmatpush1.bf16.msra.mxu0 %v2814
        %2843 = vmatprep.subr.bf16.mxu0 0
        %2844 = vmatpush2.bf16.msra.mxu0 0
        %2845 = vmatprep.subr.bf16.mxu0 0
        %2846 = vmatpush2.bf16.msra.mxu0 0
        %2847 = vmatprep.subr.bf16.mxu0 0
        %2848 = vmatpush2.bf16.msra.mxu0 0
        %2849 = vmatprep.subr.bf16.mxu0 0
        %2850 = vmatpush2.bf16.msra.mxu0 0
        %2851 = vmatprep.subr.bf16.mxu0 0
        %2852 = vmatpush2.bf16.msra.mxu0 0
        %2853 = vmatprep.subr.bf16.mxu0 0
        %2854 = vmatpush2.bf16.msra.mxu0 0
        %2855 = vmatprep.subr.bf16.mxu0 0
        %2856 = vmatpush2.bf16.msra.mxu0 0
        %2857 = vmatprep.subr.bf16.mxu0 0
        %2858 = vmatpush2.bf16.msra.mxu0 0
        %2859 = vmatprep.mubr.bf16.mxu0 0
        %2860 = vmatmul.mubr.bf16.gmra.mxu0 %v2819
        %v2861 = vpop.f32.mrf.mxu0
        %v2862 = vadd.f32 %v2804, %v2861
        %v2863 = vpop.f32.mrf.mxu0
        %v2864 = vpop.f32.mrf.mxu0
        %v2865 = vadd.f32 %v2804, %v2864
        %v2866 = vpop.f32.mrf.mxu0
        %2867 = vmatprep.mubr.bf16.mxu0 0
        %2868 = vmatmul.mubr.bf16.gmra.mxu0 %v2822
        %v2869 = vpop.f32.mrf.mxu0
        %v2870 = vadd.f32 %v2804, %v2869
        %v2871 = vpop.f32.mrf.mxu0
        %v2872 = vpop.f32.mrf.mxu0
        %v2873 = vadd.f32 %v2804, %v2872
        %v2874 = vpop.f32.mrf.mxu0
        %2875 = vmatprep.mubr.bf16.mxu0 0
        %2876 = vmatmul.mubr.bf16.gmra.mxu0 %v2825
        %v2877 = vpop.f32.mrf.mxu0
        %v2878 = vadd.f32 %v2804, %v2877
        %v2879 = vpop.f32.mrf.mxu0
        %v2880 = vpop.f32.mrf.mxu0
        %v2881 = vadd.f32 %v2804, %v2880
        %v2882 = vpop.f32.mrf.mxu0
        %2883 = vdwg.mxu0
        %v2884 = vmax.f32 %v2862, 0.0
        %v2885 = vmax.f32 %v2865, 0.0
        %v2886 = vmax.f32 %v2870, 0.0
        %v2887 = vmax.f32 %v2873, 0.0
        %v2888 = vmax.f32 %v2878, 0.0
        %v2889 = vmax.f32 %v2881, 0.0
        %v2890 = vpack.c.bf16 %v2885, %v2884
        %v2891 = vpack.c.bf16 %v2887, %v2886
        %v2892 = vpack.c.bf16 %v2889, %v2888
        %v2893 = vld [vmem:[%s809] sm:$0xf]
        %v2894 = vld [vmem:[%s809 + $0x4] sm:$0xf]
        %v2895 = vld [vmem:[%s809 + $0x8] sm:$0xf]
        %v2896 = vld [vmem:[%s809 + $0xc] sm:$0xf]
        %v2897 = vld [vmem:[%s809 + $0x10] sm:$0xf]
        %v2898 = vld [vmem:[%s809 + $0x14] sm:$0xf]
        %v2899 = vld [vmem:[%s809 + $0x18] sm:$0xf]
        %v2900 = vld [vmem:[%s809 + $0x1c] sm:$0xf]
        %v2901 = vld [vmem:[%s812] sm:$0x1]
        %v2903 = vlaneseq
        %v2904 = vshrl.u32 %v2903, 7
        %v2905 = vsub.s32 0, %v2904
        %v2906 = vrot.slane %v2901, %v2905
        %v2916 = vunpack.c.l.b16 %v2893
        %v2917 = vunpack.c.l.b16 %v2894
        %v2918 = vunpack.c.l.b16 %v2895
        %v2919 = vunpack.c.l.b16 %v2896
        %v2920 = vunpack.c.l.b16 %v2897
        %v2921 = vunpack.c.l.b16 %v2898
        %v2922 = vunpack.c.l.b16 %v2899
        %v2923 = vunpack.c.l.b16 %v2900
        %v2924 = vpack.c.b16 %v2917, %v2916
        %v2925 = vpack.c.b16 %v2919, %v2918
        %v2926 = vpack.c.b16 %v2921, %v2920
        %v2927 = vpack.c.b16 %v2923, %v2922
        %vm2932 = vcmask 523264
        %v2934 = vsel %vm2932, %v2890, 0
        %v2937 = vsel %vm2932, %v2891, 0
        %v2940 = vsel %vm2932, %v2892, 0
        %2942 = vmatprep.subr.bf16.mxu0 0
        %2943 = vmatpush1.bf16.msra.mxu0 0
        %2944 = vmatprep.subr.bf16.mxu0 0
        %2945 = vmatpush1.bf16.msra.mxu0 0
        %2946 = vmatprep.subr.bf16.mxu0 0
        %2947 = vmatpush1.bf16.msra.mxu0 0
        %2948 = vmatprep.subr.bf16.mxu0 0
        %2949 = vmatpush1.bf16.msra.mxu0 0
        %2950 = vmatprep.subr.bf16.mxu0 0
        %2951 = vmatpush1.bf16.msra.mxu0 %v2927
        %2952 = vmatprep.subr.bf16.mxu0 0
        %2953 = vmatpush1.bf16.msra.mxu0 %v2926
        %2954 = vmatprep.subr.bf16.mxu0 0
        %2955 = vmatpush1.bf16.msra.mxu0 %v2925
        %2956 = vmatprep.subr.bf16.mxu0 0
        %2957 = vmatpush1.bf16.msra.mxu0 %v2924
        %2958 = vmatprep.subr.bf16.mxu0 0
        %2959 = vmatpush2.bf16.msra.mxu0 0
        %2960 = vmatprep.subr.bf16.mxu0 0
        %2961 = vmatpush2.bf16.msra.mxu0 0
        %2962 = vmatprep.subr.bf16.mxu0 0
        %2963 = vmatpush2.bf16.msra.mxu0 0
        %2964 = vmatprep.subr.bf16.mxu0 0
        %2965 = vmatpush2.bf16.msra.mxu0 0
        %2966 = vmatprep.subr.bf16.mxu0 0
        %2967 = vmatpush2.bf16.msra.mxu0 0
        %2968 = vmatprep.subr.bf16.mxu0 0
        %2969 = vmatpush2.bf16.msra.mxu0 0
        %2970 = vmatprep.subr.bf16.mxu0 0
        %2971 = vmatpush2.bf16.msra.mxu0 0
        %2972 = vmatprep.subr.bf16.mxu0 0
        %2973 = vmatpush2.bf16.msra.mxu0 0
        %2974 = vmatprep.mubr.bf16.mxu0 0
        %2975 = vmatmul.mubr.bf16.gmra.mxu0 %v2934
        %v2976 = vpop.f32.mrf.mxu0
        %v2977 = vadd.f32 %v2906, %v2976
        %v2978 = vpop.f32.mrf.mxu0
        %v2979 = vpop.f32.mrf.mxu0
        %v2980 = vadd.f32 %v2906, %v2979
        %v2981 = vpop.f32.mrf.mxu0
        %2982 = vmatprep.mubr.bf16.mxu0 0
        %2983 = vmatmul.mubr.bf16.gmra.mxu0 %v2937
        %v2984 = vpop.f32.mrf.mxu0
        %v2985 = vadd.f32 %v2906, %v2984
        %v2986 = vpop.f32.mrf.mxu0
        %v2987 = vpop.f32.mrf.mxu0
        %v2988 = vadd.f32 %v2906, %v2987
        %v2989 = vpop.f32.mrf.mxu0
        %2990 = vmatprep.mubr.bf16.mxu0 0
        %2991 = vmatmul.mubr.bf16.gmra.mxu0 %v2940
        %v2992 = vpop.f32.mrf.mxu0
        %v2993 = vadd.f32 %v2906, %v2992
        %v2994 = vpop.f32.mrf.mxu0
        %v2995 = vpop.f32.mrf.mxu0
        %v2996 = vadd.f32 %v2906, %v2995
        %v2997 = vpop.f32.mrf.mxu0
        %2998 = vdwg.mxu0
        %v2999 = vadd.f32 %v2682, %v2977
        %v3000 = vadd.f32 %v2683, %v2980
        %v3001 = vadd.f32 %v2684, %v2985
        %v3002 = vadd.f32 %v2685, %v2988
        %v3003 = vadd.f32 %v2686, %v2993
        %v3004 = vadd.f32 %v2687, %v2996
        %3005 = vst.msk [vmem:[#allocation2] sm:$0xff] %vm962, %v2999
        %3006 = vst.msk [vmem:[#allocation2 + $0x8] sm:$0xff] %vm962, %v3000
        %3007 = vst.msk [vmem:[#allocation2 + $0x10] sm:$0xff] %vm962, %v3001
        %3008 = vst.msk [vmem:[#allocation2 + $0x18] sm:$0xff] %vm962, %v3002
        %3009 = vst.msk [vmem:[#allocation2 + $0x20] sm:$0xff] %vm962, %v3003
        %3010 = vst.msk [vmem:[#allocation2 + $0x28] sm:$0xff] %vm962, %v3004
        %p3011 = scmp.eq.s32.totalorder %s34, 1
        // Predicated region
        $region105: #{vit_forward.1} parent=99 // pred_check
          %p3012 = pneg %p3011
        $region106: #{vit_forward.1} parent=99 // pred_check_branch
          %3014 = sbr.rel (%p3012) target = $region108
        $region107: #{vit_forward.1} parent=99 // pred_region
          %3015 = vst.msk [vmem:[%s20] sm:$0xff] %vm962, %v2999
          %3016 = vst.msk [vmem:[%s20 + $0x8] sm:$0xff] %vm962, %v3000
          %3017 = vst.msk [vmem:[%s20 + $0x10] sm:$0xff] %vm962, %v3001
          %3018 = vst.msk [vmem:[%s20 + $0x18] sm:$0xff] %vm962, %v3002
          %3019 = vst.msk [vmem:[%s20 + $0x20] sm:$0xff] %vm962, %v3003
          %3020 = vst.msk [vmem:[%s20 + $0x28] sm:$0xff] %vm962, %v3004
          %v3022 = vrot.slane %v3002, 7
          %vm3024 = vcmask 1040384
          %v3025 = vsel %vm3024, %v2999, %v3022
          %v3026 = vpack.c.bf16 %v3025, %v3025
          %v3027 = vld [vmem:[%s16] sm:$0xf]
          %v3028 = vld [vmem:[%s16 + $0x4] sm:$0xf]
          %v3029 = vld [vmem:[%s16 + $0x8] sm:$0xf]
          %v3030 = vld [vmem:[%s16 + $0xc] sm:$0xf]
          %v3031 = vld [vmem:[%s17] sm:$0x1]
          %v3033 = vlaneseq
          %v3034 = vshrl.u32 %v3033, 7
          %v3035 = vsub.s32 0, %v3034
          %v3036 = vrot.slane %v3031, %v3035
          %v3042 = vunpack.c.l.b16 %v3027
          %v3043 = vunpack.c.l.b16 %v3028
          %v3044 = vunpack.c.l.b16 %v3029
          %v3045 = vunpack.c.l.b16 %v3030
          %v3046 = vpack.c.b16 %v3043, %v3042
          %v3047 = vpack.c.b16 %v3045, %v3044
          %v3051 = vsel %vm962, %v3026, 0
          %3053 = vmatprep.subr.bf16.mxu0 0
          %3054 = vmatpush1.bf16.msra.mxu0 0
          %3055 = vmatprep.subr.bf16.mxu0 0
          %3056 = vmatpush1.bf16.msra.mxu0 0
          %3057 = vmatprep.subr.bf16.mxu0 0
          %3058 = vmatpush1.bf16.msra.mxu0 0
          %3059 = vmatprep.subr.bf16.mxu0 0
          %3060 = vmatpush1.bf16.msra.mxu0 0
          %3061 = vmatprep.subr.bf16.mxu0 0
          %3062 = vmatpush1.bf16.msra.mxu0 0
          %3063 = vmatprep.subr.bf16.mxu0 0
          %3064 = vmatpush1.bf16.msra.mxu0 0
          %3065 = vmatprep.subr.bf16.mxu0 0
          %3066 = vmatpush1.bf16.msra.mxu0 %v3047
          %3067 = vmatprep.subr.bf16.mxu0 0
          %3068 = vmatpush1.bf16.msra.mxu0 %v3046
          %3069 = vmatprep.subr.bf16.mxu0 0
          %3070 = vmatpush2.bf16.msra.mxu0 0
          %3071 = vmatprep.subr.bf16.mxu0 0
          %3072 = vmatpush2.bf16.msra.mxu0 0
          %3073 = vmatprep.subr.bf16.mxu0 0
          %3074 = vmatpush2.bf16.msra.mxu0 0
          %3075 = vmatprep.subr.bf16.mxu0 0
          %3076 = vmatpush2.bf16.msra.mxu0 0
          %3077 = vmatprep.subr.bf16.mxu0 0
          %3078 = vmatpush2.bf16.msra.mxu0 0
          %3079 = vmatprep.subr.bf16.mxu0 0
          %3080 = vmatpush2.bf16.msra.mxu0 0
          %3081 = vmatprep.subr.bf16.mxu0 0
          %3082 = vmatpush2.bf16.msra.mxu0 0
          %3083 = vmatprep.subr.bf16.mxu0 0
          %3084 = vmatpush2.bf16.msra.mxu0 0
          %3085 = vmatprep.mubr.bf16.mxu0 0
          %3086 = vmatmul.mubr.bf16.gmra.mxu0 %v3051
          %v3087 = vpop.f32.mrf.mxu0
          %v3088 = vadd.f32 %v3036, %v3087
          %v3089 = vpop.f32.mrf.mxu0
          %v3090 = vpop.f32.mrf.mxu0
          %v3091 = vpop.f32.mrf.mxu0
          %3092 = vdwg.mxu0
          %v3093 = vmul.f32 %v3088, 0.5
          %v3094 = vmul.f32 %v3088, 0.70710677
          %v3095 = verf.f32.pop %v3094
          %v3096 = vadd.f32 %v3095, 1.0
          %v3097 = vmul.f32 %v3093, %v3096
          %v3098 = vpack.c.bf16 %v3097, %v3097
          %v3099 = vld [vmem:[%s18] sm:$0xf]
          %v3100 = vld [vmem:[%s18 + $0x4] sm:$0xf]
          %v3101 = vld [vmem:[%s19] sm:$0x1]
          %v3103 = vlaneseq
          %v3104 = vshrl.u32 %v3103, 7
          %v3105 = vsub.s32 0, %v3104
          %v3106 = vrot.slane %v3101, %v3105
          %v3110 = vunpack.c.l.b16 %v3099
          %v3111 = vunpack.c.l.b16 %v3100
          %v3112 = vpack.c.b16 %v3111, %v3110
          %v3115 = vsel %vm1871, %v3098, 0
          %3117 = vmatprep.subr.bf16.mxu0 0
          %3118 = vmatpush1.bf16.msra.mxu0 0
          %3119 = vmatprep.subr.bf16.mxu0 0
          %3120 = vmatpush1.bf16.msra.mxu0 0
          %3121 = vmatprep.subr.bf16.mxu0 0
          %3122 = vmatpush1.bf16.msra.mxu0 0
          %3123 = vmatprep.subr.bf16.mxu0 0
          %3124 = vmatpush1.bf16.msra.mxu0 0
          %3125 = vmatprep.subr.bf16.mxu0 0
          %3126 = vmatpush1.bf16.msra.mxu0 0
          %3127 = vmatprep.subr.bf16.mxu0 0
          %3128 = vmatpush1.bf16.msra.mxu0 0
          %3129 = vmatprep.subr.bf16.mxu0 0
          %3130 = vmatpush1.bf16.msra.mxu0 0
          %3131 = vmatprep.subr.bf16.mxu0 0
          %3132 = vmatpush1.bf16.msra.mxu0 %v3112
          %3133 = vmatprep.subr.bf16.mxu0 0
          %3134 = vmatpush2.bf16.msra.mxu0 0
          %3135 = vmatprep.subr.bf16.mxu0 0
          %3136 = vmatpush2.bf16.msra.mxu0 0
          %3137 = vmatprep.subr.bf16.mxu0 0
          %3138 = vmatpush2.bf16.msra.mxu0 0
          %3139 = vmatprep.subr.bf16.mxu0 0
          %3140 = vmatpush2.bf16.msra.mxu0 0
          %3141 = vmatprep.subr.bf16.mxu0 0
          %3142 = vmatpush2.bf16.msra.mxu0 0
          %3143 = vmatprep.subr.bf16.mxu0 0
          %3144 = vmatpush2.bf16.msra.mxu0 0
          %3145 = vmatprep.subr.bf16.mxu0 0
          %3146 = vmatpush2.bf16.msra.mxu0 0
          %3147 = vmatprep.subr.bf16.mxu0 0
          %3148 = vmatpush2.bf16.msra.mxu0 0
          %3149 = vmatprep.mubr.bf16.mxu0 0
          %3150 = vmatmul.mubr.bf16.gmra.mxu0 %v3115
          %v3151 = vpop.f32.mrf.mxu0
          %v3152 = vadd.f32 %v3106, %v3151
          %v3153 = vpop.f32.mrf.mxu0
          %v3154 = vpop.f32.mrf.mxu0
          %v3155 = vpop.f32.mrf.mxu0
          %3156 = vdwg.mxu0
          %vm3157 = vcmask 74752
          %3158 = vst.msk [vmem:[#allocation3] sm:$0x3] %vm3157, %v3152
        $region108: #{vit_forward.1} parent=99 // pred_fallthru
          _
        // Predicated region
        $region109: #{vit_forward.1} parent=99 // pred_check
          %p3159 = pneg %p527
        $region110: #{vit_forward.1} parent=99 // pred_check_branch
          %3161 = sbr.rel (%p3159) target = $region112
        $region111: #{vit_forward.1} parent=99 // pred_region
          _
        $region112: #{vit_forward.1} parent=99 // pred_fallthru
          _
        // Predicated region
        $region113: #{vit_forward.1} parent=99 // pred_check
          %p3162 = pneg %p548
        $region114: #{vit_forward.1} parent=99 // pred_check_branch
          %3164 = sbr.rel (%p3162) target = $region116
        $region115: #{vit_forward.1} parent=99 // pred_region
          %s3166 = ssub.s32 32, 32
          %3167 = vsyncadd [#allocation4], %s3166
          %s3169 = sshll.u32 [#allocation3], 4
          %s3170 = int_to_ptr.vmem [resolvable:$true] %s3169
          %3172 = dma.vmem_to_hbm [thread:$0]  %s3170, 32, %s21, [#allocation4]
        $region116: #{vit_forward.1} parent=99 // pred_fallthru
          _
        // Predicated region
        $region117: #{vit_forward.1} parent=99 // pred_check
          %p3173 = pneg %p527
        $region118: #{vit_forward.1} parent=99 // pred_check_branch
          %3175 = sbr.rel (%p3173) target = $region120
        $region119: #{vit_forward.1} parent=99 // pred_region
          _
        $region120: #{vit_forward.1} parent=99 // pred_fallthru
          _
        // Predicated region
        $region121: #{vit_forward.1} parent=99 // pred_check
          %p3176 = pneg %p548
        $region122: #{vit_forward.1} parent=99 // pred_check_branch
          %3178 = sbr.rel (%p3176) target = $region124
        $region123: #{vit_forward.1} parent=99 // pred_region
          %3179 = dma.done [#allocation4], 32
        $region124: #{vit_forward.1} parent=99 // pred_fallthru
          _
      $region100: #{vit_forward.1} parent=5 // pred_fallthru
        _
      %p3180 = scmp.le.s32.totalorder 2, %s29
      // Predicated region
      $region125: #{vit_forward.1} parent=5 // pred_check
        %p3181 = pneg %p3180
      $region126: #{vit_forward.1} parent=5 // pred_check_branch
        %3183 = sbr.rel (%p3181) target = $region128
      $region127: #{vit_forward.1} parent=5 // pred_region
        %s3184 = ssub.s32 %s29, 2
      $region128: #{vit_forward.1} parent=5 // pred_fallthru
        _
    $region6: #{vit_forward.1} parent=1 // loop_footer
      %s33 = sadd.s32 1, %s29
    $region7: #{vit_forward.1} parent=1 // loop_footer_branch
      %28 = sbr.rel target = $region3
    $region8: #{vit_forward.1} parent=1 // loop_exit
      _
    %3185 = vsyncpa [#allocation4], 1
    %s3186 = scalar_lea.sflag [#allocation4], 1
    %3187 = vsyncpa %s3186, 1

</llo_original>
